<compile_context>
chip_gen: v7x
topology: tpu7x:2x2x1
jax: 0.10.0
libtpu: 0.0.40
codegen_flags: <defaults>
</compile_context>

<pallas_src>
import functools

import jax
import jax.numpy as jnp
from jax.experimental import pallas as pl
from jax.experimental.pallas import tpu as pltpu


# ---------------------------------------------------------------------------
# Per-generation VMEM budgeting (err on the small/v7x-safe side when unsure)
# ---------------------------------------------------------------------------
def _is_big_vmem():
    # v5e / v6e have 128 MiB VMEM per TensorCore; v7x only 64 MiB.
    try:
        kind = jax.devices()[0].device_kind.lower()
        if "7" in kind:
            return False
        if "v5" in kind or "v6" in kind:
            return True
    except Exception:
        pass
    try:
        cap = getattr(pltpu.get_tpu_info(), "vmem_capacity_bytes", None)
        if cap:
            return int(cap) >= (100 << 20)
    except Exception:
        pass
    return False   # conservative default: assume small-VMEM (v7x) budgets


# ---------------------------------------------------------------------------
# Pallas kernel 1: stand-in feature extractor (1x1 conv + ReLU), one lane-dense
# matmul over all frames at once, bf16 output.
# ---------------------------------------------------------------------------
def _feat_kernel(x_ref, w_ref, b_ref, o_ref):
    # x_ref: (Cin, TL)   w_ref: (Cf, Cin)   b_ref: (Cf, 1)   o_ref: (Cf, TL)
    y = jnp.dot(w_ref[...], x_ref[...], preferred_element_type=jnp.float32)  # MXU
    y = jnp.maximum(y + b_ref[...], 0.0)                                     # bias + ReLU
    o_ref[...] = y.astype(o_ref.dtype)


def feature_extract_pallas(x2d, w, b, out_dtype=jnp.bfloat16):
    # x2d: (Cin, NF*P) f32  ->  (Cf, NF*P) bf16
    cin, np_ = x2d.shape
    cf = w.shape[0]

    def blocks_bytes(t):
        # double-buffered input/output blocks + un-tiled weights/bias
        return 2 * (cin * t * 4 + cf * t * 2) + cf * cin * 4 + cf * 4

    budget = 24 << 20
    tl = np_                               # prefer a single collapsed lane-dense step
    if blocks_bytes(np_) > budget:
        for cand in (32768, 16384, 8192, 4096, 2048, 1024, 512, 256, 128):
            if np_ % cand == 0 and blocks_bytes(cand) <= budget:
                tl = cand
                break

    vmem_limit = int(min(max(blocks_bytes(tl) + (4 << 20), 16 << 20), 48 << 20))
    return pl.pallas_call(
        _feat_kernel,
        out_shape=jax.ShapeDtypeStruct((cf, np_), out_dtype),
        grid=(np_ // tl,),
        in_specs=[
            pl.BlockSpec((cin, tl), lambda j: (0, j)),
            pl.BlockSpec((cf, cin), lambda j: (0, 0)),
            pl.BlockSpec((cf, 1), lambda j: (0, 0)),
        ],
        out_specs=pl.BlockSpec((cf, tl), lambda j: (0, j)),
        compiler_params=pltpu.CompilerParams(
            dimension_semantics=("parallel",),
            vmem_limit_bytes=vmem_limit,
        ),
    )(x2d, w, b)


# ---------------------------------------------------------------------------
# Pallas kernel 2: fused cost-volume + softmax(-cost) (+ optional BV_predict fusion)
# ---------------------------------------------------------------------------
def _cost_exp(ref_ref, warp_ref, neg_inv_sigma_nv):
    # ref_ref : (Cf, TP)        bf16 reference features for this pixel tile
    # warp_ref: (V, Cf, D, TP)  bf16 warped source features (depth on sublanes)
    v, cf, d, tp = warp_ref.shape
    ref_f = ref_ref[...].astype(jnp.float32)                    # (Cf, TP), single load

    # Running SSD over (views, channels): channel reduce is pure VPU accumulation
    # into one (D, TP) f32 accumulator (no cross-sublane XLU work per channel).
    acc = jnp.zeros((d, tp), jnp.float32)
    for ci in range(cf):                                        # static unroll (Cf, V small)
        refb = jnp.broadcast_to(ref_f[ci:ci + 1, :], (d, tp))   # hoisted out of view loop
        for vi in range(v):
            dlt = warp_ref[vi, ci].astype(jnp.float32) - refb   # (D, TP) VPU
            acc = acc + dlt * dlt

    neg = acc * neg_inv_sigma_nv                                # sign folded into scale
    m = jnp.max(neg, axis=0, keepdims=True)                     # one XLU collapse over depth
    return jnp.exp(neg - m)                                     # (D, TP) unnormalized softmax


def _cost_bv_kernel_noprior(ref_ref, warp_ref, o_ref, *, neg_inv_sigma_nv):
    e = _cost_exp(ref_ref, warp_ref, neg_inv_sigma_nv)
    s = jnp.sum(e, axis=0, keepdims=True)
    # final normalization exact (no renorm follows) so sum over depth == 1 tightly
    o_ref[...] = e * pl.reciprocal(s, approx=False)


def _cost_bv_kernel_prior(ref_ref, warp_ref, prior_ref, o_ref, *, neg_inv_sigma_nv):
    e = _cost_exp(ref_ref, warp_ref, neg_inv_sigma_nv)
    # The softmax denominator is constant over depth per pixel, so it cancels in the
    # final renormalization: fuse with the prior and normalize once (eps guards
    # against priors that zero out every depth bin).
    bv = e * prior_ref[...]
    denom = jnp.sum(bv, axis=0, keepdims=True) + 1e-12
    o_ref[...] = bv * pl.reciprocal(denom, approx=False)


def _cost_vmem_need(v, d, cf, tp, with_prior):
    need = (2 * v * cf * d * tp * 2      # double-buffered bf16 warp blocks
            + 2 * cf * tp * 2            # double-buffered bf16 ref blocks
            + 2 * d * tp * 4             # double-buffered f32 output blocks
            + 6 * d * tp * 4)            # in-kernel f32 temporaries (acc/diff/bcast/exp)
    if with_prior:
        need += 2 * d * tp * 4
    return need


def _pick_tp(p, v, d, cf, with_prior):
    if _is_big_vmem():                    # v5e / v6e: 128 MiB VMEM per TensorCore
        budget, cands = 48 << 20, (8192, 4096, 2048, 1024, 512, 256, 128)
    else:                                 # v7x: 64 MiB VMEM per TensorCore
        budget, cands = 24 << 20, (2048, 1024, 512, 256, 128)
    for tp in cands:
        if p % tp == 0 and _cost_vmem_need(v, d, cf, tp, with_prior) <= budget:
            return tp
    return p                              # tiny / oddly-shaped P: single full-width block


def cost_volume_bv_pallas(feat_ref, warped, prior, sigma_soft_max, n_views):
    # feat_ref: (Cf, P)        bf16
    # warped  : (V, Cf, D, P)  bf16  (depth on sublanes, pixels on lanes)
    # prior   : (D, P) f32, or None  (no-prior path specialized)
    cf, p = feat_ref.shape
    v, _, d, _ = warped.shape
    neg_inv = -1.0 / (float(sigma_soft_max) * float(n_views))

    tp = _pick_tp(p, v, d, cf, prior is not None)
    nt = p // tp
    need = _cost_vmem_need(v, d, cf, tp, prior is not None)
    limit_cap = (96 << 20) if _is_big_vmem() else (48 << 20)
    vmem_limit = int(min(max(need + (8 << 20), 32 << 20), limit_cap))

    in_specs = [
        pl.BlockSpec((cf, tp), lambda j: (0, j)),
        # NOTE: if profiling shows exposed DMA on this slab on v6e, add
        # pipeline_mode=pl.Buffered(3) here (skip on v7x / v5e).
        pl.BlockSpec((v, cf, d, tp), lambda j: (0, 0, 0, j)),
    ]
    args = [feat_ref, warped]
    if prior is None:
        kern = functools.partial(_cost_bv_kernel_noprior, neg_inv_sigma_nv=neg_inv)
    else:
        kern = functools.partial(_cost_bv_kernel_prior, neg_inv_sigma_nv=neg_inv)
        in_specs.append(pl.BlockSpec((d, tp), lambda j: (0, j)))
        args.append(prior)

    return pl.pallas_call(
        kern,
        out_shape=jax.ShapeDtypeStruct((d, p), jnp.float32),
        grid=(nt,),
        in_specs=in_specs,
        out_specs=pl.BlockSpec((d, tp), lambda j: (0, j)),
        compiler_params=pltpu.CompilerParams(
            dimension_semantics=("parallel",),   # megacore-shards pixel tiles on v7x
            vmem_limit_bytes=vmem_limit,
        ),
    )(*args)


# ---------------------------------------------------------------------------
# Plain-JAX glue: pooling, vectorized homography projection + bilinear warp
# ---------------------------------------------------------------------------
def avg_pool4(x):
    # x: (N, C, H, W) -> (N, C, H//4, W//4), mimics PSMNet's 1/4-res features
    n, c, h, w = x.shape
    return x.reshape(n, c, h // 4, 4, w // 4, 4).mean(axis=(3, 5))


def warp_src_features(feat_src_flat, Rs, ts, K, d_candi, hf, wf):
    # feat_src_flat: (V, Cf, HW) bf16 -> warped volume (V, Cf, D, P) bf16.
    # This is exactly the layout the cost kernel tiles (pixels on lanes), so no
    # transpose pass is needed; the cast to bf16 happens before materialization.
    v, cf, hw = feat_src_flat.shape
    d = d_candi.shape[0]
    p = hw

    kinv = jnp.linalg.inv(K)
    uu, vv = jnp.meshgrid(jnp.arange(wf, dtype=jnp.float32),
                          jnp.arange(hf, dtype=jnp.float32), indexing="xy")
    pix = jnp.stack([uu.reshape(-1), vv.reshape(-1), jnp.ones(hw, jnp.float32)], axis=0)
    rays = kinv @ pix                                              # (3, P) unit-plane rays

    R = jnp.stack(Rs, axis=0)                                      # (V, 3, 3)
    t = jnp.stack(ts, axis=0)                                      # (V, 3)
    pts = d_candi[:, None, None] * rays[None, :, :]                # (D, 3, P) points per plane
    cam = jnp.einsum("vij,djp->vdip", R, pts) + t[:, None, :, None]   # (V, D, 3, P)
    proj = jnp.einsum("ij,vdjp->vdip", K, cam)                     # (V, D, 3, P)
    z = jnp.maximum(proj[:, :, 2, :], 1e-6)
    us = proj[:, :, 0, :] / z                                      # (V, D, P)
    vs = proj[:, :, 1, :] / z

    u0 = jnp.floor(us)
    v0 = jnp.floor(vs)
    wu1 = us - u0
    wu0 = 1.0 - wu1
    wv1 = vs - v0
    wv0 = 1.0 - wv1

    def gather_corner(ui, vi):
        valid = ((ui >= 0) & (ui <= wf - 1) & (vi >= 0) & (vi <= hf - 1)).astype(jnp.float32)
        uc = jnp.clip(ui, 0, wf - 1).astype(jnp.int32)
        vc = jnp.clip(vi, 0, hf - 1).astype(jnp.int32)
        lin = vc * wf + uc                                         # (V, D, P)

        def one_view(feat_v, lin_v):                               # (Cf, HW), (D, P)
            g = jnp.take(feat_v, lin_v.reshape(-1), axis=1, mode="clip")
            return g.reshape(cf, d, p)                             # (Cf, D, P)

        vals = jax.vmap(one_view)(feat_src_flat, lin).astype(jnp.float32)   # (V, Cf, D, P)
        return vals * valid[:, None, :, :]                         # zero-pad out-of-frustum

    w00 = (wu0 * wv0)[:, None, :, :]
    w10 = (wu1 * wv0)[:, None, :, :]
    w01 = (wu0 * wv1)[:, None, :, :]
    w11 = (wu1 * wv1)[:, None, :, :]
    warped = (gather_corner(u0, v0) * w00
              + gather_corner(u0 + 1.0, v0) * w10
              + gather_corner(u0, v0 + 1.0) * w01
              + gather_corner(u0 + 1.0, v0 + 1.0) * w11)           # (V, Cf, D, P) f32
    return warped.astype(jnp.bfloat16)                             # bf16 before materialization


# ---------------------------------------------------------------------------
# Full forward, mirroring baseline0_disp.forward (BV_log=False, normalize=True,
# use_img_intensity=False, force_img_dw_rate=1)
# ---------------------------------------------------------------------------
def baseline0_disp_forward(ref_frame, src_frames, src_cam_poses, d_candi,
                           cam_K_feat, params, sigma_soft_max, BV_predict=None):
    n_src = len(src_frames)
    # frames_ = cat([src..., ref], dim=0)
    frames = jnp.concatenate(list(src_frames) + [ref_frame], axis=0)   # (V+1, Cin, H, W)
    nf, cin, h, w = frames.shape
    pooled = avg_pool4(frames)                                          # (V+1, Cin, Hf, Wf)
    hf, wf = pooled.shape[2], pooled.shape[3]
    p = hf * wf

    # one lane-dense matmul for all frames: (Cf, Cin) @ (Cin, NF*P) -> bf16 features
    x2d = jnp.transpose(pooled, (1, 0, 2, 3)).reshape(cin, nf * p)
    feats = feature_extract_pallas(x2d, params["feat_w"], params["feat_b"])   # (Cf, NF*P)
    cf = feats.shape[0]

    feat_ref = feats[:, (nf - 1) * p: nf * p]                           # (Cf, P) bf16
    feat_src_flat = jnp.transpose(
        feats[:, :n_src * p].reshape(cf, n_src, p), (1, 0, 2))          # (V, Cf, HW) bf16

    Rs = [pose[:3, :3] for pose in src_cam_poses]
    ts = [pose[:3, 3] for pose in src_cam_poses]

    warped = warp_src_features(feat_src_flat, Rs, ts, cam_K_feat,
                               d_candi, hf, wf)                         # (V, Cf, D, P) bf16

    d = d_candi.shape[0]
    prior = None if BV_predict is None else BV_predict.reshape(d, p).astype(jnp.float32)
    bv = cost_volume_bv_pallas(feat_ref, warped, prior, sigma_soft_max, n_src)   # (D, P)
    return bv.reshape(1, d, hf, wf)


# ---------------------------------------------------------------------------
if __name__ == "__main__":
    key = jax.random.PRNGKey(0)
    k1, k2, k3, k4 = jax.random.split(key, 4)

    # Small shapes
    H, W = 64, 64          # input images (feature maps at 16x16 -> P=256 lanes)
    CIN = 3
    CF = 32                # feature channels (PSMNet-like)
    D = 16                 # number of depth candidates
    N_SRC = 2              # number of source views

    ref_frame = jax.random.normal(k1, (1, CIN, H, W), jnp.float32)
    src_frames = [jax.random.normal(jax.random.fold_in(k2, i), (1, CIN, H, W), jnp.float32)
                  for i in range(N_SRC)]

    # Relative camera poses (ref -> src): identity rotation + small translation
    src_cam_poses = []
    for i in range(N_SRC):
        pose = jnp.eye(4, dtype=jnp.float32)
        pose = pose.at[:3, 3].set(jnp.array([0.1 * (i + 1), -0.05 * (i + 1), 0.02], jnp.float32))
        src_cam_poses.append(pose)

    d_candi = jnp.linspace(1.0, 5.0, D).astype(jnp.float32)

    hf, wf = H // 4, W // 4
    cam_K_feat = jnp.array([[float(wf), 0.0, wf / 2.0],
                            [0.0, float(wf), hf / 2.0],
                            [0.0, 0.0, 1.0]], jnp.float32)

    # Deterministic stand-in feature-extractor parameters (1x1 conv)
    params = {
        "feat_w": 0.1 * jax.random.normal(k3, (CF, CIN), jnp.float32),
        "feat_b": 0.01 * jax.random.normal(k4, (CF, 1), jnp.float32),
    }

    sigma_soft_max = 10.0

    fwd = jax.jit(baseline0_disp_forward, static_argnames=("sigma_soft_max",))

    # no-prior path (specialized kernel)
    BV = fwd(ref_frame, src_frames, src_cam_poses, d_candi, cam_K_feat, params,
             sigma_soft_max=sigma_soft_max)
    BV = jax.block_until_ready(BV)

    assert BV.shape == (1, D, hf, wf)
    sums = jnp.sum(BV, axis=1)
    assert bool(jnp.all(jnp.isfinite(BV)))
    assert bool(jnp.allclose(sums, 1.0, atol=1e-4))

    # BV_predict fusion path: a uniform prior must be a no-op
    BV_uniform_prior = jnp.full((1, D, hf, wf), 1.0 / D, jnp.float32)
    BV2 = fwd(ref_frame, src_frames, src_cam_poses, d_candi, cam_K_feat, params,
              sigma_soft_max=sigma_soft_max, BV_predict=BV_uniform_prior)
    BV2 = jax.block_until_ready(BV2)
    assert bool(jnp.all(jnp.isfinite(BV2)))
    assert bool(jnp.allclose(BV2, BV, atol=1e-4))

    print("KERNEL_OK")
</pallas_src>

<mosaic_0001>
module attributes {stable_mosaic.version = 11 : i64} {
  func.func @_feat_kernel(%arg0: i32, %arg1: memref<3x768xf32, #tpu.memory_space<vmem>>, %arg2: memref<32x3xf32, #tpu.memory_space<vmem>>, %arg3: memref<32x1xf32, #tpu.memory_space<vmem>>, %arg4: memref<32x768xbf16, #tpu.memory_space<vmem>>) attributes {dimension_semantics = [#tpu.dimension_semantics<parallel>], iteration_bounds = array<i64: 1>, scalar_prefetch = 0 : i64, scratch_operands = 0 : i64, tpu.core_type = #tpu.core_type<tc>, window_params = [{transform_indices = @transform_0, window_bounds = array<i64: 3, 768>}, {pipeline_mode = #tpu.pipeline_mode<synchronous>, transform_indices = @transform_1, window_bounds = array<i64: 32, 3>}, {pipeline_mode = #tpu.pipeline_mode<synchronous>, transform_indices = @transform_2, window_bounds = array<i64: 32, 1>}, {transform_indices = @transform_3, window_bounds = array<i64: 32, 768>}]} {
    %c0 = arith.constant 0 : index
    %c0_0 = arith.constant 0 : index
    %0 = vector.load %arg2[%c0, %c0_0] : memref<32x3xf32, #tpu.memory_space<vmem>>, vector<32x3xf32>
    %c0_1 = arith.constant 0 : index
    %c0_2 = arith.constant 0 : index
    %1 = vector.load %arg1[%c0_1, %c0_2] : memref<3x768xf32, #tpu.memory_space<vmem>>, vector<3x768xf32>
    %cst = arith.constant dense<0.000000e+00> : vector<32x768xf32>
    %2 = tpu.matmul %0, %1, %cst {dimension_numbers = #tpu.dot_dimension_numbers<[1], [0], [0], [1], [0, 0, 1, 1], [], []>} : vector<32x3xf32>, vector<3x768xf32>, vector<32x768xf32> -> vector<32x768xf32>
    %c0_3 = arith.constant 0 : index
    %c0_4 = arith.constant 0 : index
    %3 = vector.load %arg3[%c0_3, %c0_4] : memref<32x1xf32, #tpu.memory_space<vmem>>, vector<32x1xf32>
    %4 = vector.broadcast %3 : vector<32x1xf32> to vector<32x768xf32>
    %5 = arith.addf %2, %4 : vector<32x768xf32>
    %cst_5 = arith.constant 0.000000e+00 : f32
    %6 = vector.broadcast %cst_5 : f32 to vector<32x768xf32>
    %7 = arith.maximumf %5, %6 : vector<32x768xf32>
    %8 = arith.truncf %7 : vector<32x768xf32> to vector<32x768xbf16>
    %c0_6 = arith.constant 0 : index
    %c0_7 = arith.constant 0 : index
    %9 = vector.load %arg4[%c0_6, %c0_7] : memref<32x768xbf16, #tpu.memory_space<vmem>>, vector<32x768xbf16>
    tpu.vector_store %arg4[%c0_6, %c0_7], %8 {strides = array<i32>} : memref<32x768xbf16, #tpu.memory_space<vmem>>, vector<32x768xbf16>,
    return
  }
  func.func @transform_0(%arg0: i32) -> (i32, i32) {
    %c0_i32 = arith.constant 0 : i32
    %c0_i32_0 = arith.constant 0 : i32
    return %c0_i32, %arg0 : i32, i32
  }
  func.func @transform_1(%arg0: i32) -> (i32, i32) {
    %c0_i32 = arith.constant 0 : i32
    %c0_i32_0 = arith.constant 0 : i32
    %c0_i32_1 = arith.constant 0 : i32
    return %c0_i32, %c0_i32_0 : i32, i32
  }
  func.func @transform_2(%arg0: i32) -> (i32, i32) {
    %c0_i32 = arith.constant 0 : i32
    %c0_i32_0 = arith.constant 0 : i32
    %c0_i32_1 = arith.constant 0 : i32
    return %c0_i32, %c0_i32_0 : i32, i32
  }
  func.func @transform_3(%arg0: i32) -> (i32, i32) {
    %c0_i32 = arith.constant 0 : i32
    %c0_i32_0 = arith.constant 0 : i32
    return %c0_i32, %arg0 : i32, i32
  }
}

module attributes {stable_mosaic.version = 11 : i64} {
  func.func @_cost_bv_kernel_noprior(%arg0: i32, %arg1: memref<32x256xbf16, #tpu.memory_space<vmem>>, %arg2: memref<2x32x16x256xbf16, #tpu.memory_space<vmem>>, %arg3: memref<16x256xf32, #tpu.memory_space<vmem>>) attributes {dimension_semantics = [#tpu.dimension_semantics<parallel>], iteration_bounds = array<i64: 1>, scalar_prefetch = 0 : i64, scratch_operands = 0 : i64, tpu.core_type = #tpu.core_type<tc>, window_params = [{transform_indices = @transform_0, window_bounds = array<i64: 32, 256>}, {transform_indices = @transform_1, window_bounds = array<i64: 2, 32, 16, 256>}, {transform_indices = @transform_2, window_bounds = array<i64: 16, 256>}]} {
    %c0 = arith.constant 0 : index
    %c0_0 = arith.constant 0 : index
    %0 = vector.load %arg1[%c0, %c0_0] : memref<32x256xbf16, #tpu.memory_space<vmem>>, vector<32x256xbf16>
    %1 = arith.extf %0 : vector<32x256xbf16> to vector<32x256xf32>
    %cst = arith.constant 0.000000e+00 : f32
    %2 = vector.broadcast %cst : f32 to vector<16x256xf32>
    %3 = vector.extract_strided_slice %1 {offsets = [0, 0], sizes = [1, 256], strides = [1, 1]} : vector<32x256xf32> to vector<1x256xf32>
    %4 = vector.shape_cast %3 : vector<1x256xf32> to vector<1x256xf32>
    %5 = vector.broadcast %4 : vector<1x256xf32> to vector<16x256xf32>
    %c0_1 = arith.constant 0 : index
    %c0_2 = arith.constant 0 : index
    %c0_3 = arith.constant 0 : index
    %c0_4 = arith.constant 0 : index
    %6 = vector.load %arg2[%c0_1, %c0_2, %c0_3, %c0_4] : memref<2x32x16x256xbf16, #tpu.memory_space<vmem>>, vector<1x1x16x256xbf16>
    %7 = vector.shape_cast %6 : vector<1x1x16x256xbf16> to vector<16x256xbf16>
    %8 = arith.extf %7 : vector<16x256xbf16> to vector<16x256xf32>
    %9 = arith.subf %8, %5 : vector<16x256xf32>
    %10 = arith.mulf %9, %9 : vector<16x256xf32>
    %11 = arith.addf %2, %10 : vector<16x256xf32>
    %c1 = arith.constant 1 : index
    %c0_5 = arith.constant 0 : index
    %c0_6 = arith.constant 0 : index
    %c0_7 = arith.constant 0 : index
    %12 = vector.load %arg2[%c1, %c0_5, %c0_6, %c0_7] : memref<2x32x16x256xbf16, #tpu.memory_space<vmem>>, vector<1x1x16x256xbf16>
    %13 = vector.shape_cast %12 : vector<1x1x16x256xbf16> to vector<16x256xbf16>
    %14 = arith.extf %13 : vector<16x256xbf16> to vector<16x256xf32>
    %15 = arith.subf %14, %5 : vector<16x256xf32>
    %16 = arith.mulf %15, %15 : vector<16x256xf32>
    %17 = arith.addf %11, %16 : vector<16x256xf32>
    %18 = vector.extract_strided_slice %1 {offsets = [1, 0], sizes = [1, 256], strides = [1, 1]} : vector<32x256xf32> to vector<1x256xf32>
    %19 = vector.shape_cast %18 : vector<1x256xf32> to vector<1x256xf32>
    %20 = vector.broadcast %19 : vector<1x256xf32> to vector<16x256xf32>
    %c0_8 = arith.constant 0 : index
    %c1_9 = arith.constant 1 : index
    %c0_10 = arith.constant 0 : index
    %c0_11 = arith.constant 0 : index
    %21 = vector.load %arg2[%c0_8, %c1_9, %c0_10, %c0_11] : memref<2x32x16x256xbf16, #tpu.memory_space<vmem>>, vector<1x1x16x256xbf16>
    %22 = vector.shape_cast %21 : vector<1x1x16x256xbf16> to vector<16x256xbf16>
    %23 = arith.extf %22 : vector<16x256xbf16> to vector<16x256xf32>
    %24 = arith.subf %23, %20 : vector<16x256xf32>
    %25 = arith.mulf %24, %24 : vector<16x256xf32>
    %26 = arith.addf %17, %25 : vector<16x256xf32>
    %c1_12 = arith.constant 1 : index
    %c1_13 = arith.constant 1 : index
    %c0_14 = arith.constant 0 : index
    %c0_15 = arith.constant 0 : index
    %27 = vector.load %arg2[%c1_12, %c1_13, %c0_14, %c0_15] : memref<2x32x16x256xbf16, #tpu.memory_space<vmem>>, vector<1x1x16x256xbf16>
    %28 = vector.shape_cast %27 : vector<1x1x16x256xbf16> to vector<16x256xbf16>
    %29 = arith.extf %28 : vector<16x256xbf16> to vector<16x256xf32>
    %30 = arith.subf %29, %20 : vector<16x256xf32>
    %31 = arith.mulf %30, %30 : vector<16x256xf32>
    %32 = arith.addf %26, %31 : vector<16x256xf32>
    %33 = vector.extract_strided_slice %1 {offsets = [2, 0], sizes = [1, 256], strides = [1, 1]} : vector<32x256xf32> to vector<1x256xf32>
    %34 = vector.shape_cast %33 : vector<1x256xf32> to vector<1x256xf32>
    %35 = vector.broadcast %34 : vector<1x256xf32> to vector<16x256xf32>
    %c0_16 = arith.constant 0 : index
    %c2 = arith.constant 2 : index
    %c0_17 = arith.constant 0 : index
    %c0_18 = arith.constant 0 : index
    %36 = vector.load %arg2[%c0_16, %c2, %c0_17, %c0_18] : memref<2x32x16x256xbf16, #tpu.memory_space<vmem>>, vector<1x1x16x256xbf16>
    %37 = vector.shape_cast %36 : vector<1x1x16x256xbf16> to vector<16x256xbf16>
    %38 = arith.extf %37 : vector<16x256xbf16> to vector<16x256xf32>
    %39 = arith.subf %38, %35 : vector<16x256xf32>
    %40 = arith.mulf %39, %39 : vector<16x256xf32>
    %41 = arith.addf %32, %40 : vector<16x256xf32>
    %c1_19 = arith.constant 1 : index
    %c2_20 = arith.constant 2 : index
    %c0_21 = arith.constant 0 : index
    %c0_22 = arith.constant 0 : index
    %42 = vector.load %arg2[%c1_19, %c2_20, %c0_21, %c0_22] : memref<2x32x16x256xbf16, #tpu.memory_space<vmem>>, vector<1x1x16x256xbf16>
    %43 = vector.shape_cast %42 : vector<1x1x16x256xbf16> to vector<16x256xbf16>
    %44 = arith.extf %43 : vector<16x256xbf16> to vector<16x256xf32>
    %45 = arith.subf %44, %35 : vector<16x256xf32>
    %46 = arith.mulf %45, %45 : vector<16x256xf32>
    %47 = arith.addf %41, %46 : vector<16x256xf32>
    %48 = vector.extract_strided_slice %1 {offsets = [3, 0], sizes = [1, 256], strides = [1, 1]} : vector<32x256xf32> to vector<1x256xf32>
    %49 = vector.shape_cast %48 : vector<1x256xf32> to vector<1x256xf32>
    %50 = vector.broadcast %49 : vector<1x256xf32> to vector<16x256xf32>
    %c0_23 = arith.constant 0 : index
    %c3 = arith.constant 3 : index
    %c0_24 = arith.constant 0 : index
    %c0_25 = arith.constant 0 : index
    %51 = vector.load %arg2[%c0_23, %c3, %c0_24, %c0_25] : memref<2x32x16x256xbf16, #tpu.memory_space<vmem>>, vector<1x1x16x256xbf16>
    %52 = vector.shape_cast %51 : vector<1x1x16x256xbf16> to vector<16x256xbf16>
    %53 = arith.extf %52 : vector<16x256xbf16> to vector<16x256xf32>
    %54 = arith.subf %53, %50 : vector<16x256xf32>
    %55 = arith.mulf %54, %54 : vector<16x256xf32>
    %56 = arith.addf %47, %55 : vector<16x256xf32>
    %c1_26 = arith.constant 1 : index
    %c3_27 = arith.constant 3 : index
    %c0_28 = arith.constant 0 : index
    %c0_29 = arith.constant 0 : index
    %57 = vector.load %arg2[%c1_26, %c3_27, %c0_28, %c0_29] : memref<2x32x16x256xbf16, #tpu.memory_space<vmem>>, vector<1x1x16x256xbf16>
    %58 = vector.shape_cast %57 : vector<1x1x16x256xbf16> to vector<16x256xbf16>
    %59 = arith.extf %58 : vector<16x256xbf16> to vector<16x256xf32>
    %60 = arith.subf %59, %50 : vector<16x256xf32>
    %61 = arith.mulf %60, %60 : vector<16x256xf32>
    %62 = arith.addf %56, %61 : vector<16x256xf32>
    %63 = vector.extract_strided_slice %1 {offsets = [4, 0], sizes = [1, 256], strides = [1, 1]} : vector<32x256xf32> to vector<1x256xf32>
    %64 = vector.shape_cast %63 : vector<1x256xf32> to vector<1x256xf32>
    %65 = vector.broadcast %64 : vector<1x256xf32> to vector<16x256xf32>
    %c0_30 = arith.constant 0 : index
    %c4 = arith.constant 4 : index
    %c0_31 = arith.constant 0 : index
    %c0_32 = arith.constant 0 : index
    %66 = vector.load %arg2[%c0_30, %c4, %c0_31, %c0_32] : memref<2x32x16x256xbf16, #tpu.memory_space<vmem>>, vector<1x1x16x256xbf16>
    %67 = vector.shape_cast %66 : vector<1x1x16x256xbf16> to vector<16x256xbf16>
    %68 = arith.extf %67 : vector<16x256xbf16> to vector<16x256xf32>
    %69 = arith.subf %68, %65 : vector<16x256xf32>
    %70 = arith.mulf %69, %69 : vector<16x256xf32>
    %71 = arith.addf %62, %70 : vector<16x256xf32>
    %c1_33 = arith.constant 1 : index
    %c4_34 = arith.constant 4 : index
    %c0_35 = arith.constant 0 : index
    %c0_36 = arith.constant 0 : index
    %72 = vector.load %arg2[%c1_33, %c4_34, %c0_35, %c0_36] : memref<2x32x16x256xbf16, #tpu.memory_space<vmem>>, vector<1x1x16x256xbf16>
    %73 = vector.shape_cast %72 : vector<1x1x16x256xbf16> to vector<16x256xbf16>
    %74 = arith.extf %73 : vector<16x256xbf16> to vector<16x256xf32>
    %75 = arith.subf %74, %65 : vector<16x256xf32>
    %76 = arith.mulf %75, %75 : vector<16x256xf32>
    %77 = arith.addf %71, %76 : vector<16x256xf32>
    %78 = vector.extract_strided_slice %1 {offsets = [5, 0], sizes = [1, 256], strides = [1, 1]} : vector<32x256xf32> to vector<1x256xf32>
    %79 = vector.shape_cast %78 : vector<1x256xf32> to vector<1x256xf32>
    %80 = vector.broadcast %79 : vector<1x256xf32> to vector<16x256xf32>
    %c0_37 = arith.constant 0 : index
    %c5 = arith.constant 5 : index
    %c0_38 = arith.constant 0 : index
    %c0_39 = arith.constant 0 : index
    %81 = vector.load %arg2[%c0_37, %c5, %c0_38, %c0_39] : memref<2x32x16x256xbf16, #tpu.memory_space<vmem>>, vector<1x1x16x256xbf16>
    %82 = vector.shape_cast %81 : vector<1x1x16x256xbf16> to vector<16x256xbf16>
    %83 = arith.extf %82 : vector<16x256xbf16> to vector<16x256xf32>
    %84 = arith.subf %83, %80 : vector<16x256xf32>
    %85 = arith.mulf %84, %84 : vector<16x256xf32>
    %86 = arith.addf %77, %85 : vector<16x256xf32>
    %c1_40 = arith.constant 1 : index
    %c5_41 = arith.constant 5 : index
    %c0_42 = arith.constant 0 : index
    %c0_43 = arith.constant 0 : index
    %87 = vector.load %arg2[%c1_40, %c5_41, %c0_42, %c0_43] : memref<2x32x16x256xbf16, #tpu.memory_space<vmem>>, vector<1x1x16x256xbf16>
    %88 = vector.shape_cast %87 : vector<1x1x16x256xbf16> to vector<16x256xbf16>
    %89 = arith.extf %88 : vector<16x256xbf16> to vector<16x256xf32>
    %90 = arith.subf %89, %80 : vector<16x256xf32>
    %91 = arith.mulf %90, %90 : vector<16x256xf32>
    %92 = arith.addf %86, %91 : vector<16x256xf32>
    %93 = vector.extract_strided_slice %1 {offsets = [6, 0], sizes = [1, 256], strides = [1, 1]} : vector<32x256xf32> to vector<1x256xf32>
    %94 = vector.shape_cast %93 : vector<1x256xf32> to vector<1x256xf32>
    %95 = vector.broadcast %94 : vector<1x256xf32> to vector<16x256xf32>
    %c0_44 = arith.constant 0 : index
    %c6 = arith.constant 6 : index
    %c0_45 = arith.constant 0 : index
    %c0_46 = arith.constant 0 : index
    %96 = vector.load %arg2[%c0_44, %c6, %c0_45, %c0_46] : memref<2x32x16x256xbf16, #tpu.memory_space<vmem>>, vector<1x1x16x256xbf16>
    %97 = vector.shape_cast %96 : vector<1x1x16x256xbf16> to vector<16x256xbf16>
    %98 = arith.extf %97 : vector<16x256xbf16> to vector<16x256xf32>
    %99 = arith.subf %98, %95 : vector<16x256xf32>
    %100 = arith.mulf %99, %99 : vector<16x256xf32>
    %101 = arith.addf %92, %100 : vector<16x256xf32>
    %c1_47 = arith.constant 1 : index
    %c6_48 = arith.constant 6 : index
    %c0_49 = arith.constant 0 : index
    %c0_50 = arith.constant 0 : index
    %102 = vector.load %arg2[%c1_47, %c6_48, %c0_49, %c0_50] : memref<2x32x16x256xbf16, #tpu.memory_space<vmem>>, vector<1x1x16x256xbf16>
    %103 = vector.shape_cast %102 : vector<1x1x16x256xbf16> to vector<16x256xbf16>
    %104 = arith.extf %103 : vector<16x256xbf16> to vector<16x256xf32>
    %105 = arith.subf %104, %95 : vector<16x256xf32>
    %106 = arith.mulf %105, %105 : vector<16x256xf32>
    %107 = arith.addf %101, %106 : vector<16x256xf32>
    %108 = vector.extract_strided_slice %1 {offsets = [7, 0], sizes = [1, 256], strides = [1, 1]} : vector<32x256xf32> to vector<1x256xf32>
    %109 = vector.shape_cast %108 : vector<1x256xf32> to vector<1x256xf32>
    %110 = vector.broadcast %109 : vector<1x256xf32> to vector<16x256xf32>
    %c0_51 = arith.constant 0 : index
    %c7 = arith.constant 7 : index
    %c0_52 = arith.constant 0 : index
    %c0_53 = arith.constant 0 : index
    %111 = vector.load %arg2[%c0_51, %c7, %c0_52, %c0_53] : memref<2x32x16x256xbf16, #tpu.memory_space<vmem>>, vector<1x1x16x256xbf16>
    %112 = vector.shape_cast %111 : vector<1x1x16x256xbf16> to vector<16x256xbf16>
    %113 = arith.extf %112 : vector<16x256xbf16> to vector<16x256xf32>
    %114 = arith.subf %113, %110 : vector<16x256xf32>
    %115 = arith.mulf %114, %114 : vector<16x256xf32>
    %116 = arith.addf %107, %115 : vector<16x256xf32>
    %c1_54 = arith.constant 1 : index
    %c7_55 = arith.constant 7 : index
    %c0_56 = arith.constant 0 : index
    %c0_57 = arith.constant 0 : index
    %117 = vector.load %arg2[%c1_54, %c7_55, %c0_56, %c0_57] : memref<2x32x16x256xbf16, #tpu.memory_space<vmem>>, vector<1x1x16x256xbf16>
    %118 = vector.shape_cast %117 : vector<1x1x16x256xbf16> to vector<16x256xbf16>
    %119 = arith.extf %118 : vector<16x256xbf16> to vector<16x256xf32>
    %120 = arith.subf %119, %110 : vector<16x256xf32>
    %121 = arith.mulf %120, %120 : vector<16x256xf32>
    %122 = arith.addf %116, %121 : vector<16x256xf32>
    %123 = vector.extract_strided_slice %1 {offsets = [8, 0], sizes = [1, 256], strides = [1, 1]} : vector<32x256xf32> to vector<1x256xf32>
    %124 = vector.shape_cast %123 : vector<1x256xf32> to vector<1x256xf32>
    %125 = vector.broadcast %124 : vector<1x256xf32> to vector<16x256xf32>
    %c0_58 = arith.constant 0 : index
    %c8 = arith.constant 8 : index
    %c0_59 = arith.constant 0 : index
    %c0_60 = arith.constant 0 : index
    %126 = vector.load %arg2[%c0_58, %c8, %c0_59, %c0_60] : memref<2x32x16x256xbf16, #tpu.memory_space<vmem>>, vector<1x1x16x256xbf16>
    %127 = vector.shape_cast %126 : vector<1x1x16x256xbf16> to vector<16x256xbf16>
    %128 = arith.extf %127 : vector<16x256xbf16> to vector<16x256xf32>
    %129 = arith.subf %128, %125 : vector<16x256xf32>
    %130 = arith.mulf %129, %129 : vector<16x256xf32>
    %131 = arith.addf %122, %130 : vector<16x256xf32>
    %c1_61 = arith.constant 1 : index
    %c8_62 = arith.constant 8 : index
    %c0_63 = arith.constant 0 : index
    %c0_64 = arith.constant 0 : index
    %132 = vector.load %arg2[%c1_61, %c8_62, %c0_63, %c0_64] : memref<2x32x16x256xbf16, #tpu.memory_space<vmem>>, vector<1x1x16x256xbf16>
    %133 = vector.shape_cast %132 : vector<1x1x16x256xbf16> to vector<16x256xbf16>
    %134 = arith.extf %133 : vector<16x256xbf16> to vector<16x256xf32>
    %135 = arith.subf %134, %125 : vector<16x256xf32>
    %136 = arith.mulf %135, %135 : vector<16x256xf32>
    %137 = arith.addf %131, %136 : vector<16x256xf32>
    %138 = vector.extract_strided_slice %1 {offsets = [9, 0], sizes = [1, 256], strides = [1, 1]} : vector<32x256xf32> to vector<1x256xf32>
    %139 = vector.shape_cast %138 : vector<1x256xf32> to vector<1x256xf32>
    %140 = vector.broadcast %139 : vector<1x256xf32> to vector<16x256xf32>
    %c0_65 = arith.constant 0 : index
    %c9 = arith.constant 9 : index
    %c0_66 = arith.constant 0 : index
    %c0_67 = arith.constant 0 : index
    %141 = vector.load %arg2[%c0_65, %c9, %c0_66, %c0_67] : memref<2x32x16x256xbf16, #tpu.memory_space<vmem>>, vector<1x1x16x256xbf16>
    %142 = vector.shape_cast %141 : vector<1x1x16x256xbf16> to vector<16x256xbf16>
    %143 = arith.extf %142 : vector<16x256xbf16> to vector<16x256xf32>
    %144 = arith.subf %143, %140 : vector<16x256xf32>
    %145 = arith.mulf %144, %144 : vector<16x256xf32>
    %146 = arith.addf %137, %145 : vector<16x256xf32>
    %c1_68 = arith.constant 1 : index
    %c9_69 = arith.constant 9 : index
    %c0_70 = arith.constant 0 : index
    %c0_71 = arith.constant 0 : index
    %147 = vector.load %arg2[%c1_68, %c9_69, %c0_70, %c0_71] : memref<2x32x16x256xbf16, #tpu.memory_space<vmem>>, vector<1x1x16x256xbf16>
    %148 = vector.shape_cast %147 : vector<1x1x16x256xbf16> to vector<16x256xbf16>
    %149 = arith.extf %148 : vector<16x256xbf16> to vector<16x256xf32>
    %150 = arith.subf %149, %140 : vector<16x256xf32>
    %151 = arith.mulf %150, %150 : vector<16x256xf32>
    %152 = arith.addf %146, %151 : vector<16x256xf32>
    %153 = vector.extract_strided_slice %1 {offsets = [10, 0], sizes = [1, 256], strides = [1, 1]} : vector<32x256xf32> to vector<1x256xf32>
    %154 = vector.shape_cast %153 : vector<1x256xf32> to vector<1x256xf32>
    %155 = vector.broadcast %154 : vector<1x256xf32> to vector<16x256xf32>
    %c0_72 = arith.constant 0 : index
    %c10 = arith.constant 10 : index
    %c0_73 = arith.constant 0 : index
    %c0_74 = arith.constant 0 : index
    %156 = vector.load %arg2[%c0_72, %c10, %c0_73, %c0_74] : memref<2x32x16x256xbf16, #tpu.memory_space<vmem>>, vector<1x1x16x256xbf16>
    %157 = vector.shape_cast %156 : vector<1x1x16x256xbf16> to vector<16x256xbf16>
    %158 = arith.extf %157 : vector<16x256xbf16> to vector<16x256xf32>
    %159 = arith.subf %158, %155 : vector<16x256xf32>
    %160 = arith.mulf %159, %159 : vector<16x256xf32>
    %161 = arith.addf %152, %160 : vector<16x256xf32>
    %c1_75 = arith.constant 1 : index
    %c10_76 = arith.constant 10 : index
    %c0_77 = arith.constant 0 : index
    %c0_78 = arith.constant 0 : index
    %162 = vector.load %arg2[%c1_75, %c10_76, %c0_77, %c0_78] : memref<2x32x16x256xbf16, #tpu.memory_space<vmem>>, vector<1x1x16x256xbf16>
    %163 = vector.shape_cast %162 : vector<1x1x16x256xbf16> to vector<16x256xbf16>
    %164 = arith.extf %163 : vector<16x256xbf16> to vector<16x256xf32>
    %165 = arith.subf %164, %155 : vector<16x256xf32>
    %166 = arith.mulf %165, %165 : vector<16x256xf32>
    %167 = arith.addf %161, %166 : vector<16x256xf32>
    %168 = vector.extract_strided_slice %1 {offsets = [11, 0], sizes = [1, 256], strides = [1, 1]} : vector<32x256xf32> to vector<1x256xf32>
    %169 = vector.shape_cast %168 : vector<1x256xf32> to vector<1x256xf32>
    %170 = vector.broadcast %169 : vector<1x256xf32> to vector<16x256xf32>
    %c0_79 = arith.constant 0 : index
    %c11 = arith.constant 11 : index
    %c0_80 = arith.constant 0 : index
    %c0_81 = arith.constant 0 : index
    %171 = vector.load %arg2[%c0_79, %c11, %c0_80, %c0_81] : memref<2x32x16x256xbf16, #tpu.memory_space<vmem>>, vector<1x1x16x256xbf16>
    %172 = vector.shape_cast %171 : vector<1x1x16x256xbf16> to vector<16x256xbf16>
    %173 = arith.extf %172 : vector<16x256xbf16> to vector<16x256xf32>
    %174 = arith.subf %173, %170 : vector<16x256xf32>
    %175 = arith.mulf %174, %174 : vector<16x256xf32>
    %176 = arith.addf %167, %175 : vector<16x256xf32>
    %c1_82 = arith.constant 1 : index
    %c11_83 = arith.constant 11 : index
    %c0_84 = arith.constant 0 : index
    %c0_85 = arith.constant 0 : index
    %177 = vector.load %arg2[%c1_82, %c11_83, %c0_84, %c0_85] : memref<2x32x16x256xbf16, #tpu.memory_space<vmem>>, vector<1x1x16x256xbf16>
    %178 = vector.shape_cast %177 : vector<1x1x16x256xbf16> to vector<16x256xbf16>
    %179 = arith.extf %178 : vector<16x256xbf16> to vector<16x256xf32>
    %180 = arith.subf %179, %170 : vector<16x256xf32>
    %181 = arith.mulf %180, %180 : vector<16x256xf32>
    %182 = arith.addf %176, %181 : vector<16x256xf32>
    %183 = vector.extract_strided_slice %1 {offsets = [12, 0], sizes = [1, 256], strides = [1, 1]} : vector<32x256xf32> to vector<1x256xf32>
    %184 = vector.shape_cast %183 : vector<1x256xf32> to vector<1x256xf32>
    %185 = vector.broadcast %184 : vector<1x256xf32> to vector<16x256xf32>
    %c0_86 = arith.constant 0 : index
    %c12 = arith.constant 12 : index
    %c0_87 = arith.constant 0 : index
    %c0_88 = arith.constant 0 : index
    %186 = vector.load %arg2[%c0_86, %c12, %c0_87, %c0_88] : memref<2x32x16x256xbf16, #tpu.memory_space<vmem>>, vector<1x1x16x256xbf16>
    %187 = vector.shape_cast %186 : vector<1x1x16x256xbf16> to vector<16x256xbf16>
    %188 = arith.extf %187 : vector<16x256xbf16> to vector<16x256xf32>
    %189 = arith.subf %188, %185 : vector<16x256xf32>
    %190 = arith.mulf %189, %189 : vector<16x256xf32>
    %191 = arith.addf %182, %190 : vector<16x256xf32>
    %c1_89 = arith.constant 1 : index
    %c12_90 = arith.constant 12 : index
    %c0_91 = arith.constant 0 : index
    %c0_92 = arith.constant 0 : index
    %192 = vector.load %arg2[%c1_89, %c12_90, %c0_91, %c0_92] : memref<2x32x16x256xbf16, #tpu.memory_space<vmem>>, vector<1x1x16x256xbf16>
    %193 = vector.shape_cast %192 : vector<1x1x16x256xbf16> to vector<16x256xbf16>
    %194 = arith.extf %193 : vector<16x256xbf16> to vector<16x256xf32>
    %195 = arith.subf %194, %185 : vector<16x256xf32>
    %196 = arith.mulf %195, %195 : vector<16x256xf32>
    %197 = arith.addf %191, %196 : vector<16x256xf32>
    %198 = vector.extract_strided_slice %1 {offsets = [13, 0], sizes = [1, 256], strides = [1, 1]} : vector<32x256xf32> to vector<1x256xf32>
    %199 = vector.shape_cast %198 : vector<1x256xf32> to vector<1x256xf32>
    %200 = vector.broadcast %199 : vector<1x256xf32> to vector<16x256xf32>
    %c0_93 = arith.constant 0 : index
    %c13 = arith.constant 13 : index
    %c0_94 = arith.constant 0 : index
    %c0_95 = arith.constant 0 : index
    %201 = vector.load %arg2[%c0_93, %c13, %c0_94, %c0_95] : memref<2x32x16x256xbf16, #tpu.memory_space<vmem>>, vector<1x1x16x256xbf16>
    %202 = vector.shape_cast %201 : vector<1x1x16x256xbf16> to vector<16x256xbf16>
    %203 = arith.extf %202 : vector<16x256xbf16> to vector<16x256xf32>
    %204 = arith.subf %203, %200 : vector<16x256xf32>
    %205 = arith.mulf %204, %204 : vector<16x256xf32>
    %206 = arith.addf %197, %205 : vector<16x256xf32>
    %c1_96 = arith.constant 1 : index
    %c13_97 = arith.constant 13 : index
    %c0_98 = arith.constant 0 : index
    %c0_99 = arith.constant 0 : index
    %207 = vector.load %arg2[%c1_96, %c13_97, %c0_98, %c0_99] : memref<2x32x16x256xbf16, #tpu.memory_space<vmem>>, vector<1x1x16x256xbf16>
    %208 = vector.shape_cast %207 : vector<1x1x16x256xbf16> to vector<16x256xbf16>
    %209 = arith.extf %208 : vector<16x256xbf16> to vector<16x256xf32>
    %210 = arith.subf %209, %200 : vector<16x256xf32>
    %211 = arith.mulf %210, %210 : vector<16x256xf32>
    %212 = arith.addf %206, %211 : vector<16x256xf32>
    %213 = vector.extract_strided_slice %1 {offsets = [14, 0], sizes = [1, 256], strides = [1, 1]} : vector<32x256xf32> to vector<1x256xf32>
    %214 = vector.shape_cast %213 : vector<1x256xf32> to vector<1x256xf32>
    %215 = vector.broadcast %214 : vector<1x256xf32> to vector<16x256xf32>
    %c0_100 = arith.constant 0 : index
    %c14 = arith.constant 14 : index
    %c0_101 = arith.constant 0 : index
    %c0_102 = arith.constant 0 : index
    %216 = vector.load %arg2[%c0_100, %c14, %c0_101, %c0_102] : memref<2x32x16x256xbf16, #tpu.memory_space<vmem>>, vector<1x1x16x256xbf16>
    %217 = vector.shape_cast %216 : vector<1x1x16x256xbf16> to vector<16x256xbf16>
    %218 = arith.extf %217 : vector<16x256xbf16> to vector<16x256xf32>
    %219 = arith.subf %218, %215 : vector<16x256xf32>
    %220 = arith.mulf %219, %219 : vector<16x256xf32>
    %221 = arith.addf %212, %220 : vector<16x256xf32>
    %c1_103 = arith.constant 1 : index
    %c14_104 = arith.constant 14 : index
    %c0_105 = arith.constant 0 : index
    %c0_106 = arith.constant 0 : index
    %222 = vector.load %arg2[%c1_103, %c14_104, %c0_105, %c0_106] : memref<2x32x16x256xbf16, #tpu.memory_space<vmem>>, vector<1x1x16x256xbf16>
    %223 = vector.shape_cast %222 : vector<1x1x16x256xbf16> to vector<16x256xbf16>
    %224 = arith.extf %223 : vector<16x256xbf16> to vector<16x256xf32>
    %225 = arith.subf %224, %215 : vector<16x256xf32>
    %226 = arith.mulf %225, %225 : vector<16x256xf32>
    %227 = arith.addf %221, %226 : vector<16x256xf32>
    %228 = vector.extract_strided_slice %1 {offsets = [15, 0], sizes = [1, 256], strides = [1, 1]} : vector<32x256xf32> to vector<1x256xf32>
    %229 = vector.shape_cast %228 : vector<1x256xf32> to vector<1x256xf32>
    %230 = vector.broadcast %229 : vector<1x256xf32> to vector<16x256xf32>
    %c0_107 = arith.constant 0 : index
    %c15 = arith.constant 15 : index
    %c0_108 = arith.constant 0 : index
    %c0_109 = arith.constant 0 : index
    %231 = vector.load %arg2[%c0_107, %c15, %c0_108, %c0_109] : memref<2x32x16x256xbf16, #tpu.memory_space<vmem>>, vector<1x1x16x256xbf16>
    %232 = vector.shape_cast %231 : vector<1x1x16x256xbf16> to vector<16x256xbf16>
    %233 = arith.extf %232 : vector<16x256xbf16> to vector<16x256xf32>
    %234 = arith.subf %233, %230 : vector<16x256xf32>
    %235 = arith.mulf %234, %234 : vector<16x256xf32>
    %236 = arith.addf %227, %235 : vector<16x256xf32>
    %c1_110 = arith.constant 1 : index
    %c15_111 = arith.constant 15 : index
    %c0_112 = arith.constant 0 : index
    %c0_113 = arith.constant 0 : index
    %237 = vector.load %arg2[%c1_110, %c15_111, %c0_112, %c0_113] : memref<2x32x16x256xbf16, #tpu.memory_space<vmem>>, vector<1x1x16x256xbf16>
    %238 = vector.shape_cast %237 : vector<1x1x16x256xbf16> to vector<16x256xbf16>
    %239 = arith.extf %238 : vector<16x256xbf16> to vector<16x256xf32>
    %240 = arith.subf %239, %230 : vector<16x256xf32>
    %241 = arith.mulf %240, %240 : vector<16x256xf32>
    %242 = arith.addf %236, %241 : vector<16x256xf32>
    %243 = vector.extract_strided_slice %1 {offsets = [16, 0], sizes = [1, 256], strides = [1, 1]} : vector<32x256xf32> to vector<1x256xf32>
    %244 = vector.shape_cast %243 : vector<1x256xf32> to vector<1x256xf32>
    %245 = vector.broadcast %244 : vector<1x256xf32> to vector<16x256xf32>
    %c0_114 = arith.constant 0 : index
    %c16 = arith.constant 16 : index
    %c0_115 = arith.constant 0 : index
    %c0_116 = arith.constant 0 : index
    %246 = vector.load %arg2[%c0_114, %c16, %c0_115, %c0_116] : memref<2x32x16x256xbf16, #tpu.memory_space<vmem>>, vector<1x1x16x256xbf16>
    %247 = vector.shape_cast %246 : vector<1x1x16x256xbf16> to vector<16x256xbf16>
    %248 = arith.extf %247 : vector<16x256xbf16> to vector<16x256xf32>
    %249 = arith.subf %248, %245 : vector<16x256xf32>
    %250 = arith.mulf %249, %249 : vector<16x256xf32>
    %251 = arith.addf %242, %250 : vector<16x256xf32>
    %c1_117 = arith.constant 1 : index
    %c16_118 = arith.constant 16 : index
    %c0_119 = arith.constant 0 : index
    %c0_120 = arith.constant 0 : index
    %252 = vector.load %arg2[%c1_117, %c16_118, %c0_119, %c0_120] : memref<2x32x16x256xbf16, #tpu.memory_space<vmem>>, vector<1x1x16x256xbf16>
    %253 = vector.shape_cast %252 : vector<1x1x16x256xbf16> to vector<16x256xbf16>
    %254 = arith.extf %253 : vector<16x256xbf16> to vector<16x256xf32>
    %255 = arith.subf %254, %245 : vector<16x256xf32>
    %256 = arith.mulf %255, %255 : vector<16x256xf32>
    %257 = arith.addf %251, %256 : vector<16x256xf32>
    %258 = vector.extract_strided_slice %1 {offsets = [17, 0], sizes = [1, 256], strides = [1, 1]} : vector<32x256xf32> to vector<1x256xf32>
    %259 = vector.shape_cast %258 : vector<1x256xf32> to vector<1x256xf32>
    %260 = vector.broadcast %259 : vector<1x256xf32> to vector<16x256xf32>
    %c0_121 = arith.constant 0 : index
    %c17 = arith.constant 17 : index
    %c0_122 = arith.constant 0 : index
    %c0_123 = arith.constant 0 : index
    %261 = vector.load %arg2[%c0_121, %c17, %c0_122, %c0_123] : memref<2x32x16x256xbf16, #tpu.memory_space<vmem>>, vector<1x1x16x256xbf16>
    %262 = vector.shape_cast %261 : vector<1x1x16x256xbf16> to vector<16x256xbf16>
    %263 = arith.extf %262 : vector<16x256xbf16> to vector<16x256xf32>
    %264 = arith.subf %263, %260 : vector<16x256xf32>
    %265 = arith.mulf %264, %264 : vector<16x256xf32>
    %266 = arith.addf %257, %265 : vector<16x256xf32>
    %c1_124 = arith.constant 1 : index
    %c17_125 = arith.constant 17 : index
    %c0_126 = arith.constant 0 : index
    %c0_127 = arith.constant 0 : index
    %267 = vector.load %arg2[%c1_124, %c17_125, %c0_126, %c0_127] : memref<2x32x16x256xbf16, #tpu.memory_space<vmem>>, vector<1x1x16x256xbf16>
    %268 = vector.shape_cast %267 : vector<1x1x16x256xbf16> to vector<16x256xbf16>
    %269 = arith.extf %268 : vector<16x256xbf16> to vector<16x256xf32>
    %270 = arith.subf %269, %260 : vector<16x256xf32>
    %271 = arith.mulf %270, %270 : vector<16x256xf32>
    %272 = arith.addf %266, %271 : vector<16x256xf32>
    %273 = vector.extract_strided_slice %1 {offsets = [18, 0], sizes = [1, 256], strides = [1, 1]} : vector<32x256xf32> to vector<1x256xf32>
    %274 = vector.shape_cast %273 : vector<1x256xf32> to vector<1x256xf32>
    %275 = vector.broadcast %274 : vector<1x256xf32> to vector<16x256xf32>
    %c0_128 = arith.constant 0 : index
    %c18 = arith.constant 18 : index
    %c0_129 = arith.constant 0 : index
    %c0_130 = arith.constant 0 : index
    %276 = vector.load %arg2[%c0_128, %c18, %c0_129, %c0_130] : memref<2x32x16x256xbf16, #tpu.memory_space<vmem>>, vector<1x1x16x256xbf16>
    %277 = vector.shape_cast %276 : vector<1x1x16x256xbf16> to vector<16x256xbf16>
    %278 = arith.extf %277 : vector<16x256xbf16> to vector<16x256xf32>
    %279 = arith.subf %278, %275 : vector<16x256xf32>
    %280 = arith.mulf %279, %279 : vector<16x256xf32>
    %281 = arith.addf %272, %280 : vector<16x256xf32>
    %c1_131 = arith.constant 1 : index
    %c18_132 = arith.constant 18 : index
    %c0_133 = arith.constant 0 : index
    %c0_134 = arith.constant 0 : index
    %282 = vector.load %arg2[%c1_131, %c18_132, %c0_133, %c0_134] : memref<2x32x16x256xbf16, #tpu.memory_space<vmem>>, vector<1x1x16x256xbf16>
    %283 = vector.shape_cast %282 : vector<1x1x16x256xbf16> to vector<16x256xbf16>
    %284 = arith.extf %283 : vector<16x256xbf16> to vector<16x256xf32>
    %285 = arith.subf %284, %275 : vector<16x256xf32>
    %286 = arith.mulf %285, %285 : vector<16x256xf32>
    %287 = arith.addf %281, %286 : vector<16x256xf32>
    %288 = vector.extract_strided_slice %1 {offsets = [19, 0], sizes = [1, 256], strides = [1, 1]} : vector<32x256xf32> to vector<1x256xf32>
    %289 = vector.shape_cast %288 : vector<1x256xf32> to vector<1x256xf32>
    %290 = vector.broadcast %289 : vector<1x256xf32> to vector<16x256xf32>
    %c0_135 = arith.constant 0 : index
    %c19 = arith.constant 19 : index
    %c0_136 = arith.constant 0 : index
    %c0_137 = arith.constant 0 : index
    %291 = vector.load %arg2[%c0_135, %c19, %c0_136, %c0_137] : memref<2x32x16x256xbf16, #tpu.memory_space<vmem>>, vector<1x1x16x256xbf16>
    %292 = vector.shape_cast %291 : vector<1x1x16x256xbf16> to vector<16x256xbf16>
    %293 = arith.extf %292 : vector<16x256xbf16> to vector<16x256xf32>
    %294 = arith.subf %293, %290 : vector<16x256xf32>
    %295 = arith.mulf %294, %294 : vector<16x256xf32>
    %296 = arith.addf %287, %295 : vector<16x256xf32>
    %c1_138 = arith.constant 1 : index
    %c19_139 = arith.constant 19 : index
    %c0_140 = arith.constant 0 : index
    %c0_141 = arith.constant 0 : index
    %297 = vector.load %arg2[%c1_138, %c19_139, %c0_140, %c0_141] : memref<2x32x16x256xbf16, #tpu.memory_space<vmem>>, vector<1x1x16x256xbf16>
    %298 = vector.shape_cast %297 : vector<1x1x16x256xbf16> to vector<16x256xbf16>
    %299 = arith.extf %298 : vector<16x256xbf16> to vector<16x256xf32>
    %300 = arith.subf %299, %290 : vector<16x256xf32>
    %301 = arith.mulf %300, %300 : vector<16x256xf32>
    %302 = arith.addf %296, %301 : vector<16x256xf32>
    %303 = vector.extract_strided_slice %1 {offsets = [20, 0], sizes = [1, 256], strides = [1, 1]} : vector<32x256xf32> to vector<1x256xf32>
    %304 = vector.shape_cast %303 : vector<1x256xf32> to vector<1x256xf32>
    %305 = vector.broadcast %304 : vector<1x256xf32> to vector<16x256xf32>
    %c0_142 = arith.constant 0 : index
    %c20 = arith.constant 20 : index
    %c0_143 = arith.constant 0 : index
    %c0_144 = arith.constant 0 : index
    %306 = vector.load %arg2[%c0_142, %c20, %c0_143, %c0_144] : memref<2x32x16x256xbf16, #tpu.memory_space<vmem>>, vector<1x1x16x256xbf16>
    %307 = vector.shape_cast %306 : vector<1x1x16x256xbf16> to vector<16x256xbf16>
    %308 = arith.extf %307 : vector<16x256xbf16> to vector<16x256xf32>
    %309 = arith.subf %308, %305 : vector<16x256xf32>
    %310 = arith.mulf %309, %309 : vector<16x256xf32>
    %311 = arith.addf %302, %310 : vector<16x256xf32>
    %c1_145 = arith.constant 1 : index
    %c20_146 = arith.constant 20 : index
    %c0_147 = arith.constant 0 : index
    %c0_148 = arith.constant 0 : index
    %312 = vector.load %arg2[%c1_145, %c20_146, %c0_147, %c0_148] : memref<2x32x16x256xbf16, #tpu.memory_space<vmem>>, vector<1x1x16x256xbf16>
    %313 = vector.shape_cast %312 : vector<1x1x16x256xbf16> to vector<16x256xbf16>
    %314 = arith.extf %313 : vector<16x256xbf16> to vector<16x256xf32>
    %315 = arith.subf %314, %305 : vector<16x256xf32>
    %316 = arith.mulf %315, %315 : vector<16x256xf32>
    %317 = arith.addf %311, %316 : vector<16x256xf32>
    %318 = vector.extract_strided_slice %1 {offsets = [21, 0], sizes = [1, 256], strides = [1, 1]} : vector<32x256xf32> to vector<1x256xf32>
    %319 = vector.shape_cast %318 : vector<1x256xf32> to vector<1x256xf32>
    %320 = vector.broadcast %319 : vector<1x256xf32> to vector<16x256xf32>
    %c0_149 = arith.constant 0 : index
    %c21 = arith.constant 21 : index
    %c0_150 = arith.constant 0 : index
    %c0_151 = arith.constant 0 : index
    %321 = vector.load %arg2[%c0_149, %c21, %c0_150, %c0_151] : memref<2x32x16x256xbf16, #tpu.memory_space<vmem>>, vector<1x1x16x256xbf16>
    %322 = vector.shape_cast %321 : vector<1x1x16x256xbf16> to vector<16x256xbf16>
    %323 = arith.extf %322 : vector<16x256xbf16> to vector<16x256xf32>
    %324 = arith.subf %323, %320 : vector<16x256xf32>
    %325 = arith.mulf %324, %324 : vector<16x256xf32>
    %326 = arith.addf %317, %325 : vector<16x256xf32>
    %c1_152 = arith.constant 1 : index
    %c21_153 = arith.constant 21 : index
    %c0_154 = arith.constant 0 : index
    %c0_155 = arith.constant 0 : index
    %327 = vector.load %arg2[%c1_152, %c21_153, %c0_154, %c0_155] : memref<2x32x16x256xbf16, #tpu.memory_space<vmem>>, vector<1x1x16x256xbf16>
    %328 = vector.shape_cast %327 : vector<1x1x16x256xbf16> to vector<16x256xbf16>
    %329 = arith.extf %328 : vector<16x256xbf16> to vector<16x256xf32>
    %330 = arith.subf %329, %320 : vector<16x256xf32>
    %331 = arith.mulf %330, %330 : vector<16x256xf32>
    %332 = arith.addf %326, %331 : vector<16x256xf32>
    %333 = vector.extract_strided_slice %1 {offsets = [22, 0], sizes = [1, 256], strides = [1, 1]} : vector<32x256xf32> to vector<1x256xf32>
    %334 = vector.shape_cast %333 : vector<1x256xf32> to vector<1x256xf32>
    %335 = vector.broadcast %334 : vector<1x256xf32> to vector<16x256xf32>
    %c0_156 = arith.constant 0 : index
    %c22 = arith.constant 22 : index
    %c0_157 = arith.constant 0 : index
    %c0_158 = arith.constant 0 : index
    %336 = vector.load %arg2[%c0_156, %c22, %c0_157, %c0_158] : memref<2x32x16x256xbf16, #tpu.memory_space<vmem>>, vector<1x1x16x256xbf16>
    %337 = vector.shape_cast %336 : vector<1x1x16x256xbf16> to vector<16x256xbf16>
    %338 = arith.extf %337 : vector<16x256xbf16> to vector<16x256xf32>
    %339 = arith.subf %338, %335 : vector<16x256xf32>
    %340 = arith.mulf %339, %339 : vector<16x256xf32>
    %341 = arith.addf %332, %340 : vector<16x256xf32>
    %c1_159 = arith.constant 1 : index
    %c22_160 = arith.constant 22 : index
    %c0_161 = arith.constant 0 : index
    %c0_162 = arith.constant 0 : index
    %342 = vector.load %arg2[%c1_159, %c22_160, %c0_161, %c0_162] : memref<2x32x16x256xbf16, #tpu.memory_space<vmem>>, vector<1x1x16x256xbf16>
    %343 = vector.shape_cast %342 : vector<1x1x16x256xbf16> to vector<16x256xbf16>
    %344 = arith.extf %343 : vector<16x256xbf16> to vector<16x256xf32>
    %345 = arith.subf %344, %335 : vector<16x256xf32>
    %346 = arith.mulf %345, %345 : vector<16x256xf32>
    %347 = arith.addf %341, %346 : vector<16x256xf32>
    %348 = vector.extract_strided_slice %1 {offsets = [23, 0], sizes = [1, 256], strides = [1, 1]} : vector<32x256xf32> to vector<1x256xf32>
    %349 = vector.shape_cast %348 : vector<1x256xf32> to vector<1x256xf32>
    %350 = vector.broadcast %349 : vector<1x256xf32> to vector<16x256xf32>
    %c0_163 = arith.constant 0 : index
    %c23 = arith.constant 23 : index
    %c0_164 = arith.constant 0 : index
    %c0_165 = arith.constant 0 : index
    %351 = vector.load %arg2[%c0_163, %c23, %c0_164, %c0_165] : memref<2x32x16x256xbf16, #tpu.memory_space<vmem>>, vector<1x1x16x256xbf16>
    %352 = vector.shape_cast %351 : vector<1x1x16x256xbf16> to vector<16x256xbf16>
    %353 = arith.extf %352 : vector<16x256xbf16> to vector<16x256xf32>
    %354 = arith.subf %353, %350 : vector<16x256xf32>
    %355 = arith.mulf %354, %354 : vector<16x256xf32>
    %356 = arith.addf %347, %355 : vector<16x256xf32>
    %c1_166 = arith.constant 1 : index
    %c23_167 = arith.constant 23 : index
    %c0_168 = arith.constant 0 : index
    %c0_169 = arith.constant 0 : index
    %357 = vector.load %arg2[%c1_166, %c23_167, %c0_168, %c0_169] : memref<2x32x16x256xbf16, #tpu.memory_space<vmem>>, vector<1x1x16x256xbf16>
    %358 = vector.shape_cast %357 : vector<1x1x16x256xbf16> to vector<16x256xbf16>
    %359 = arith.extf %358 : vector<16x256xbf16> to vector<16x256xf32>
    %360 = arith.subf %359, %350 : vector<16x256xf32>
    %361 = arith.mulf %360, %360 : vector<16x256xf32>
    %362 = arith.addf %356, %361 : vector<16x256xf32>
    %363 = vector.extract_strided_slice %1 {offsets = [24, 0], sizes = [1, 256], strides = [1, 1]} : vector<32x256xf32> to vector<1x256xf32>
    %364 = vector.shape_cast %363 : vector<1x256xf32> to vector<1x256xf32>
    %365 = vector.broadcast %364 : vector<1x256xf32> to vector<16x256xf32>
    %c0_170 = arith.constant 0 : index
    %c24 = arith.constant 24 : index
    %c0_171 = arith.constant 0 : index
    %c0_172 = arith.constant 0 : index
    %366 = vector.load %arg2[%c0_170, %c24, %c0_171, %c0_172] : memref<2x32x16x256xbf16, #tpu.memory_space<vmem>>, vector<1x1x16x256xbf16>
    %367 = vector.shape_cast %366 : vector<1x1x16x256xbf16> to vector<16x256xbf16>
    %368 = arith.extf %367 : vector<16x256xbf16> to vector<16x256xf32>
    %369 = arith.subf %368, %365 : vector<16x256xf32>
    %370 = arith.mulf %369, %369 : vector<16x256xf32>
    %371 = arith.addf %362, %370 : vector<16x256xf32>
    %c1_173 = arith.constant 1 : index
    %c24_174 = arith.constant 24 : index
    %c0_175 = arith.constant 0 : index
    %c0_176 = arith.constant 0 : index
    %372 = vector.load %arg2[%c1_173, %c24_174, %c0_175, %c0_176] : memref<2x32x16x256xbf16, #tpu.memory_space<vmem>>, vector<1x1x16x256xbf16>
    %373 = vector.shape_cast %372 : vector<1x1x16x256xbf16> to vector<16x256xbf16>
    %374 = arith.extf %373 : vector<16x256xbf16> to vector<16x256xf32>
    %375 = arith.subf %374, %365 : vector<16x256xf32>
    %376 = arith.mulf %375, %375 : vector<16x256xf32>
    %377 = arith.addf %371, %376 : vector<16x256xf32>
    %378 = vector.extract_strided_slice %1 {offsets = [25, 0], sizes = [1, 256], strides = [1, 1]} : vector<32x256xf32> to vector<1x256xf32>
    %379 = vector.shape_cast %378 : vector<1x256xf32> to vector<1x256xf32>
    %380 = vector.broadcast %379 : vector<1x256xf32> to vector<16x256xf32>
    %c0_177 = arith.constant 0 : index
    %c25 = arith.constant 25 : index
    %c0_178 = arith.constant 0 : index
    %c0_179 = arith.constant 0 : index
    %381 = vector.load %arg2[%c0_177, %c25, %c0_178, %c0_179] : memref<2x32x16x256xbf16, #tpu.memory_space<vmem>>, vector<1x1x16x256xbf16>
    %382 = vector.shape_cast %381 : vector<1x1x16x256xbf16> to vector<16x256xbf16>
    %383 = arith.extf %382 : vector<16x256xbf16> to vector<16x256xf32>
    %384 = arith.subf %383, %380 : vector<16x256xf32>
    %385 = arith.mulf %384, %384 : vector<16x256xf32>
    %386 = arith.addf %377, %385 : vector<16x256xf32>
    %c1_180 = arith.constant 1 : index
    %c25_181 = arith.constant 25 : index
    %c0_182 = arith.constant 0 : index
    %c0_183 = arith.constant 0 : index
    %387 = vector.load %arg2[%c1_180, %c25_181, %c0_182, %c0_183] : memref<2x32x16x256xbf16, #tpu.memory_space<vmem>>, vector<1x1x16x256xbf16>
    %388 = vector.shape_cast %387 : vector<1x1x16x256xbf16> to vector<16x256xbf16>
    %389 = arith.extf %388 : vector<16x256xbf16> to vector<16x256xf32>
    %390 = arith.subf %389, %380 : vector<16x256xf32>
    %391 = arith.mulf %390, %390 : vector<16x256xf32>
    %392 = arith.addf %386, %391 : vector<16x256xf32>
    %393 = vector.extract_strided_slice %1 {offsets = [26, 0], sizes = [1, 256], strides = [1, 1]} : vector<32x256xf32> to vector<1x256xf32>
    %394 = vector.shape_cast %393 : vector<1x256xf32> to vector<1x256xf32>
    %395 = vector.broadcast %394 : vector<1x256xf32> to vector<16x256xf32>
    %c0_184 = arith.constant 0 : index
    %c26 = arith.constant 26 : index
    %c0_185 = arith.constant 0 : index
    %c0_186 = arith.constant 0 : index
    %396 = vector.load %arg2[%c0_184, %c26, %c0_185, %c0_186] : memref<2x32x16x256xbf16, #tpu.memory_space<vmem>>, vector<1x1x16x256xbf16>
    %397 = vector.shape_cast %396 : vector<1x1x16x256xbf16> to vector<16x256xbf16>
    %398 = arith.extf %397 : vector<16x256xbf16> to vector<16x256xf32>
    %399 = arith.subf %398, %395 : vector<16x256xf32>
    %400 = arith.mulf %399, %399 : vector<16x256xf32>
    %401 = arith.addf %392, %400 : vector<16x256xf32>
    %c1_187 = arith.constant 1 : index
    %c26_188 = arith.constant 26 : index
    %c0_189 = arith.constant 0 : index
    %c0_190 = arith.constant 0 : index
    %402 = vector.load %arg2[%c1_187, %c26_188, %c0_189, %c0_190] : memref<2x32x16x256xbf16, #tpu.memory_space<vmem>>, vector<1x1x16x256xbf16>
    %403 = vector.shape_cast %402 : vector<1x1x16x256xbf16> to vector<16x256xbf16>
    %404 = arith.extf %403 : vector<16x256xbf16> to vector<16x256xf32>
    %405 = arith.subf %404, %395 : vector<16x256xf32>
    %406 = arith.mulf %405, %405 : vector<16x256xf32>
    %407 = arith.addf %401, %406 : vector<16x256xf32>
    %408 = vector.extract_strided_slice %1 {offsets = [27, 0], sizes = [1, 256], strides = [1, 1]} : vector<32x256xf32> to vector<1x256xf32>
    %409 = vector.shape_cast %408 : vector<1x256xf32> to vector<1x256xf32>
    %410 = vector.broadcast %409 : vector<1x256xf32> to vector<16x256xf32>
    %c0_191 = arith.constant 0 : index
    %c27 = arith.constant 27 : index
    %c0_192 = arith.constant 0 : index
    %c0_193 = arith.constant 0 : index
    %411 = vector.load %arg2[%c0_191, %c27, %c0_192, %c0_193] : memref<2x32x16x256xbf16, #tpu.memory_space<vmem>>, vector<1x1x16x256xbf16>
    %412 = vector.shape_cast %411 : vector<1x1x16x256xbf16> to vector<16x256xbf16>
    %413 = arith.extf %412 : vector<16x256xbf16> to vector<16x256xf32>
    %414 = arith.subf %413, %410 : vector<16x256xf32>
    %415 = arith.mulf %414, %414 : vector<16x256xf32>
    %416 = arith.addf %407, %415 : vector<16x256xf32>
    %c1_194 = arith.constant 1 : index
    %c27_195 = arith.constant 27 : index
    %c0_196 = arith.constant 0 : index
    %c0_197 = arith.constant 0 : index
    %417 = vector.load %arg2[%c1_194, %c27_195, %c0_196, %c0_197] : memref<2x32x16x256xbf16, #tpu.memory_space<vmem>>, vector<1x1x16x256xbf16>
    %418 = vector.shape_cast %417 : vector<1x1x16x256xbf16> to vector<16x256xbf16>
    %419 = arith.extf %418 : vector<16x256xbf16> to vector<16x256xf32>
    %420 = arith.subf %419, %410 : vector<16x256xf32>
    %421 = arith.mulf %420, %420 : vector<16x256xf32>
    %422 = arith.addf %416, %421 : vector<16x256xf32>
    %423 = vector.extract_strided_slice %1 {offsets = [28, 0], sizes = [1, 256], strides = [1, 1]} : vector<32x256xf32> to vector<1x256xf32>
    %424 = vector.shape_cast %423 : vector<1x256xf32> to vector<1x256xf32>
    %425 = vector.broadcast %424 : vector<1x256xf32> to vector<16x256xf32>
    %c0_198 = arith.constant 0 : index
    %c28 = arith.constant 28 : index
    %c0_199 = arith.constant 0 : index
    %c0_200 = arith.constant 0 : index
    %426 = vector.load %arg2[%c0_198, %c28, %c0_199, %c0_200] : memref<2x32x16x256xbf16, #tpu.memory_space<vmem>>, vector<1x1x16x256xbf16>
    %427 = vector.shape_cast %426 : vector<1x1x16x256xbf16> to vector<16x256xbf16>
    %428 = arith.extf %427 : vector<16x256xbf16> to vector<16x256xf32>
    %429 = arith.subf %428, %425 : vector<16x256xf32>
    %430 = arith.mulf %429, %429 : vector<16x256xf32>
    %431 = arith.addf %422, %430 : vector<16x256xf32>
    %c1_201 = arith.constant 1 : index
    %c28_202 = arith.constant 28 : index
    %c0_203 = arith.constant 0 : index
    %c0_204 = arith.constant 0 : index
    %432 = vector.load %arg2[%c1_201, %c28_202, %c0_203, %c0_204] : memref<2x32x16x256xbf16, #tpu.memory_space<vmem>>, vector<1x1x16x256xbf16>
    %433 = vector.shape_cast %432 : vector<1x1x16x256xbf16> to vector<16x256xbf16>
    %434 = arith.extf %433 : vector<16x256xbf16> to vector<16x256xf32>
    %435 = arith.subf %434, %425 : vector<16x256xf32>
    %436 = arith.mulf %435, %435 : vector<16x256xf32>
    %437 = arith.addf %431, %436 : vector<16x256xf32>
    %438 = vector.extract_strided_slice %1 {offsets = [29, 0], sizes = [1, 256], strides = [1, 1]} : vector<32x256xf32> to vector<1x256xf32>
    %439 = vector.shape_cast %438 : vector<1x256xf32> to vector<1x256xf32>
    %440 = vector.broadcast %439 : vector<1x256xf32> to vector<16x256xf32>
    %c0_205 = arith.constant 0 : index
    %c29 = arith.constant 29 : index
    %c0_206 = arith.constant 0 : index
    %c0_207 = arith.constant 0 : index
    %441 = vector.load %arg2[%c0_205, %c29, %c0_206, %c0_207] : memref<2x32x16x256xbf16, #tpu.memory_space<vmem>>, vector<1x1x16x256xbf16>
    %442 = vector.shape_cast %441 : vector<1x1x16x256xbf16> to vector<16x256xbf16>
    %443 = arith.extf %442 : vector<16x256xbf16> to vector<16x256xf32>
    %444 = arith.subf %443, %440 : vector<16x256xf32>
    %445 = arith.mulf %444, %444 : vector<16x256xf32>
    %446 = arith.addf %437, %445 : vector<16x256xf32>
    %c1_208 = arith.constant 1 : index
    %c29_209 = arith.constant 29 : index
    %c0_210 = arith.constant 0 : index
    %c0_211 = arith.constant 0 : index
    %447 = vector.load %arg2[%c1_208, %c29_209, %c0_210, %c0_211] : memref<2x32x16x256xbf16, #tpu.memory_space<vmem>>, vector<1x1x16x256xbf16>
    %448 = vector.shape_cast %447 : vector<1x1x16x256xbf16> to vector<16x256xbf16>
    %449 = arith.extf %448 : vector<16x256xbf16> to vector<16x256xf32>
    %450 = arith.subf %449, %440 : vector<16x256xf32>
    %451 = arith.mulf %450, %450 : vector<16x256xf32>
    %452 = arith.addf %446, %451 : vector<16x256xf32>
    %453 = vector.extract_strided_slice %1 {offsets = [30, 0], sizes = [1, 256], strides = [1, 1]} : vector<32x256xf32> to vector<1x256xf32>
    %454 = vector.shape_cast %453 : vector<1x256xf32> to vector<1x256xf32>
    %455 = vector.broadcast %454 : vector<1x256xf32> to vector<16x256xf32>
    %c0_212 = arith.constant 0 : index
    %c30 = arith.constant 30 : index
    %c0_213 = arith.constant 0 : index
    %c0_214 = arith.constant 0 : index
    %456 = vector.load %arg2[%c0_212, %c30, %c0_213, %c0_214] : memref<2x32x16x256xbf16, #tpu.memory_space<vmem>>, vector<1x1x16x256xbf16>
    %457 = vector.shape_cast %456 : vector<1x1x16x256xbf16> to vector<16x256xbf16>
    %458 = arith.extf %457 : vector<16x256xbf16> to vector<16x256xf32>
    %459 = arith.subf %458, %455 : vector<16x256xf32>
    %460 = arith.mulf %459, %459 : vector<16x256xf32>
    %461 = arith.addf %452, %460 : vector<16x256xf32>
    %c1_215 = arith.constant 1 : index
    %c30_216 = arith.constant 30 : index
    %c0_217 = arith.constant 0 : index
    %c0_218 = arith.constant 0 : index
    %462 = vector.load %arg2[%c1_215, %c30_216, %c0_217, %c0_218] : memref<2x32x16x256xbf16, #tpu.memory_space<vmem>>, vector<1x1x16x256xbf16>
    %463 = vector.shape_cast %462 : vector<1x1x16x256xbf16> to vector<16x256xbf16>
    %464 = arith.extf %463 : vector<16x256xbf16> to vector<16x256xf32>
    %465 = arith.subf %464, %455 : vector<16x256xf32>
    %466 = arith.mulf %465, %465 : vector<16x256xf32>
    %467 = arith.addf %461, %466 : vector<16x256xf32>
    %468 = vector.extract_strided_slice %1 {offsets = [31, 0], sizes = [1, 256], strides = [1, 1]} : vector<32x256xf32> to vector<1x256xf32>
    %469 = vector.shape_cast %468 : vector<1x256xf32> to vector<1x256xf32>
    %470 = vector.broadcast %469 : vector<1x256xf32> to vector<16x256xf32>
    %c0_219 = arith.constant 0 : index
    %c31 = arith.constant 31 : index
    %c0_220 = arith.constant 0 : index
    %c0_221 = arith.constant 0 : index
    %471 = vector.load %arg2[%c0_219, %c31, %c0_220, %c0_221] : memref<2x32x16x256xbf16, #tpu.memory_space<vmem>>, vector<1x1x16x256xbf16>
    %472 = vector.shape_cast %471 : vector<1x1x16x256xbf16> to vector<16x256xbf16>
    %473 = arith.extf %472 : vector<16x256xbf16> to vector<16x256xf32>
    %474 = arith.subf %473, %470 : vector<16x256xf32>
    %475 = arith.mulf %474, %474 : vector<16x256xf32>
    %476 = arith.addf %467, %475 : vector<16x256xf32>
    %c1_222 = arith.constant 1 : index
    %c31_223 = arith.constant 31 : index
    %c0_224 = arith.constant 0 : index
    %c0_225 = arith.constant 0 : index
    %477 = vector.load %arg2[%c1_222, %c31_223, %c0_224, %c0_225] : memref<2x32x16x256xbf16, #tpu.memory_space<vmem>>, vector<1x1x16x256xbf16>
    %478 = vector.shape_cast %477 : vector<1x1x16x256xbf16> to vector<16x256xbf16>
    %479 = arith.extf %478 : vector<16x256xbf16> to vector<16x256xf32>
    %480 = arith.subf %479, %470 : vector<16x256xf32>
    %481 = arith.mulf %480, %480 : vector<16x256xf32>
    %482 = arith.addf %476, %481 : vector<16x256xf32>
    %cst_226 = arith.constant -5.000000e-02 : f32
    %483 = vector.broadcast %cst_226 : f32 to vector<16x256xf32>
    %484 = arith.mulf %482, %483 : vector<16x256xf32>
    %cst_227 = arith.constant dense<0xFF800000> : vector<256xf32>
    %485 = vector.multi_reduction <maximumf>, %484, %cst_227 [0] : vector<16x256xf32> to vector<256xf32>
    %486 = vector.shape_cast %485 : vector<256xf32> to vector<1x256xf32>
    %487 = vector.broadcast %486 : vector<1x256xf32> to vector<16x256xf32>
    %488 = arith.subf %484, %487 : vector<16x256xf32>
    %489 = math.exp %488 : vector<16x256xf32>
    %cst_228 = arith.constant dense<0.000000e+00> : vector<256xf32>
    %490 = vector.multi_reduction <add>, %489, %cst_228 [0] : vector<16x256xf32> to vector<256xf32>
    %491 = vector.shape_cast %490 : vector<256xf32> to vector<1x256xf32>
    %492 = tpu.reciprocal %491 : vector<1x256xf32> -> vector<1x256xf32>
    %493 = vector.broadcast %492 : vector<1x256xf32> to vector<16x256xf32>
    %494 = arith.mulf %489, %493 : vector<16x256xf32>
    %c0_229 = arith.constant 0 : index
    %c0_230 = arith.constant 0 : index
    %495 = vector.load %arg3[%c0_229, %c0_230] : memref<16x256xf32, #tpu.memory_space<vmem>>, vector<16x256xf32>
    tpu.vector_store %arg3[%c0_229, %c0_230], %494 {strides = array<i32>} : memref<16x256xf32, #tpu.memory_space<vmem>>, vector<16x256xf32>,
    return
  }
  func.func @transform_0(%arg0: i32) -> (i32, i32) {
    %c0_i32 = arith.constant 0 : i32
    %c0_i32_0 = arith.constant 0 : i32
    return %c0_i32, %arg0 : i32, i32
  }
  func.func @transform_1(%arg0: i32) -> (i32, i32, i32, i32) {
    %c0_i32 = arith.constant 0 : i32
    %c0_i32_0 = arith.constant 0 : i32
    %c0_i32_1 = arith.constant 0 : i32
    %c0_i32_2 = arith.constant 0 : i32
    return %c0_i32, %c0_i32_0, %c0_i32_1, %arg0 : i32, i32, i32, i32
  }
  func.func @transform_2(%arg0: i32) -> (i32, i32) {
    %c0_i32 = arith.constant 0 : i32
    %c0_i32_0 = arith.constant 0 : i32
    return %c0_i32, %arg0 : i32, i32
  }
}

</mosaic_0001>

<llo_original>
// kernel: custom-call.11
$region0: #{custom-call.11}
  %s0 = inlined_call_operand.hbm [shape: f32[3,3], index: 0, kind: input, shape index: {}]
  %s1 = inlined_call_operand.vmem [shape: f32[3,3], index: 1, kind: output, shape index: {0}]
  %s2 = inlined_call_operand.hbm [shape: s32[3], index: 2, kind: output, shape index: {1}]
  %s3 = inlined_call_operand.vmem [shape: s32[3], index: 3, kind: output, shape index: {2}]
  %4 = xla_tuple %s1, %s2, %s3
  $region1: #{custom-call.11} parent=0
    #allocation0 [shape = 'u8[4096]{0}', space=vmem, size = 0x1000, scoped, tag = 'operand span for operand 0']
    #allocation1 [shape = 'u8[2048]{0}', space=vmem, size = 0x800, scoped, tag = 'packed  for operand 0']
    #allocation2 [shape = 's32[1]{0}', space=sflag, size = 0x4, scoped, tag = 'scoped memory for custom-call.11']
    #allocation3 [shape = 's32[1]{0}', space=sflag, size = 0x4, scoped, tag = 'scoped memory for custom-call.11']
    #allocation4 [shape = 'u8[4096]{0}', space=vmem, size = 0x1000, scoped, tag = 'operand span for operand 1']
    #allocation5 [shape = 'u8[2048]{0}', space=vmem, size = 0x800, scoped, tag = 'packed  for operand 1']
    #allocation6 [shape = 'u8[4096]{0}', space=vmem, size = 0x1000, scoped, tag = 'operand span for operand 2']
    #allocation7 [shape = 'u8[512]{0}', space=vmem, size = 0x400, scoped, tag = 'packed  for operand 2']
    #allocation8 [shape = 'u8[4096]{0}', space=vmem, size = 0x1000, scoped, tag = 'operand span for operand 3']
    #allocation9 [shape = 'u8[512]{0}', space=vmem, size = 0x400, scoped, tag = 'packed  for operand 3']
    #allocation10 [shape = 's32[3,128]{1,0}', space=vmem, size = 0x1000, scoped, tag = 'scratch for permutations']
    %5 = vsyncpa [#allocation2], 0
    %6 = vsyncpa [#allocation3], 0
    %s8 = ssub.s32 64, 64
    %9 = vsyncadd [#allocation2], %s8
    %s10 = sshll.u32 [#allocation1], 4
    %s11 = int_to_ptr.vmem [resolvable:$true] %s10
    %13 = dma.hbm_to_vmem [thread:$0]  %s0, 64, %s11, [#allocation2]
    %14 = dma.done [#allocation2], 64
    %s16 = sshllo.u32 0, 4
    %v17 = vld [vmem:[#allocation1] sm:%s16]
    %18 = vst [vmem:[#allocation0] sm:%s16] %v17
    %v19 = vld [vmem:[#allocation0] sm:$0xff]
    %20 = vst [vmem:[#allocation4] sm:$0xff] %v19
    %21 = vst [vmem:[#allocation6] sm:$0x1] 0
    %v22 = vlaneseq
    %v23 = vshrl.u32 %v22, 7
    %v24 = vmov %v23
    %26 = vst [vmem:[#allocation10] sm:$0xff] %v24
    loop: start=0, step=1, limit=3
    $region3: #{custom-call.11} parent=1 // loop_pre_header
      _
    $region4: #{custom-call.11} parent=1 // loop_header
      %s28 = sphi 0, %s32
      %p29 = scmp.ge.s32.totalorder %s28, 3
    $region5: #{custom-call.11} parent=1 // loop_header_branch
      %31 = sbr.rel (%p29) target = $region9
    $region6: #{custom-call.11} parent=1 // loop_body
      %v33 = vstv %s28
      %v34 = vlaneseq
      %v35 = vshrl.u32 %v34, 7
      %v36 = vmov %v35
      %v37 = vld [vmem:[#allocation4] sm:$0xff]
      %v38 = vand.u32 2147483647, %v37
      %v40 = vstv %s28
      %vm41 = vcmp.ge.s32.totalorder %v36, %v40
      %vm42 = vcmp.lt.s32.totalorder %v36, 3
      %vm43 = vmand %vm41, %vm42
      %vm44 = vcmp.lt.f32.partialorder -inf, %v38
      %vm45 = vmand %vm43, %vm44
      %v46 = vsel %vm45, %v36, %v33
      %v47 = vsel %vm45, %v38, -inf
      %v48 = vrot.slane %v47, 1
      %v49 = vrot.slane %v46, 1
      %vm50 = vcmp.ge.f32.partialorder %v48, %v47
      %v51 = vsel %vm50, %v48, %v47
      %v52 = vsel %vm50, %v49, %v46
      %v53 = vrot.slane %v48, 1
      %v54 = vrot.slane %v49, 1
      %vm55 = vcmp.ge.f32.partialorder %v53, %v51
      %v56 = vsel %vm55, %v53, %v51
      %v57 = vsel %vm55, %v54, %v52
      %v58 = vrot.slane %v53, 1
      %v59 = vrot.slane %v54, 1
      %vm60 = vcmp.ge.f32.partialorder %v58, %v56
      %v61 = vsel %vm60, %v58, %v56
      %v62 = vsel %vm60, %v59, %v57
      %v63 = vrot.slane %v58, 1
      %v64 = vrot.slane %v59, 1
      %vm65 = vcmp.ge.f32.partialorder %v63, %v61
      %v66 = vsel %vm65, %v63, %v61
      %v67 = vsel %vm65, %v64, %v62
      %v68 = vrot.slane %v63, 1
      %v69 = vrot.slane %v64, 1
      %vm70 = vcmp.ge.f32.partialorder %v68, %v66
      %v71 = vsel %vm70, %v68, %v66
      %v72 = vsel %vm70, %v69, %v67
      %v73 = vrot.slane %v68, 1
      %v74 = vrot.slane %v69, 1
      %vm75 = vcmp.ge.f32.partialorder %v73, %v71
      %v76 = vsel %vm75, %v73, %v71
      %v77 = vsel %vm75, %v74, %v72
      %v78 = vrot.slane %v73, 1
      %v79 = vrot.slane %v74, 1
      %vm80 = vcmp.ge.f32.partialorder %v78, %v76
      %v81 = vsel %vm80, %v78, %v76
      %v82 = vsel %vm80, %v79, %v77
      %s83 = ssub.s32 128, %s28
      %84 = vrot.lane.b32.xlu0 %v82, %s83
      %v85 = vpop.permute.xlu0 %84
      %s86 = vtos %v85
      %v87 = vstv %s28
      %v88 = vlaneseq
      %v89 = vand.u32 %v88, 127
      %vm90 = vcmp.eq.s32.totalorder %v89, %v87
      %v91 = vstv %s86
      %v92 = vld [vmem:[#allocation6] ss:$0 sm:$0xff]
      %v93 = vsel %vm90, %v91, %v92
      %94 = vst [vmem:[#allocation6] sm:$0x1] %v93
      %s95 = scalar_lea.vmem [#allocation4], %s28
      %s96 = scalar_lea.vmem [#allocation4], %s86
      %v97 = vld [vmem:[%s95] ss:$0 sm:$0xff]
      %v98 = vld [vmem:[%s96] ss:$0 sm:$0xff]
      %99 = vst [vmem:[%s96] sm:$0x1] %v97
      %100 = vst [vmem:[%s95] sm:$0x1] %v98
      %s101 = scalar_lea.vmem [#allocation10], %s28
      %s102 = scalar_lea.vmem [#allocation10], %s86
      %v103 = vld [vmem:[%s101] ss:$0 sm:$0xff]
      %v104 = vld [vmem:[%s102] ss:$0 sm:$0xff]
      %105 = vst [vmem:[%s102] sm:$0x1] %v103
      %106 = vst [vmem:[%s101] sm:$0x1] %v104
      %vm107 = vcmp.ne.f32.partialorder %v98, 0.0
      %vm108 = vmand %vm90, %vm107
      %v109 = vsel %vm108, %v98, 1.0
      %v110 = vlaneseq
      %v111 = vand.u32 %v110, 127
      %v112 = vstv %s28
      %vm113 = vcmp.gt.s32.totalorder %v111, %v112
      %v114 = vsel %vm113, %v98, 0.0
      %v115 = vlaneseq
      %v116 = vshrl.u32 %v115, 7
      %v117 = vmov %v116
      %v118 = vld [vmem:[#allocation4] sm:$0xff]
      %v120 = vstv %s28
      %vm121 = vcmp.gt.s32.totalorder %v117, %v120
      %v122 = vsel %vm121, %v109, 1.0
      %v123 = vrcp.pop %v122
      %v124 = vmul.f32 %v118, %v123
      %vm125 = vmand %vm121, %vm90
      %v126 = vsel %vm125, %v124, 0.0
      %127 = vadd.xlane.f32.xlu0 %v126
      %v128 = vpop.xlane.xlu0 %127
      %v129 = vmul.f32 %v128, %v114
      %v130 = vsub.f32 %v124, %v129
      %131 = vst [vmem:[#allocation4] sm:$0xff] %v130
    $region7: #{custom-call.11} parent=1 // loop_footer
      %s32 = sadd.s32 1, %s28
    $region8: #{custom-call.11} parent=1 // loop_footer_branch
      %27 = sbr.rel target = $region4
    $region9: #{custom-call.11} parent=1 // loop_exit
      _
    %v132 = vld [vmem:[#allocation10] sm:$0xff]
    %s133 = scalar_lea.vmem [#allocation10], 8
    %s134 = scalar_lea.vmem [#allocation10], 16
    %s135 = scalar_lea.vmem [#allocation10], 24
    %s136 = scalar_lea.vmem [#allocation10], 32
    %s137 = scalar_lea.vmem [#allocation10], 40
    %s138 = scalar_lea.vmem [#allocation10], 48
    %s139 = scalar_lea.vmem [#allocation10], 56
    %s140 = scalar_lea.vmem [#allocation10], 64
    %s141 = scalar_lea.vmem [#allocation10], 72
    %s142 = scalar_lea.vmem [#allocation10], 80
    %s143 = scalar_lea.vmem [#allocation10], 88
    %s144 = scalar_lea.vmem [#allocation10], 96
    %s145 = scalar_lea.vmem [#allocation10], 104
    %s146 = scalar_lea.vmem [#allocation10], 112
    %s147 = scalar_lea.vmem [#allocation10], 120
    %148 = vxpose.xlu0.b32.start [1/16] %v132, 128
    %149 = vxpose.xlu0.b32.cont [2/16] 0, 128
    %150 = vxpose.xlu0.b32.cont [3/16] 0, 128
    %151 = vxpose.xlu0.b32.cont [4/16] 0, 128
    %152 = vxpose.xlu0.b32.cont [5/16] 0, 128
    %153 = vxpose.xlu0.b32.cont [6/16] 0, 128
    %154 = vxpose.xlu0.b32.cont [7/16] 0, 128
    %155 = vxpose.xlu0.b32.cont [8/16] 0, 128
    %156 = vxpose.xlu0.b32.cont [9/16] 0, 128
    %157 = vxpose.xlu0.b32.cont [10/16] 0, 128
    %158 = vxpose.xlu0.b32.cont [11/16] 0, 128
    %159 = vxpose.xlu0.b32.cont [12/16] 0, 128
    %160 = vxpose.xlu0.b32.cont [13/16] 0, 128
    %161 = vxpose.xlu0.b32.cont [14/16] 0, 128
    %162 = vxpose.xlu0.b32.cont [15/16] 0, 128
    %163 = vxpose.xlu0.b32.end [16/16] 0, 128
    %v164 = vpop.trf.xlu0
    %v165 = vpop.trf.xlu0
    %v166 = vpop.trf.xlu0
    %v167 = vpop.trf.xlu0
    %v168 = vpop.trf.xlu0
    %v169 = vpop.trf.xlu0
    %v170 = vpop.trf.xlu0
    %v171 = vpop.trf.xlu0
    %v172 = vpop.trf.xlu0
    %v173 = vpop.trf.xlu0
    %v174 = vpop.trf.xlu0
    %v175 = vpop.trf.xlu0
    %v176 = vpop.trf.xlu0
    %v177 = vpop.trf.xlu0
    %v178 = vpop.trf.xlu0
    %v179 = vpop.trf.xlu0
    %180 = vst [vmem:[#allocation8] sm:$0x1] %v164
    %s182 = sshllo.u32 0, 4
    %v184 = vld [vmem:[#allocation4] sm:%s182]
    %s185 = sshllo.u32 0, 4
    %186 = vst [vmem:[#allocation5] sm:%s185] %v184
    %s188 = sshllo.u32 0, 1
    %v190 = vld [vmem:[#allocation6] sm:%s188]
    %s191 = sshllo.u32 0, 1
    %192 = vst [vmem:[#allocation7] sm:%s191] %v190
    %s194 = sshllo.u32 0, 1
    %v196 = vld [vmem:[#allocation8] sm:%s194]
    %s197 = sshllo.u32 0, 1
    %198 = vst [vmem:[#allocation9] sm:%s197] %v196
    %p200 = scmp.gt.s32.totalorder 4, 0
    // Predicated region
    $region10: #{custom-call.11} parent=1 // pred_check
      %p201 = pneg %p200
    $region11: #{custom-call.11} parent=1 // pred_check_branch
      %203 = sbr.rel (%p201) target = $region13
    $region12: #{custom-call.11} parent=1 // pred_region
      %s204 = sshra.s32 4, 3
      %p205 = scmp.gt.s32.totalorder %s204, 0
      // Predicated region
      $region14: #{custom-call.11} parent=12 // pred_check
        %p206 = pneg %p205
      $region15: #{custom-call.11} parent=12 // pred_check_branch
        %208 = sbr.rel (%p206) target = $region17
      $region16: #{custom-call.11} parent=12 // pred_region
        %s209 = ssub.s32 %s204, 1
        %s210 = smul.u32 %s209, 128
        %s211 = sshra.s32 %s210, 4
        %s212 = scalar_lea.vmem [#allocation5], %s211
        %v213 = vld [vmem:[#allocation5] sm:$0xff]
        // While loop
        $region18: #{custom-call.11} parent=16 // loop_pre_header
          _
        $region19: #{custom-call.11} parent=16 // loop_header
          %s214 = sphi [#allocation5], %s236
          %s215 = sphi %s1, %s237
          %v216 = vphi %v213, %v238
          %s217 = ssub.s32 %s212, 64
          %p218 = scmp.gt.s32.totalorder %s214, %s217
        $region20: #{custom-call.11} parent=16 // loop_header_branch
          %220 = sbr.rel (%p218) target = $region24
        $region21: #{custom-call.11} parent=16 // loop_body
          %221 = vst [vmem:[%s215] sm:$0xff] %v216
          %v222 = vld [vmem:[%s214 + $0x8] sm:$0xff]
          %223 = vst [vmem:[%s215 + $0x8] sm:$0xff] %v222
          %v224 = vld [vmem:[%s214 + $0x10] sm:$0xff]
          %225 = vst [vmem:[%s215 + $0x10] sm:$0xff] %v224
          %v226 = vld [vmem:[%s214 + $0x18] sm:$0xff]
          %227 = vst [vmem:[%s215 + $0x18] sm:$0xff] %v226
          %v228 = vld [vmem:[%s214 + $0x20] sm:$0xff]
          %229 = vst [vmem:[%s215 + $0x20] sm:$0xff] %v228
          %v230 = vld [vmem:[%s214 + $0x28] sm:$0xff]
          %231 = vst [vmem:[%s215 + $0x28] sm:$0xff] %v230
          %v232 = vld [vmem:[%s214 + $0x30] sm:$0xff]
          %233 = vst [vmem:[%s215 + $0x30] sm:$0xff] %v232
          %v234 = vld [vmem:[%s214 + $0x38] sm:$0xff]
          %235 = vst [vmem:[%s215 + $0x38] sm:$0xff] %v234
        $region22: #{custom-call.11} parent=16 // loop_footer
          %s236 = scalar_lea.vmem %s214, 64
          %s237 = scalar_lea.vmem %s215, 64
          %v238 = vld [vmem:[%s214 + $0x40] sm:$0xff]
        $region23: #{custom-call.11} parent=16 // loop_footer_branch
          %239 = sbr.rel target = $region19
        $region24: #{custom-call.11} parent=16 // loop_exit
          _
        // While loop
        $region25: #{custom-call.11} parent=16 // loop_pre_header
          _
        $region26: #{custom-call.11} parent=16 // loop_header
          %s240 = sphi %s214, %s248
          %s241 = sphi %s215, %s249
          %v242 = vphi %v216, %v242
          %p243 = scmp.gt.s32.totalorder %s240, %s212
        $region27: #{custom-call.11} parent=16 // loop_header_branch
          %245 = sbr.rel (%p243) target = $region31
        $region28: #{custom-call.11} parent=16 // loop_body
          %v246 = vld [vmem:[%s240] sm:$0xff]
          %247 = vst [vmem:[%s241] sm:$0xff] %v246
        $region29: #{custom-call.11} parent=16 // loop_footer
          %s248 = scalar_lea.vmem %s240, 8
          %s249 = scalar_lea.vmem %s241, 8
        $region30: #{custom-call.11} parent=16 // loop_footer_branch
          %250 = sbr.rel target = $region26
        $region31: #{custom-call.11} parent=16 // loop_exit
          _
      $region17: #{custom-call.11} parent=12 // pred_fallthru
        _
      %s251 = sand.u32 4, 7
      %s252 = sshllo.u32 0, %s251
      %s253 = smul.u32 %s204, 128
      %s254 = sshra.s32 %s253, 4
      %s255 = scalar_lea.vmem %s1, %s254
      %s256 = smul.u32 %s204, 128
      %s257 = sshra.s32 %s256, 4
      %s258 = scalar_lea.vmem [#allocation5], %s257
      %v259 = vld [vmem:[%s258] sm:%s252]
      %260 = vst [vmem:[%s255] sm:%s252] %v259
    $region13: #{custom-call.11} parent=1 // pred_fallthru
      _
    // Predicated region
    $region32: #{custom-call.11} parent=1 // pred_check
      _
    $region33: #{custom-call.11} parent=1 // pred_check_branch
      %262 = sbr.rel (0) target = $region35
    $region34: #{custom-call.11} parent=1 // pred_region
      %s264 = ssub.s32 16, 16
      %265 = vsyncadd [#allocation3], %s264
      %s266 = sshll.u32 [#allocation7], 4
      %s267 = int_to_ptr.vmem [resolvable:$true] %s266
      %269 = dma.vmem_to_hbm [thread:$0]  %s267, 16, %s2, [#allocation3]
    $region35: #{custom-call.11} parent=1 // pred_fallthru
      _
    // Predicated region
    $region36: #{custom-call.11} parent=1 // pred_check
      _
    $region37: #{custom-call.11} parent=1 // pred_check_branch
      %271 = sbr.rel (0) target = $region39
    $region38: #{custom-call.11} parent=1 // pred_region
      %p273 = scmp.gt.s32.totalorder 1, 0
      // Predicated region
      $region40: #{custom-call.11} parent=38 // pred_check
        %p274 = pneg %p273
      $region41: #{custom-call.11} parent=38 // pred_check_branch
        %276 = sbr.rel (%p274) target = $region43
      $region42: #{custom-call.11} parent=38 // pred_region
        %s277 = sshra.s32 1, 3
        %p278 = scmp.gt.s32.totalorder %s277, 0
        // Predicated region
        $region44: #{custom-call.11} parent=42 // pred_check
          %p279 = pneg %p278
        $region45: #{custom-call.11} parent=42 // pred_check_branch
          %281 = sbr.rel (%p279) target = $region47
        $region46: #{custom-call.11} parent=42 // pred_region
          %s282 = ssub.s32 %s277, 1
          %s283 = smul.u32 %s282, 128
          %s284 = sshra.s32 %s283, 4
          %s285 = scalar_lea.vmem [#allocation9], %s284
          %v286 = vld [vmem:[#allocation9] sm:$0xff]
          // While loop
          $region48: #{custom-call.11} parent=46 // loop_pre_header
            _
          $region49: #{custom-call.11} parent=46 // loop_header
            %s287 = sphi [#allocation9], %s309
            %s288 = sphi %s3, %s310
            %v289 = vphi %v286, %v311
            %s290 = ssub.s32 %s285, 64
            %p291 = scmp.gt.s32.totalorder %s287, %s290
          $region50: #{custom-call.11} parent=46 // loop_header_branch
            %293 = sbr.rel (%p291) target = $region54
          $region51: #{custom-call.11} parent=46 // loop_body
            %294 = vst [vmem:[%s288] sm:$0xff] %v289
            %v295 = vld [vmem:[%s287 + $0x8] sm:$0xff]
            %296 = vst [vmem:[%s288 + $0x8] sm:$0xff] %v295
            %v297 = vld [vmem:[%s287 + $0x10] sm:$0xff]
            %298 = vst [vmem:[%s288 + $0x10] sm:$0xff] %v297
            %v299 = vld [vmem:[%s287 + $0x18] sm:$0xff]
            %300 = vst [vmem:[%s288 + $0x18] sm:$0xff] %v299
            %v301 = vld [vmem:[%s287 + $0x20] sm:$0xff]
            %302 = vst [vmem:[%s288 + $0x20] sm:$0xff] %v301
            %v303 = vld [vmem:[%s287 + $0x28] sm:$0xff]
            %304 = vst [vmem:[%s288 + $0x28] sm:$0xff] %v303
            %v305 = vld [vmem:[%s287 + $0x30] sm:$0xff]
            %306 = vst [vmem:[%s288 + $0x30] sm:$0xff] %v305
            %v307 = vld [vmem:[%s287 + $0x38] sm:$0xff]
            %308 = vst [vmem:[%s288 + $0x38] sm:$0xff] %v307
          $region52: #{custom-call.11} parent=46 // loop_footer
            %s309 = scalar_lea.vmem %s287, 64
            %s310 = scalar_lea.vmem %s288, 64
            %v311 = vld [vmem:[%s287 + $0x40] sm:$0xff]
          $region53: #{custom-call.11} parent=46 // loop_footer_branch
            %312 = sbr.rel target = $region49
          $region54: #{custom-call.11} parent=46 // loop_exit
            _
          // While loop
          $region55: #{custom-call.11} parent=46 // loop_pre_header
            _
          $region56: #{custom-call.11} parent=46 // loop_header
            %s313 = sphi %s287, %s321
            %s314 = sphi %s288, %s322
            %v315 = vphi %v289, %v315
            %p316 = scmp.gt.s32.totalorder %s313, %s285
          $region57: #{custom-call.11} parent=46 // loop_header_branch
            %318 = sbr.rel (%p316) target = $region61
          $region58: #{custom-call.11} parent=46 // loop_body
            %v319 = vld [vmem:[%s313] sm:$0xff]
            %320 = vst [vmem:[%s314] sm:$0xff] %v319
          $region59: #{custom-call.11} parent=46 // loop_footer
            %s321 = scalar_lea.vmem %s313, 8
            %s322 = scalar_lea.vmem %s314, 8
          $region60: #{custom-call.11} parent=46 // loop_footer_branch
            %323 = sbr.rel target = $region56
          $region61: #{custom-call.11} parent=46 // loop_exit
            _
        $region47: #{custom-call.11} parent=42 // pred_fallthru
          _
        %s324 = sand.u32 1, 7
        %s325 = sshllo.u32 0, %s324
        %s326 = smul.u32 %s277, 128
        %s327 = sshra.s32 %s326, 4
        %s328 = scalar_lea.vmem %s3, %s327
        %s329 = smul.u32 %s277, 128
        %s330 = sshra.s32 %s329, 4
        %s331 = scalar_lea.vmem [#allocation9], %s330
        %v332 = vld [vmem:[%s331] sm:%s325]
        %333 = vst [vmem:[%s328] sm:%s325] %v332
      $region43: #{custom-call.11} parent=38 // pred_fallthru
        _
    $region39: #{custom-call.11} parent=1 // pred_fallthru
      _
    // Predicated region
    $region62: #{custom-call.11} parent=1 // pred_check
      _
    $region63: #{custom-call.11} parent=1 // pred_check_branch
      %335 = sbr.rel (0) target = $region65
    $region64: #{custom-call.11} parent=1 // pred_region
      %336 = dma.done [#allocation3], 16
    $region65: #{custom-call.11} parent=1 // pred_fallthru
      _
    // Predicated region
    $region66: #{custom-call.11} parent=1 // pred_check
      _
    $region67: #{custom-call.11} parent=1 // pred_check_branch
      %338 = sbr.rel (0) target = $region69
    $region68: #{custom-call.11} parent=1 // pred_region
      _
    $region69: #{custom-call.11} parent=1 // pred_fallthru
      _
    %339 = vsyncpa [#allocation2], 1
    %340 = vsyncpa [#allocation3], 1

// kernel: custom-call.13
$region0: #{custom-call.13}
  %s0 = inlined_call_operand.vmem [shape: f32[1,3,3], index: 0, kind: input, shape index: {}]
  %s1 = inlined_call_operand.vmem [shape: f32[1,3,3], index: 1, kind: output, shape index: {}]
  $region1: #{custom-call.13} parent=0
    #allocation0 [shape = 'u8[4096]{0}', space=vmem, size = 0x1000, scoped, tag = 'operand span for operand 0']
    #allocation1 [shape = 'u8[2048]{0}', space=vmem, size = 0x800, scoped, tag = 'packed  for operand 0']
    #allocation2 [shape = 'u8[4096]{0}', space=vmem, size = 0x1000, scoped, tag = 'operand span for operand 1']
    #allocation3 [shape = 'u8[2048]{0}', space=vmem, size = 0x800, scoped, tag = 'packed  for operand 1']
    #allocation4 [shape = 'f32[3,3]{1,0}', space=vmem, size = 0x1000, scoped, tag = 'rescaled input a']
    // Predicated region
    $region2: #{custom-call.13} parent=1 // pred_check
      _
    $region3: #{custom-call.13} parent=1 // pred_check_branch
      %3 = sbr.rel (0) target = $region5
    $region4: #{custom-call.13} parent=1 // pred_region
      // Predicated region
      $region6: #{custom-call.13} parent=4 // pred_check
        _
      $region7: #{custom-call.13} parent=4 // pred_check_branch
        %5 = sbr.rel target = $region9
      $region8: #{custom-call.13} parent=4 // pred_region
        // Predicated region
        $region21: #{custom-call.13} parent=8 // pred_check
          _
        $region22: #{custom-call.13} parent=8 // pred_check_branch
          %20 = sbr.rel (0) target = $region24
        $region23: #{custom-call.13} parent=8 // pred_region
          loop: start=0, step=1, limit=1
          $region25: #{custom-call.13} parent=23 // loop_pre_header
            _
          $region26: #{custom-call.13} parent=23 // loop_header
            %s23 = sphi 0, %s27
            %p24 = scmp.ge.s32.totalorder %s23, 1
            %s28 = sphi %s0, %s0
            %s29 = sphi [#allocation1], [#allocation1]
          $region27: #{custom-call.13} parent=23 // loop_header_branch
            %26 = sbr.rel (%p24) target = $region31
          $region28: #{custom-call.13} parent=23 // loop_body
            %v30 = vld [vmem:[%s28] sm:$0xf]
            %31 = vst [vmem:[%s29] sm:$0xf] %v30
          $region29: #{custom-call.13} parent=23 // loop_footer
            %s27 = sadd.s32 1, %s23
          $region30: #{custom-call.13} parent=23 // loop_footer_branch
            %22 = sbr.rel target = $region26
          $region31: #{custom-call.13} parent=23 // loop_exit
            _
        $region24: #{custom-call.13} parent=8 // pred_fallthru
          _
      $region9: #{custom-call.13} parent=4 // pred_fallthru
        _
      // Predicated region
      $region10: #{custom-call.13} parent=4 // pred_check
        _
      $region11: #{custom-call.13} parent=4 // pred_check_branch
        %7 = sbr.rel (0) target = $region13
      $region12: #{custom-call.13} parent=4 // pred_region
        loop: start=0, step=1, limit=1
        $region14: #{custom-call.13} parent=12 // loop_pre_header
          _
        $region15: #{custom-call.13} parent=12 // loop_header
          %s10 = sphi 0, %s14
          %p11 = scmp.ge.s32.totalorder %s10, 1
          %s15 = sphi %s0, %s0
          %s16 = sphi [#allocation1], [#allocation1]
        $region16: #{custom-call.13} parent=12 // loop_header_branch
          %13 = sbr.rel (%p11) target = $region20
        $region17: #{custom-call.13} parent=12 // loop_body
          %v17 = vld [vmem:[%s15] sm:$0xf]
          %18 = vst [vmem:[%s16] sm:$0xf] %v17
        $region18: #{custom-call.13} parent=12 // loop_footer
          %s14 = sadd.s32 1, %s10
        $region19: #{custom-call.13} parent=12 // loop_footer_branch
          %9 = sbr.rel target = $region15
        $region20: #{custom-call.13} parent=12 // loop_exit
          _
      $region13: #{custom-call.13} parent=4 // pred_fallthru
        _
    $region5: #{custom-call.13} parent=1 // pred_fallthru
      _
    %32 = vnop
    %s34 = sshllo.u32 0, 4
    %v35 = vld [vmem:[#allocation1] sm:%s34]
    %36 = vst [vmem:[#allocation0] sm:%s34] %v35
    %v37 = vlaneseq
    %v38 = vand.u32 %v37, 127
    %vm39 = vcmp.lt.s32.totalorder %v38, 3
    %v40 = vlaneseq
    %v41 = vshrl.u32 %v40, 7
    %vm43 = vcmp.eq.s32.totalorder %v41, %v38
    %v44 = vld [vmem:[#allocation0] sm:$0xff]
    %v45 = vsel %vm43, %v44, 0.0
    %46 = vadd.xlane.f32.xlu0 %v45
    %v47 = vpop.xlane.xlu0 %46
    %vm48 = vcmp.ge.s32.totalorder %v41, %v38
    %vm49 = vmand %vm48, %vm39
    %v50 = vsel %vm49, %v44, 0.0
    %v51 = vrcp.pop %v47
    %v52 = vmul.f32 %v50, %v51
    %53 = vst [vmem:[#allocation4] sm:$0xff] %v52
    %v54 = vlaneseq
    %v55 = vand.u32 %v54, 127
    %v56 = vlaneseq
    %v57 = vshrl.u32 %v56, 7
    %vm59 = vcmp.eq.s32.totalorder %v55, %v57
    %v60 = vlaneseq
    %v61 = vand.u32 %v60, 127
    %vm62 = vcmp.eq.s32.totalorder %v61, 0
    %v63 = vsel %vm62, 1.0, -1.0
    %v64 = vsel %vm59, %v63, 0.0
    %s65 = scalar_lea.vmem [#allocation4], 1
    %v66 = vld [vmem:[%s65] ss:$0 sm:$0xff]
    %v67 = vxor.u32 %v66, 2147483648
    %v68 = vlaneseq
    %v69 = vand.u32 %v68, 127
    %vm70 = vcmp.eq.s32.totalorder %v69, 1
    %v71 = vmul.f32 %v67, %v64
    %72 = vadd.xlane.f32.xlu0 %v71
    %v73 = vpop.xlane.xlu0 %72
    %v74 = vsel %vm70, %v73, %v64
    %s75 = scalar_lea.vmem [#allocation4], 2
    %v76 = vld [vmem:[%s75] ss:$0 sm:$0xff]
    %v77 = vxor.u32 %v76, 2147483648
    %v78 = vlaneseq
    %v79 = vand.u32 %v78, 127
    %vm80 = vcmp.eq.s32.totalorder %v79, 2
    %v81 = vmul.f32 %v77, %v74
    %82 = vadd.xlane.f32.xlu0 %v81
    %v83 = vpop.xlane.xlu0 %82
    %v84 = vsel %vm80, %v83, %v74
    %v85 = vrcp.pop %v47
    %v86 = vmul.f32 %v84, %v85
    %vm87 = vweird.f32 %v47
    %v88 = vsel %vm87, %v84, %v86
    %89 = vst [vmem:[#allocation2] sm:$0xff] %v88
    %s91 = sshllo.u32 0, 4
    %v93 = vld [vmem:[#allocation2] sm:%s91]
    %s94 = sshllo.u32 0, 4
    %95 = vst [vmem:[#allocation3] sm:%s94] %v93
    // Predicated region
    $region32: #{custom-call.13} parent=1 // pred_check
      _
    $region33: #{custom-call.13} parent=1 // pred_check_branch
      %97 = sbr.rel (0) target = $region35
    $region34: #{custom-call.13} parent=1 // pred_region
      // Predicated region
      $region36: #{custom-call.13} parent=34 // pred_check
        _
      $region37: #{custom-call.13} parent=34 // pred_check_branch
        %99 = sbr.rel target = $region39
      $region38: #{custom-call.13} parent=34 // pred_region
        // Predicated region
        $region51: #{custom-call.13} parent=38 // pred_check
          _
        $region52: #{custom-call.13} parent=38 // pred_check_branch
          %114 = sbr.rel (0) target = $region54
        $region53: #{custom-call.13} parent=38 // pred_region
          loop: start=0, step=1, limit=1
          $region55: #{custom-call.13} parent=53 // loop_pre_header
            _
          $region56: #{custom-call.13} parent=53 // loop_header
            %s117 = sphi 0, %s121
            %p118 = scmp.ge.s32.totalorder %s117, 1
            %s122 = sphi [#allocation3], [#allocation3]
            %s123 = sphi %s1, %s1
          $region57: #{custom-call.13} parent=53 // loop_header_branch
            %120 = sbr.rel (%p118) target = $region61
          $region58: #{custom-call.13} parent=53 // loop_body
            %v124 = vld [vmem:[%s122] sm:$0xf]
            %125 = vst [vmem:[%s123] sm:$0xf] %v124
          $region59: #{custom-call.13} parent=53 // loop_footer
            %s121 = sadd.s32 1, %s117
          $region60: #{custom-call.13} parent=53 // loop_footer_branch
            %116 = sbr.rel target = $region56
          $region61: #{custom-call.13} parent=53 // loop_exit
            _
        $region54: #{custom-call.13} parent=38 // pred_fallthru
          _
      $region39: #{custom-call.13} parent=34 // pred_fallthru
        _
      // Predicated region
      $region40: #{custom-call.13} parent=34 // pred_check
        _
      $region41: #{custom-call.13} parent=34 // pred_check_branch
        %101 = sbr.rel (0) target = $region43
      $region42: #{custom-call.13} parent=34 // pred_region
        loop: start=0, step=1, limit=1
        $region44: #{custom-call.13} parent=42 // loop_pre_header
          _
        $region45: #{custom-call.13} parent=42 // loop_header
          %s104 = sphi 0, %s108
          %p105 = scmp.ge.s32.totalorder %s104, 1
          %s109 = sphi [#allocation3], [#allocation3]
          %s110 = sphi %s1, %s1
        $region46: #{custom-call.13} parent=42 // loop_header_branch
          %107 = sbr.rel (%p105) target = $region50
        $region47: #{custom-call.13} parent=42 // loop_body
          %v111 = vld [vmem:[%s109] sm:$0xf]
          %112 = vst [vmem:[%s110] sm:$0xf] %v111
        $region48: #{custom-call.13} parent=42 // loop_footer
          %s108 = sadd.s32 1, %s104
        $region49: #{custom-call.13} parent=42 // loop_footer_branch
          %103 = sbr.rel target = $region45
        $region50: #{custom-call.13} parent=42 // loop_exit
          _
      $region43: #{custom-call.13} parent=34 // pred_fallthru
        _
    $region35: #{custom-call.13} parent=1 // pred_fallthru
      _
    %126 = vnop

// kernel: custom-call.12
$region0: #{custom-call.12}
  %s0 = inlined_call_operand.vmem [shape: f32[1,3,3], index: 0, kind: input, shape index: {}]
  %s1 = inlined_call_operand.vmem [shape: f32[1,3,3], index: 1, kind: output, shape index: {}]
  $region1: #{custom-call.12} parent=0
    #allocation0 [shape = 'u8[4096]{0}', space=vmem, size = 0x1000, scoped, tag = 'operand span for operand 0']
    #allocation1 [shape = 'u8[2048]{0}', space=vmem, size = 0x800, scoped, tag = 'packed  for operand 0']
    #allocation2 [shape = 'u8[4096]{0}', space=vmem, size = 0x1000, scoped, tag = 'operand span for operand 1']
    #allocation3 [shape = 'u8[2048]{0}', space=vmem, size = 0x800, scoped, tag = 'packed  for operand 1']
    #allocation4 [shape = 'f32[3,3]{1,0}', space=vmem, size = 0x1000, scoped, tag = 'rescaled input a']
    // Predicated region
    $region2: #{custom-call.12} parent=1 // pred_check
      _
    $region3: #{custom-call.12} parent=1 // pred_check_branch
      %3 = sbr.rel (0) target = $region5
    $region4: #{custom-call.12} parent=1 // pred_region
      // Predicated region
      $region6: #{custom-call.12} parent=4 // pred_check
        _
      $region7: #{custom-call.12} parent=4 // pred_check_branch
        %5 = sbr.rel target = $region9
      $region8: #{custom-call.12} parent=4 // pred_region
        // Predicated region
        $region21: #{custom-call.12} parent=8 // pred_check
          _
        $region22: #{custom-call.12} parent=8 // pred_check_branch
          %20 = sbr.rel (0) target = $region24
        $region23: #{custom-call.12} parent=8 // pred_region
          loop: start=0, step=1, limit=1
          $region25: #{custom-call.12} parent=23 // loop_pre_header
            _
          $region26: #{custom-call.12} parent=23 // loop_header
            %s23 = sphi 0, %s27
            %p24 = scmp.ge.s32.totalorder %s23, 1
            %s28 = sphi %s0, %s0
            %s29 = sphi [#allocation1], [#allocation1]
          $region27: #{custom-call.12} parent=23 // loop_header_branch
            %26 = sbr.rel (%p24) target = $region31
          $region28: #{custom-call.12} parent=23 // loop_body
            %v30 = vld [vmem:[%s28] sm:$0xf]
            %31 = vst [vmem:[%s29] sm:$0xf] %v30
          $region29: #{custom-call.12} parent=23 // loop_footer
            %s27 = sadd.s32 1, %s23
          $region30: #{custom-call.12} parent=23 // loop_footer_branch
            %22 = sbr.rel target = $region26
          $region31: #{custom-call.12} parent=23 // loop_exit
            _
        $region24: #{custom-call.12} parent=8 // pred_fallthru
          _
      $region9: #{custom-call.12} parent=4 // pred_fallthru
        _
      // Predicated region
      $region10: #{custom-call.12} parent=4 // pred_check
        _
      $region11: #{custom-call.12} parent=4 // pred_check_branch
        %7 = sbr.rel (0) target = $region13
      $region12: #{custom-call.12} parent=4 // pred_region
        loop: start=0, step=1, limit=1
        $region14: #{custom-call.12} parent=12 // loop_pre_header
          _
        $region15: #{custom-call.12} parent=12 // loop_header
          %s10 = sphi 0, %s14
          %p11 = scmp.ge.s32.totalorder %s10, 1
          %s15 = sphi %s0, %s0
          %s16 = sphi [#allocation1], [#allocation1]
        $region16: #{custom-call.12} parent=12 // loop_header_branch
          %13 = sbr.rel (%p11) target = $region20
        $region17: #{custom-call.12} parent=12 // loop_body
          %v17 = vld [vmem:[%s15] sm:$0xf]
          %18 = vst [vmem:[%s16] sm:$0xf] %v17
        $region18: #{custom-call.12} parent=12 // loop_footer
          %s14 = sadd.s32 1, %s10
        $region19: #{custom-call.12} parent=12 // loop_footer_branch
          %9 = sbr.rel target = $region15
        $region20: #{custom-call.12} parent=12 // loop_exit
          _
      $region13: #{custom-call.12} parent=4 // pred_fallthru
        _
    $region5: #{custom-call.12} parent=1 // pred_fallthru
      _
    %32 = vnop
    %s34 = sshllo.u32 0, 4
    %v35 = vld [vmem:[#allocation1] sm:%s34]
    %36 = vst [vmem:[#allocation0] sm:%s34] %v35
    %v37 = vlaneseq
    %v38 = vand.u32 %v37, 127
    %vm39 = vcmp.lt.s32.totalorder %v38, 3
    %v40 = vlaneseq
    %v41 = vshrl.u32 %v40, 7
    %vm43 = vcmp.eq.s32.totalorder %v41, %v38
    %v44 = vld [vmem:[#allocation0] sm:$0xff]
    %v45 = vsel %vm43, %v44, 0.0
    %46 = vadd.xlane.f32.xlu0 %v45
    %v47 = vpop.xlane.xlu0 %46
    %vm48 = vcmp.le.s32.totalorder %v41, %v38
    %vm49 = vmand %vm48, %vm39
    %v50 = vsel %vm49, %v44, 0.0
    %v51 = vrcp.pop %v47
    %v52 = vmul.f32 %v50, %v51
    %53 = vst [vmem:[#allocation4] sm:$0xff] %v52
    %v54 = vlaneseq
    %v55 = vand.u32 %v54, 127
    %v56 = vlaneseq
    %v57 = vshrl.u32 %v56, 7
    %vm59 = vcmp.eq.s32.totalorder %v55, %v57
    %v60 = vlaneseq
    %v61 = vand.u32 %v60, 127
    %vm62 = vcmp.eq.s32.totalorder %v61, 2
    %v63 = vsel %vm62, 1.0, -1.0
    %v64 = vsel %vm59, %v63, 0.0
    %s65 = scalar_lea.vmem [#allocation4], 1
    %v66 = vld [vmem:[%s65] ss:$0 sm:$0xff]
    %v67 = vxor.u32 %v66, 2147483648
    %v68 = vlaneseq
    %v69 = vand.u32 %v68, 127
    %vm70 = vcmp.eq.s32.totalorder %v69, 1
    %v71 = vmul.f32 %v67, %v64
    %72 = vadd.xlane.f32.xlu0 %v71
    %v73 = vpop.xlane.xlu0 %72
    %v74 = vsel %vm70, %v73, %v64
    %v75 = vld [vmem:[#allocation4] ss:$0 sm:$0xff]
    %v76 = vxor.u32 %v75, 2147483648
    %v77 = vlaneseq
    %v78 = vand.u32 %v77, 127
    %vm79 = vcmp.eq.s32.totalorder %v78, 0
    %v80 = vmul.f32 %v76, %v74
    %81 = vadd.xlane.f32.xlu0 %v80
    %v82 = vpop.xlane.xlu0 %81
    %v83 = vsel %vm79, %v82, %v74
    %v84 = vrcp.pop %v47
    %v85 = vmul.f32 %v83, %v84
    %vm86 = vweird.f32 %v47
    %v87 = vsel %vm86, %v83, %v85
    %88 = vst [vmem:[#allocation2] sm:$0xff] %v87
    %s90 = sshllo.u32 0, 4
    %v92 = vld [vmem:[#allocation2] sm:%s90]
    %s93 = sshllo.u32 0, 4
    %94 = vst [vmem:[#allocation3] sm:%s93] %v92
    // Predicated region
    $region32: #{custom-call.12} parent=1 // pred_check
      _
    $region33: #{custom-call.12} parent=1 // pred_check_branch
      %96 = sbr.rel (0) target = $region35
    $region34: #{custom-call.12} parent=1 // pred_region
      // Predicated region
      $region36: #{custom-call.12} parent=34 // pred_check
        _
      $region37: #{custom-call.12} parent=34 // pred_check_branch
        %98 = sbr.rel target = $region39
      $region38: #{custom-call.12} parent=34 // pred_region
        // Predicated region
        $region51: #{custom-call.12} parent=38 // pred_check
          _
        $region52: #{custom-call.12} parent=38 // pred_check_branch
          %113 = sbr.rel (0) target = $region54
        $region53: #{custom-call.12} parent=38 // pred_region
          loop: start=0, step=1, limit=1
          $region55: #{custom-call.12} parent=53 // loop_pre_header
            _
          $region56: #{custom-call.12} parent=53 // loop_header
            %s116 = sphi 0, %s120
            %p117 = scmp.ge.s32.totalorder %s116, 1
            %s121 = sphi [#allocation3], [#allocation3]
            %s122 = sphi %s1, %s1
          $region57: #{custom-call.12} parent=53 // loop_header_branch
            %119 = sbr.rel (%p117) target = $region61
          $region58: #{custom-call.12} parent=53 // loop_body
            %v123 = vld [vmem:[%s121] sm:$0xf]
            %124 = vst [vmem:[%s122] sm:$0xf] %v123
          $region59: #{custom-call.12} parent=53 // loop_footer
            %s120 = sadd.s32 1, %s116
          $region60: #{custom-call.12} parent=53 // loop_footer_branch
            %115 = sbr.rel target = $region56
          $region61: #{custom-call.12} parent=53 // loop_exit
            _
        $region54: #{custom-call.12} parent=38 // pred_fallthru
          _
      $region39: #{custom-call.12} parent=34 // pred_fallthru
        _
      // Predicated region
      $region40: #{custom-call.12} parent=34 // pred_check
        _
      $region41: #{custom-call.12} parent=34 // pred_check_branch
        %100 = sbr.rel (0) target = $region43
      $region42: #{custom-call.12} parent=34 // pred_region
        loop: start=0, step=1, limit=1
        $region44: #{custom-call.12} parent=42 // loop_pre_header
          _
        $region45: #{custom-call.12} parent=42 // loop_header
          %s103 = sphi 0, %s107
          %p104 = scmp.ge.s32.totalorder %s103, 1
          %s108 = sphi [#allocation3], [#allocation3]
          %s109 = sphi %s1, %s1
        $region46: #{custom-call.12} parent=42 // loop_header_branch
          %106 = sbr.rel (%p104) target = $region50
        $region47: #{custom-call.12} parent=42 // loop_body
          %v110 = vld [vmem:[%s108] sm:$0xf]
          %111 = vst [vmem:[%s109] sm:$0xf] %v110
        $region48: #{custom-call.12} parent=42 // loop_footer
          %s107 = sadd.s32 1, %s103
        $region49: #{custom-call.12} parent=42 // loop_footer_branch
          %102 = sbr.rel target = $region45
        $region50: #{custom-call.12} parent=42 // loop_exit
          _
      $region43: #{custom-call.12} parent=34 // pred_fallthru
        _
    $region35: #{custom-call.12} parent=1 // pred_fallthru
      _
    %125 = vnop

// kernel: baseline0_disp_forward.2
$region0: #{baseline0_disp_forward.2}
  #allocation0 [shape = 'u32[]', space=smem, size = 0x4, offset = 0x4, fixed_abs, tag = 'smem constant byte address 0x4 - core index']
  #allocation1 [shape = 'u32[144,128]{1,0:T(1,128)}', space=vmem, size = 0x12000, scoped, tag = 'internal scratch']
  %s0 = inlined_call_operand.vmem [shape: f32[3,768], index: 0, kind: input, shape index: {}]
  %s1 = inlined_call_operand.vmem [shape: f32[32,3], index: 1, kind: input, shape index: {}]
  %s2 = inlined_call_operand.vmem [shape: f32[32,1], index: 2, kind: input, shape index: {}]
  %s3 = inlined_call_operand.vmem [shape: bf16[32,768], index: 3, kind: output, shape index: {}]
  %s4 = sld [smem:[#allocation0]]
  $region22: #{baseline0_disp_forward.2} parent=0
    _
  %s6 = ssub.s32 1, %s4
  %s7 = scalar_select 0, %s6, %s4
  // Predicated region
  $region2: #{baseline0_disp_forward.2} parent=0 // pred_check
    _
  $region3: #{baseline0_disp_forward.2} parent=0 // pred_check_branch
    %9 = sbr.rel (0) target = $region5
  $region4: #{baseline0_disp_forward.2} parent=0 // pred_region
    _
  $region5: #{baseline0_disp_forward.2} parent=0 // pred_fallthru
    _
  // Predicated region
  $region6: #{baseline0_disp_forward.2} parent=0 // pred_check
    _
  $region7: #{baseline0_disp_forward.2} parent=0 // pred_check_branch
    %11 = sbr.rel (0) target = $region9
  $region8: #{baseline0_disp_forward.2} parent=0 // pred_region
    _
  $region9: #{baseline0_disp_forward.2} parent=0 // pred_fallthru
    _
  // Predicated region
  $region10: #{baseline0_disp_forward.2} parent=0 // pred_check
    _
  $region11: #{baseline0_disp_forward.2} parent=0 // pred_check_branch
    %13 = sbr.rel (0) target = $region13
  $region12: #{baseline0_disp_forward.2} parent=0 // pred_region
    _
  $region13: #{baseline0_disp_forward.2} parent=0 // pred_fallthru
    _
  %v14 = vld [vmem:[%s1] sm:$0xff]
  %v15 = vld [vmem:[%s1 + $0x8] sm:$0xff]
  %v16 = vld [vmem:[%s1 + $0x10] sm:$0xff]
  %v17 = vld [vmem:[%s1 + $0x18] sm:$0xff]
  %v18 = vld [vmem:[%s0] sm:$0x77]
  %v19 = vld [vmem:[%s0 + $0x8] sm:$0x77]
  %v20 = vld [vmem:[%s0 + $0x10] sm:$0x77]
  %v21 = vld [vmem:[%s2] sm:$0xff]
  %v22 = vld [vmem:[%s2 + $0x8] sm:$0xff]
  %v23 = vld [vmem:[%s2 + $0x10] sm:$0xff]
  %v24 = vld [vmem:[%s2 + $0x18] sm:$0xff]
  %26 = vset.pattern.permute.xlu0 0
  %27 = vperm.xlu0 %26, %v21
  %v28 = vpop.permute.xlu0 %27
  %31 = vset.pattern.permute.xlu0 0
  %32 = vperm.xlu0 %31, %v22
  %v33 = vpop.permute.xlu0 %32
  %36 = vset.pattern.permute.xlu0 0
  %37 = vperm.xlu0 %36, %v23
  %v38 = vpop.permute.xlu0 %37
  %41 = vset.pattern.permute.xlu0 0
  %42 = vperm.xlu0 %41, %v24
  %v43 = vpop.permute.xlu0 %42
  %v48 = vcombine.high %v18, %v18
  %v49 = vcombine.high %v19, %v19
  %v50 = vcombine.high %v20, %v20
  %vm51 = vcmask 23552
  %v53 = vsel %vm51, %v14, 0
  %v56 = vsel %vm51, %v15, 0
  %v59 = vsel %vm51, %v16, 0
  %v62 = vsel %vm51, %v17, 0
  %vm64 = vcmask 1042432
  %v65 = vsel %vm64, %v18, 0
  %v67 = vsel %vm64, %v48, 0
  %v69 = vsel %vm64, %v19, 0
  %v71 = vsel %vm64, %v49, 0
  %v73 = vsel %vm64, %v20, 0
  %v75 = vsel %vm64, %v50, 0
  %77 = vmatprep.subr.mxu0 %v67
  %78 = vmatpush1.msra.mxu0 %v65
  %79 = vmatprep.subr.mxu0 0.0
  %80 = vmatpush1.msra.mxu0 0.0
  %81 = vmatprep.subr.mxu0 0.0
  %82 = vmatpush1.msra.mxu0 0.0
  %83 = vmatprep.subr.mxu0 0.0
  %84 = vmatpush1.msra.mxu0 0.0
  %85 = vmatprep.subr.mxu0 0.0
  %86 = vmatpush1.msra.mxu0 0.0
  %87 = vmatprep.subr.mxu0 0.0
  %88 = vmatpush1.msra.mxu0 0.0
  %89 = vmatprep.subr.mxu0 0.0
  %90 = vmatpush1.msra.mxu0 0.0
  %91 = vmatprep.subr.mxu0 0.0
  %92 = vmatpush1.msra.mxu0 0.0
  %93 = vmatprep.subr.mxu0 0.0
  %94 = vmatpush1.msra.mxu0 0.0
  %95 = vmatprep.subr.mxu0 0.0
  %96 = vmatpush1.msra.mxu0 0.0
  %97 = vmatprep.subr.mxu0 0.0
  %98 = vmatpush1.msra.mxu0 0.0
  %99 = vmatprep.subr.mxu0 0.0
  %100 = vmatpush1.msra.mxu0 0.0
  %101 = vmatprep.subr.mxu0 0.0
  %102 = vmatpush1.msra.mxu0 0.0
  %103 = vmatprep.subr.mxu0 0.0
  %104 = vmatpush1.msra.mxu0 0.0
  %105 = vmatprep.subr.mxu0 0.0
  %106 = vmatpush1.msra.mxu0 0.0
  %107 = vmatprep.subr.mxu0 0.0
  %108 = vmatpush1.msra.mxu0 0.0
  %109 = vmatprep.subr.mxu0 0.0
  %110 = vmatpush1.msra.mxu0 0.0
  %111 = vmatprep.subr.mxu0 0.0
  %112 = vmatpush1.msra.mxu0 0.0
  %113 = vmatprep.subr.mxu0 0.0
  %114 = vmatpush1.msra.mxu0 0.0
  %115 = vmatprep.subr.mxu0 0.0
  %116 = vmatpush1.msra.mxu0 0.0
  %117 = vmatprep.subr.mxu0 0.0
  %118 = vmatpush1.msra.mxu0 0.0
  %119 = vmatprep.subr.mxu0 0.0
  %120 = vmatpush1.msra.mxu0 0.0
  %121 = vmatprep.subr.mxu0 0.0
  %122 = vmatpush1.msra.mxu0 0.0
  %123 = vmatprep.subr.mxu0 0.0
  %124 = vmatpush1.msra.mxu0 0.0
  %125 = vmatprep.subr.mxu0 0.0
  %126 = vmatpush1.msra.mxu0 0.0
  %127 = vmatprep.subr.mxu0 0.0
  %128 = vmatpush1.msra.mxu0 0.0
  %129 = vmatprep.subr.mxu0 0.0
  %130 = vmatpush1.msra.mxu0 0.0
  %131 = vmatprep.subr.mxu0 0.0
  %132 = vmatpush1.msra.mxu0 0.0
  %133 = vmatprep.subr.mxu0 0.0
  %134 = vmatpush1.msra.mxu0 0.0
  %135 = vmatprep.subr.mxu0 0.0
  %136 = vmatpush1.msra.mxu0 0.0
  %137 = vmatprep.subr.mxu0 0.0
  %138 = vmatpush1.msra.mxu0 0.0
  %139 = vmatprep.subr.mxu0 0.0
  %140 = vmatpush1.msra.mxu0 0.0
  %141 = vmatprep.mubr.f32.mxu0 0.0
  %142 = vmatmul.mubr.f32.gmra.mrb[0].mxu0 %v53
  %v143 = vpop.f32.mrb[0].mxu0
  %v144 = vadd.f32 %v28, %v143
  %v145 = vpop.f32.mrb[0].mxu0
  %v146 = vadd.f32 %v28, %v145
  %147 = vmatprep.mubr.f32.mxu0 0.0
  %148 = vmatmul.mubr.f32.gmra.mrb[0].mxu0 %v56
  %v149 = vpop.f32.mrb[0].mxu0
  %v150 = vadd.f32 %v33, %v149
  %v151 = vpop.f32.mrb[0].mxu0
  %v152 = vadd.f32 %v33, %v151
  %153 = vmatprep.mubr.f32.mxu0 0.0
  %154 = vmatmul.mubr.f32.gmra.mrb[0].mxu0 %v59
  %v155 = vpop.f32.mrb[0].mxu0
  %v156 = vadd.f32 %v38, %v155
  %v157 = vpop.f32.mrb[0].mxu0
  %v158 = vadd.f32 %v38, %v157
  %159 = vmatprep.mubr.f32.mxu0 0.0
  %160 = vmatmul.mubr.f32.gmra.mrb[0].mxu0 %v62
  %v161 = vpop.f32.mrb[0].mxu0
  %v162 = vadd.f32 %v43, %v161
  %v163 = vpop.f32.mrb[0].mxu0
  %v164 = vadd.f32 %v43, %v163
  %165 = vdwg.mxu0
  %166 = vmatprep.subr.mxu0 %v71
  %167 = vmatpush1.msra.mxu0 %v69
  %168 = vmatprep.subr.mxu0 0.0
  %169 = vmatpush1.msra.mxu0 0.0
  %170 = vmatprep.subr.mxu0 0.0
  %171 = vmatpush1.msra.mxu0 0.0
  %172 = vmatprep.subr.mxu0 0.0
  %173 = vmatpush1.msra.mxu0 0.0
  %174 = vmatprep.subr.mxu0 0.0
  %175 = vmatpush1.msra.mxu0 0.0
  %176 = vmatprep.subr.mxu0 0.0
  %177 = vmatpush1.msra.mxu0 0.0
  %178 = vmatprep.subr.mxu0 0.0
  %179 = vmatpush1.msra.mxu0 0.0
  %180 = vmatprep.subr.mxu0 0.0
  %181 = vmatpush1.msra.mxu0 0.0
  %182 = vmatprep.subr.mxu0 0.0
  %183 = vmatpush1.msra.mxu0 0.0
  %184 = vmatprep.subr.mxu0 0.0
  %185 = vmatpush1.msra.mxu0 0.0
  %186 = vmatprep.subr.mxu0 0.0
  %187 = vmatpush1.msra.mxu0 0.0
  %188 = vmatprep.subr.mxu0 0.0
  %189 = vmatpush1.msra.mxu0 0.0
  %190 = vmatprep.subr.mxu0 0.0
  %191 = vmatpush1.msra.mxu0 0.0
  %192 = vmatprep.subr.mxu0 0.0
  %193 = vmatpush1.msra.mxu0 0.0
  %194 = vmatprep.subr.mxu0 0.0
  %195 = vmatpush1.msra.mxu0 0.0
  %196 = vmatprep.subr.mxu0 0.0
  %197 = vmatpush1.msra.mxu0 0.0
  %198 = vmatprep.subr.mxu0 0.0
  %199 = vmatpush1.msra.mxu0 0.0
  %200 = vmatprep.subr.mxu0 0.0
  %201 = vmatpush1.msra.mxu0 0.0
  %202 = vmatprep.subr.mxu0 0.0
  %203 = vmatpush1.msra.mxu0 0.0
  %204 = vmatprep.subr.mxu0 0.0
  %205 = vmatpush1.msra.mxu0 0.0
  %206 = vmatprep.subr.mxu0 0.0
  %207 = vmatpush1.msra.mxu0 0.0
  %208 = vmatprep.subr.mxu0 0.0
  %209 = vmatpush1.msra.mxu0 0.0
  %210 = vmatprep.subr.mxu0 0.0
  %211 = vmatpush1.msra.mxu0 0.0
  %212 = vmatprep.subr.mxu0 0.0
  %213 = vmatpush1.msra.mxu0 0.0
  %214 = vmatprep.subr.mxu0 0.0
  %215 = vmatpush1.msra.mxu0 0.0
  %216 = vmatprep.subr.mxu0 0.0
  %217 = vmatpush1.msra.mxu0 0.0
  %218 = vmatprep.subr.mxu0 0.0
  %219 = vmatpush1.msra.mxu0 0.0
  %220 = vmatprep.subr.mxu0 0.0
  %221 = vmatpush1.msra.mxu0 0.0
  %222 = vmatprep.subr.mxu0 0.0
  %223 = vmatpush1.msra.mxu0 0.0
  %224 = vmatprep.subr.mxu0 0.0
  %225 = vmatpush1.msra.mxu0 0.0
  %226 = vmatprep.subr.mxu0 0.0
  %227 = vmatpush1.msra.mxu0 0.0
  %228 = vmatprep.subr.mxu0 0.0
  %229 = vmatpush1.msra.mxu0 0.0
  %230 = vmatprep.mubr.f32.mxu0 0.0
  %231 = vmatmul.mubr.f32.gmra.mrb[0].mxu0 %v53
  %v232 = vpop.f32.mrb[0].mxu0
  %v233 = vadd.f32 %v28, %v232
  %v234 = vpop.f32.mrb[0].mxu0
  %v235 = vadd.f32 %v28, %v234
  %236 = vmatprep.mubr.f32.mxu0 0.0
  %237 = vmatmul.mubr.f32.gmra.mrb[0].mxu0 %v56
  %v238 = vpop.f32.mrb[0].mxu0
  %v239 = vadd.f32 %v33, %v238
  %v240 = vpop.f32.mrb[0].mxu0
  %v241 = vadd.f32 %v33, %v240
  %242 = vmatprep.mubr.f32.mxu0 0.0
  %243 = vmatmul.mubr.f32.gmra.mrb[0].mxu0 %v59
  %v244 = vpop.f32.mrb[0].mxu0
  %v245 = vadd.f32 %v38, %v244
  %v246 = vpop.f32.mrb[0].mxu0
  %v247 = vadd.f32 %v38, %v246
  %248 = vmatprep.mubr.f32.mxu0 0.0
  %249 = vmatmul.mubr.f32.gmra.mrb[0].mxu0 %v62
  %v250 = vpop.f32.mrb[0].mxu0
  %v251 = vadd.f32 %v43, %v250
  %v252 = vpop.f32.mrb[0].mxu0
  %v253 = vadd.f32 %v43, %v252
  %254 = vdwg.mxu0
  %255 = vmatprep.subr.mxu0 %v75
  %256 = vmatpush1.msra.mxu0 %v73
  %257 = vmatprep.subr.mxu0 0.0
  %258 = vmatpush1.msra.mxu0 0.0
  %259 = vmatprep.subr.mxu0 0.0
  %260 = vmatpush1.msra.mxu0 0.0
  %261 = vmatprep.subr.mxu0 0.0
  %262 = vmatpush1.msra.mxu0 0.0
  %263 = vmatprep.subr.mxu0 0.0
  %264 = vmatpush1.msra.mxu0 0.0
  %265 = vmatprep.subr.mxu0 0.0
  %266 = vmatpush1.msra.mxu0 0.0
  %267 = vmatprep.subr.mxu0 0.0
  %268 = vmatpush1.msra.mxu0 0.0
  %269 = vmatprep.subr.mxu0 0.0
  %270 = vmatpush1.msra.mxu0 0.0
  %271 = vmatprep.subr.mxu0 0.0
  %272 = vmatpush1.msra.mxu0 0.0
  %273 = vmatprep.subr.mxu0 0.0
  %274 = vmatpush1.msra.mxu0 0.0
  %275 = vmatprep.subr.mxu0 0.0
  %276 = vmatpush1.msra.mxu0 0.0
  %277 = vmatprep.subr.mxu0 0.0
  %278 = vmatpush1.msra.mxu0 0.0
  %279 = vmatprep.subr.mxu0 0.0
  %280 = vmatpush1.msra.mxu0 0.0
  %281 = vmatprep.subr.mxu0 0.0
  %282 = vmatpush1.msra.mxu0 0.0
  %283 = vmatprep.subr.mxu0 0.0
  %284 = vmatpush1.msra.mxu0 0.0
  %285 = vmatprep.subr.mxu0 0.0
  %286 = vmatpush1.msra.mxu0 0.0
  %287 = vmatprep.subr.mxu0 0.0
  %288 = vmatpush1.msra.mxu0 0.0
  %289 = vmatprep.subr.mxu0 0.0
  %290 = vmatpush1.msra.mxu0 0.0
  %291 = vmatprep.subr.mxu0 0.0
  %292 = vmatpush1.msra.mxu0 0.0
  %293 = vmatprep.subr.mxu0 0.0
  %294 = vmatpush1.msra.mxu0 0.0
  %295 = vmatprep.subr.mxu0 0.0
  %296 = vmatpush1.msra.mxu0 0.0
  %297 = vmatprep.subr.mxu0 0.0
  %298 = vmatpush1.msra.mxu0 0.0
  %299 = vmatprep.subr.mxu0 0.0
  %300 = vmatpush1.msra.mxu0 0.0
  %301 = vmatprep.subr.mxu0 0.0
  %302 = vmatpush1.msra.mxu0 0.0
  %303 = vmatprep.subr.mxu0 0.0
  %304 = vmatpush1.msra.mxu0 0.0
  %305 = vmatprep.subr.mxu0 0.0
  %306 = vmatpush1.msra.mxu0 0.0
  %307 = vmatprep.subr.mxu0 0.0
  %308 = vmatpush1.msra.mxu0 0.0
  %309 = vmatprep.subr.mxu0 0.0
  %310 = vmatpush1.msra.mxu0 0.0
  %311 = vmatprep.subr.mxu0 0.0
  %312 = vmatpush1.msra.mxu0 0.0
  %313 = vmatprep.subr.mxu0 0.0
  %314 = vmatpush1.msra.mxu0 0.0
  %315 = vmatprep.subr.mxu0 0.0
  %316 = vmatpush1.msra.mxu0 0.0
  %317 = vmatprep.subr.mxu0 0.0
  %318 = vmatpush1.msra.mxu0 0.0
  %319 = vmatprep.mubr.f32.mxu0 0.0
  %320 = vmatmul.mubr.f32.gmra.mrb[0].mxu0 %v53
  %v321 = vpop.f32.mrb[0].mxu0
  %v322 = vadd.f32 %v28, %v321
  %v323 = vpop.f32.mrb[0].mxu0
  %v324 = vadd.f32 %v28, %v323
  %325 = vmatprep.mubr.f32.mxu0 0.0
  %326 = vmatmul.mubr.f32.gmra.mrb[0].mxu0 %v56
  %v327 = vpop.f32.mrb[0].mxu0
  %v328 = vadd.f32 %v33, %v327
  %v329 = vpop.f32.mrb[0].mxu0
  %v330 = vadd.f32 %v33, %v329
  %331 = vmatprep.mubr.f32.mxu0 0.0
  %332 = vmatmul.mubr.f32.gmra.mrb[0].mxu0 %v59
  %v333 = vpop.f32.mrb[0].mxu0
  %v334 = vadd.f32 %v38, %v333
  %v335 = vpop.f32.mrb[0].mxu0
  %v336 = vadd.f32 %v38, %v335
  %337 = vmatprep.mubr.f32.mxu0 0.0
  %338 = vmatmul.mubr.f32.gmra.mrb[0].mxu0 %v62
  %v339 = vpop.f32.mrb[0].mxu0
  %v340 = vadd.f32 %v43, %v339
  %v341 = vpop.f32.mrb[0].mxu0
  %v342 = vadd.f32 %v43, %v341
  %343 = vdwg.mxu0
  %v344 = vmax.f32 %v144, 0.0
  %v345 = vmax.f32 %v146, 0.0
  %v346 = vmax.f32 %v233, 0.0
  %v347 = vmax.f32 %v235, 0.0
  %v348 = vmax.f32 %v322, 0.0
  %v349 = vmax.f32 %v324, 0.0
  %v350 = vmax.f32 %v150, 0.0
  %v351 = vmax.f32 %v152, 0.0
  %v352 = vmax.f32 %v239, 0.0
  %v353 = vmax.f32 %v241, 0.0
  %v354 = vmax.f32 %v328, 0.0
  %v355 = vmax.f32 %v330, 0.0
  %v356 = vmax.f32 %v156, 0.0
  %v357 = vmax.f32 %v158, 0.0
  %v358 = vmax.f32 %v245, 0.0
  %v359 = vmax.f32 %v247, 0.0
  %v360 = vmax.f32 %v334, 0.0
  %v361 = vmax.f32 %v336, 0.0
  %v362 = vmax.f32 %v162, 0.0
  %v363 = vmax.f32 %v164, 0.0
  %v364 = vmax.f32 %v251, 0.0
  %v365 = vmax.f32 %v253, 0.0
  %v366 = vmax.f32 %v340, 0.0
  %v367 = vmax.f32 %v342, 0.0
  %v368 = vpack.c.bf16 %v350, %v344
  %v369 = vpack.c.bf16 %v351, %v345
  %v370 = vpack.c.bf16 %v352, %v346
  %v371 = vpack.c.bf16 %v353, %v347
  %v372 = vpack.c.bf16 %v354, %v348
  %v373 = vpack.c.bf16 %v355, %v349
  %v374 = vpack.c.bf16 %v362, %v356
  %v375 = vpack.c.bf16 %v363, %v357
  %v376 = vpack.c.bf16 %v364, %v358
  %v377 = vpack.c.bf16 %v365, %v359
  %v378 = vpack.c.bf16 %v366, %v360
  %v379 = vpack.c.bf16 %v367, %v361
  %v392 = vunpack.c.l.b16 %v368
  %v393 = vunpack.c.l.b16 %v369
  %v394 = vunpack.c.l.b16 %v370
  %v395 = vunpack.c.l.b16 %v371
  %v396 = vunpack.c.l.b16 %v372
  %v397 = vunpack.c.l.b16 %v373
  %v398 = vunpack.c.h.b16 %v368
  %v399 = vunpack.c.h.b16 %v369
  %v400 = vunpack.c.h.b16 %v370
  %v401 = vunpack.c.h.b16 %v371
  %v402 = vunpack.c.h.b16 %v372
  %v403 = vunpack.c.h.b16 %v373
  %v404 = vunpack.c.l.b16 %v374
  %v405 = vunpack.c.l.b16 %v375
  %v406 = vunpack.c.l.b16 %v376
  %v407 = vunpack.c.l.b16 %v377
  %v408 = vunpack.c.l.b16 %v378
  %v409 = vunpack.c.l.b16 %v379
  %v410 = vunpack.c.h.b16 %v374
  %v411 = vunpack.c.h.b16 %v375
  %v412 = vunpack.c.h.b16 %v376
  %v413 = vunpack.c.h.b16 %v377
  %v414 = vunpack.c.h.b16 %v378
  %v415 = vunpack.c.h.b16 %v379
  %v416 = vpack.c.b16 %v393, %v392
  %v417 = vpack.c.b16 %v395, %v394
  %v418 = vpack.c.b16 %v397, %v396
  %v419 = vpack.c.b16 %v399, %v398
  %v420 = vpack.c.b16 %v401, %v400
  %v421 = vpack.c.b16 %v403, %v402
  %v422 = vpack.c.b16 %v405, %v404
  %v423 = vpack.c.b16 %v407, %v406
  %v424 = vpack.c.b16 %v409, %v408
  %v425 = vpack.c.b16 %v411, %v410
  %v426 = vpack.c.b16 %v413, %v412
  %v427 = vpack.c.b16 %v415, %v414
  %440 = vst [vmem:[%s3] sm:$0xff] %v416
  %441 = vst [vmem:[%s3 + $0x8] sm:$0xff] %v417
  %442 = vst [vmem:[%s3 + $0x10] sm:$0xff] %v418
  %443 = vst [vmem:[%s3 + $0x18] sm:$0xff] %v419
  %444 = vst [vmem:[%s3 + $0x20] sm:$0xff] %v420
  %445 = vst [vmem:[%s3 + $0x28] sm:$0xff] %v421
  %446 = vst [vmem:[%s3 + $0x30] sm:$0xff] %v422
  %447 = vst [vmem:[%s3 + $0x38] sm:$0xff] %v423
  %448 = vst [vmem:[%s3 + $0x40] sm:$0xff] %v424
  %449 = vst [vmem:[%s3 + $0x48] sm:$0xff] %v425
  %450 = vst [vmem:[%s3 + $0x50] sm:$0xff] %v426
  %451 = vst [vmem:[%s3 + $0x58] sm:$0xff] %v427
  // Predicated region
  $region14: #{baseline0_disp_forward.2} parent=0 // pred_check
    _
  $region15: #{baseline0_disp_forward.2} parent=0 // pred_check_branch
    %453 = sbr.rel (0) target = $region17
  $region16: #{baseline0_disp_forward.2} parent=0 // pred_region
    _
  $region17: #{baseline0_disp_forward.2} parent=0 // pred_fallthru
    _
  // Predicated region
  $region18: #{baseline0_disp_forward.2} parent=0 // pred_check
    _
  $region19: #{baseline0_disp_forward.2} parent=0 // pred_check_branch
    %455 = sbr.rel (0) target = $region21
  $region20: #{baseline0_disp_forward.2} parent=0 // pred_region
    _
  $region21: #{baseline0_disp_forward.2} parent=0 // pred_fallthru
    _

// kernel: baseline0_disp_forward.3
$region0: #{baseline0_disp_forward.3}
  #allocation0 [shape = 'u32[]', space=smem, size = 0x4, offset = 0x4, fixed_abs, tag = 'smem constant byte address 0x4 - core index']
  #allocation1 [shape = 'u32[144,128]{1,0:T(1,128)}', space=vmem, size = 0x12000, scoped, tag = 'internal scratch']
  %s0 = inlined_call_operand.vmem [shape: bf16[32,256], index: 0, kind: input, shape index: {}]
  %s1 = inlined_call_operand.vmem [shape: bf16[2,32,16,256], index: 1, kind: input, shape index: {}]
  %s2 = inlined_call_operand.vmem [shape: f32[16,256], index: 2, kind: output, shape index: {}]
  %s3 = sld [smem:[#allocation0]]
  $region18: #{baseline0_disp_forward.3} parent=0
    _
  %s5 = ssub.s32 1, %s3
  %s6 = scalar_select 0, %s5, %s3
  // Predicated region
  $region2: #{baseline0_disp_forward.3} parent=0 // pred_check
    _
  $region3: #{baseline0_disp_forward.3} parent=0 // pred_check_branch
    %8 = sbr.rel (0) target = $region5
  $region4: #{baseline0_disp_forward.3} parent=0 // pred_region
    _
  $region5: #{baseline0_disp_forward.3} parent=0 // pred_fallthru
    _
  // Predicated region
  $region6: #{baseline0_disp_forward.3} parent=0 // pred_check
    _
  $region7: #{baseline0_disp_forward.3} parent=0 // pred_check_branch
    %10 = sbr.rel (0) target = $region9
  $region8: #{baseline0_disp_forward.3} parent=0 // pred_region
    _
  $region9: #{baseline0_disp_forward.3} parent=0 // pred_fallthru
    _
  %v11 = vld [vmem:[%s0] sm:$0xff]
  %v12 = vld [vmem:[%s0 + $0x8] sm:$0xff]
  %v13 = vld [vmem:[%s0 + $0x10] sm:$0xff]
  %v14 = vld [vmem:[%s0 + $0x18] sm:$0xff]
  %v15 = vunpack.c.l.bf16 %v11
  %v16 = vunpack.c.h.bf16 %v11
  %v17 = vunpack.c.l.bf16 %v12
  %v18 = vunpack.c.h.bf16 %v12
  %v19 = vunpack.c.l.bf16 %v13
  %v20 = vunpack.c.h.bf16 %v13
  %v21 = vunpack.c.l.bf16 %v14
  %v22 = vunpack.c.h.bf16 %v14
  %v23 = vlaneseq
  %v24 = vshrl.u32 %v23, 7
  %v25 = vsub.s32 0, %v24
  %v26 = vrot.slane %v15, %v25
  %v27 = vlaneseq
  %v28 = vshrl.u32 %v27, 7
  %v29 = vsub.s32 0, %v28
  %v30 = vrot.slane %v16, %v29
  %v31 = vld [vmem:[%s1] sm:$0xff]
  %v32 = vld [vmem:[%s1 + $0x8] sm:$0xff]
  %v33 = vunpack.c.l.bf16 %v31
  %v34 = vunpack.c.h.bf16 %v31
  %v35 = vunpack.c.l.bf16 %v32
  %v36 = vunpack.c.h.bf16 %v32
  %v37 = vsub.f32 %v33, %v26
  %v38 = vsub.f32 %v34, %v30
  %v39 = vsub.f32 %v35, %v26
  %v40 = vsub.f32 %v36, %v30
  %v41 = vmul.f32 %v37, %v37
  %v42 = vmul.f32 %v38, %v38
  %v43 = vmul.f32 %v39, %v39
  %v44 = vmul.f32 %v40, %v40
  %v45 = vadd.f32 %v41, 0.0
  %v46 = vadd.f32 %v42, 0.0
  %v47 = vadd.f32 %v43, 0.0
  %v48 = vadd.f32 %v44, 0.0
  %s49 = scalar_lea.vmem %s1, 512
  %v50 = vld [vmem:[%s49] sm:$0xff]
  %v51 = vld [vmem:[%s49 + $0x8] sm:$0xff]
  %v52 = vunpack.c.l.bf16 %v50
  %v53 = vunpack.c.h.bf16 %v50
  %v54 = vunpack.c.l.bf16 %v51
  %v55 = vunpack.c.h.bf16 %v51
  %v56 = vsub.f32 %v52, %v26
  %v57 = vsub.f32 %v53, %v30
  %v58 = vsub.f32 %v54, %v26
  %v59 = vsub.f32 %v55, %v30
  %v60 = vmul.f32 %v56, %v56
  %v61 = vmul.f32 %v57, %v57
  %v62 = vmul.f32 %v58, %v58
  %v63 = vmul.f32 %v59, %v59
  %v64 = vadd.f32 %v45, %v60
  %v65 = vadd.f32 %v46, %v61
  %v66 = vadd.f32 %v47, %v62
  %v67 = vadd.f32 %v48, %v63
  %v68 = vlaneseq
  %v69 = vshrl.u32 %v68, 7
  %v70 = vsub.s32 1, %v69
  %v71 = vrot.slane %v15, %v70
  %v72 = vlaneseq
  %v73 = vshrl.u32 %v72, 7
  %v74 = vsub.s32 1, %v73
  %v75 = vrot.slane %v16, %v74
  %s76 = scalar_lea.vmem %s1, 16
  %v77 = vld [vmem:[%s76] sm:$0xff]
  %v78 = vld [vmem:[%s76 + $0x8] sm:$0xff]
  %v79 = vunpack.c.l.bf16 %v77
  %v80 = vunpack.c.h.bf16 %v77
  %v81 = vunpack.c.l.bf16 %v78
  %v82 = vunpack.c.h.bf16 %v78
  %v83 = vsub.f32 %v79, %v71
  %v84 = vsub.f32 %v80, %v75
  %v85 = vsub.f32 %v81, %v71
  %v86 = vsub.f32 %v82, %v75
  %v87 = vmul.f32 %v83, %v83
  %v88 = vmul.f32 %v84, %v84
  %v89 = vmul.f32 %v85, %v85
  %v90 = vmul.f32 %v86, %v86
  %v91 = vadd.f32 %v64, %v87
  %v92 = vadd.f32 %v65, %v88
  %v93 = vadd.f32 %v66, %v89
  %v94 = vadd.f32 %v67, %v90
  %s95 = scalar_lea.vmem %s1, 528
  %v96 = vld [vmem:[%s95] sm:$0xff]
  %v97 = vld [vmem:[%s95 + $0x8] sm:$0xff]
  %v98 = vunpack.c.l.bf16 %v96
  %v99 = vunpack.c.h.bf16 %v96
  %v100 = vunpack.c.l.bf16 %v97
  %v101 = vunpack.c.h.bf16 %v97
  %v102 = vsub.f32 %v98, %v71
  %v103 = vsub.f32 %v99, %v75
  %v104 = vsub.f32 %v100, %v71
  %v105 = vsub.f32 %v101, %v75
  %v106 = vmul.f32 %v102, %v102
  %v107 = vmul.f32 %v103, %v103
  %v108 = vmul.f32 %v104, %v104
  %v109 = vmul.f32 %v105, %v105
  %v110 = vadd.f32 %v91, %v106
  %v111 = vadd.f32 %v92, %v107
  %v112 = vadd.f32 %v93, %v108
  %v113 = vadd.f32 %v94, %v109
  %v114 = vlaneseq
  %v115 = vshrl.u32 %v114, 7
  %v116 = vsub.s32 2, %v115
  %v117 = vrot.slane %v15, %v116
  %v118 = vlaneseq
  %v119 = vshrl.u32 %v118, 7
  %v120 = vsub.s32 2, %v119
  %v121 = vrot.slane %v16, %v120
  %s122 = scalar_lea.vmem %s1, 32
  %v123 = vld [vmem:[%s122] sm:$0xff]
  %v124 = vld [vmem:[%s122 + $0x8] sm:$0xff]
  %v125 = vunpack.c.l.bf16 %v123
  %v126 = vunpack.c.h.bf16 %v123
  %v127 = vunpack.c.l.bf16 %v124
  %v128 = vunpack.c.h.bf16 %v124
  %v129 = vsub.f32 %v125, %v117
  %v130 = vsub.f32 %v126, %v121
  %v131 = vsub.f32 %v127, %v117
  %v132 = vsub.f32 %v128, %v121
  %v133 = vmul.f32 %v129, %v129
  %v134 = vmul.f32 %v130, %v130
  %v135 = vmul.f32 %v131, %v131
  %v136 = vmul.f32 %v132, %v132
  %v137 = vadd.f32 %v110, %v133
  %v138 = vadd.f32 %v111, %v134
  %v139 = vadd.f32 %v112, %v135
  %v140 = vadd.f32 %v113, %v136
  %s141 = scalar_lea.vmem %s1, 544
  %v142 = vld [vmem:[%s141] sm:$0xff]
  %v143 = vld [vmem:[%s141 + $0x8] sm:$0xff]
  %v144 = vunpack.c.l.bf16 %v142
  %v145 = vunpack.c.h.bf16 %v142
  %v146 = vunpack.c.l.bf16 %v143
  %v147 = vunpack.c.h.bf16 %v143
  %v148 = vsub.f32 %v144, %v117
  %v149 = vsub.f32 %v145, %v121
  %v150 = vsub.f32 %v146, %v117
  %v151 = vsub.f32 %v147, %v121
  %v152 = vmul.f32 %v148, %v148
  %v153 = vmul.f32 %v149, %v149
  %v154 = vmul.f32 %v150, %v150
  %v155 = vmul.f32 %v151, %v151
  %v156 = vadd.f32 %v137, %v152
  %v157 = vadd.f32 %v138, %v153
  %v158 = vadd.f32 %v139, %v154
  %v159 = vadd.f32 %v140, %v155
  %v160 = vlaneseq
  %v161 = vshrl.u32 %v160, 7
  %v162 = vsub.s32 3, %v161
  %v163 = vrot.slane %v15, %v162
  %v164 = vlaneseq
  %v165 = vshrl.u32 %v164, 7
  %v166 = vsub.s32 3, %v165
  %v167 = vrot.slane %v16, %v166
  %s168 = scalar_lea.vmem %s1, 48
  %v169 = vld [vmem:[%s168] sm:$0xff]
  %v170 = vld [vmem:[%s168 + $0x8] sm:$0xff]
  %v171 = vunpack.c.l.bf16 %v169
  %v172 = vunpack.c.h.bf16 %v169
  %v173 = vunpack.c.l.bf16 %v170
  %v174 = vunpack.c.h.bf16 %v170
  %v175 = vsub.f32 %v171, %v163
  %v176 = vsub.f32 %v172, %v167
  %v177 = vsub.f32 %v173, %v163
  %v178 = vsub.f32 %v174, %v167
  %v179 = vmul.f32 %v175, %v175
  %v180 = vmul.f32 %v176, %v176
  %v181 = vmul.f32 %v177, %v177
  %v182 = vmul.f32 %v178, %v178
  %v183 = vadd.f32 %v156, %v179
  %v184 = vadd.f32 %v157, %v180
  %v185 = vadd.f32 %v158, %v181
  %v186 = vadd.f32 %v159, %v182
  %s187 = scalar_lea.vmem %s1, 560
  %v188 = vld [vmem:[%s187] sm:$0xff]
  %v189 = vld [vmem:[%s187 + $0x8] sm:$0xff]
  %v190 = vunpack.c.l.bf16 %v188
  %v191 = vunpack.c.h.bf16 %v188
  %v192 = vunpack.c.l.bf16 %v189
  %v193 = vunpack.c.h.bf16 %v189
  %v194 = vsub.f32 %v190, %v163
  %v195 = vsub.f32 %v191, %v167
  %v196 = vsub.f32 %v192, %v163
  %v197 = vsub.f32 %v193, %v167
  %v198 = vmul.f32 %v194, %v194
  %v199 = vmul.f32 %v195, %v195
  %v200 = vmul.f32 %v196, %v196
  %v201 = vmul.f32 %v197, %v197
  %v202 = vadd.f32 %v183, %v198
  %v203 = vadd.f32 %v184, %v199
  %v204 = vadd.f32 %v185, %v200
  %v205 = vadd.f32 %v186, %v201
  %v206 = vlaneseq
  %v207 = vshrl.u32 %v206, 7
  %v208 = vsub.s32 4, %v207
  %v209 = vrot.slane %v15, %v208
  %v210 = vlaneseq
  %v211 = vshrl.u32 %v210, 7
  %v212 = vsub.s32 4, %v211
  %v213 = vrot.slane %v16, %v212
  %s214 = scalar_lea.vmem %s1, 64
  %v215 = vld [vmem:[%s214] sm:$0xff]
  %v216 = vld [vmem:[%s214 + $0x8] sm:$0xff]
  %v217 = vunpack.c.l.bf16 %v215
  %v218 = vunpack.c.h.bf16 %v215
  %v219 = vunpack.c.l.bf16 %v216
  %v220 = vunpack.c.h.bf16 %v216
  %v221 = vsub.f32 %v217, %v209
  %v222 = vsub.f32 %v218, %v213
  %v223 = vsub.f32 %v219, %v209
  %v224 = vsub.f32 %v220, %v213
  %v225 = vmul.f32 %v221, %v221
  %v226 = vmul.f32 %v222, %v222
  %v227 = vmul.f32 %v223, %v223
  %v228 = vmul.f32 %v224, %v224
  %v229 = vadd.f32 %v202, %v225
  %v230 = vadd.f32 %v203, %v226
  %v231 = vadd.f32 %v204, %v227
  %v232 = vadd.f32 %v205, %v228
  %s233 = scalar_lea.vmem %s1, 576
  %v234 = vld [vmem:[%s233] sm:$0xff]
  %v235 = vld [vmem:[%s233 + $0x8] sm:$0xff]
  %v236 = vunpack.c.l.bf16 %v234
  %v237 = vunpack.c.h.bf16 %v234
  %v238 = vunpack.c.l.bf16 %v235
  %v239 = vunpack.c.h.bf16 %v235
  %v240 = vsub.f32 %v236, %v209
  %v241 = vsub.f32 %v237, %v213
  %v242 = vsub.f32 %v238, %v209
  %v243 = vsub.f32 %v239, %v213
  %v244 = vmul.f32 %v240, %v240
  %v245 = vmul.f32 %v241, %v241
  %v246 = vmul.f32 %v242, %v242
  %v247 = vmul.f32 %v243, %v243
  %v248 = vadd.f32 %v229, %v244
  %v249 = vadd.f32 %v230, %v245
  %v250 = vadd.f32 %v231, %v246
  %v251 = vadd.f32 %v232, %v247
  %v252 = vlaneseq
  %v253 = vshrl.u32 %v252, 7
  %v254 = vsub.s32 5, %v253
  %v255 = vrot.slane %v15, %v254
  %v256 = vlaneseq
  %v257 = vshrl.u32 %v256, 7
  %v258 = vsub.s32 5, %v257
  %v259 = vrot.slane %v16, %v258
  %s260 = scalar_lea.vmem %s1, 80
  %v261 = vld [vmem:[%s260] sm:$0xff]
  %v262 = vld [vmem:[%s260 + $0x8] sm:$0xff]
  %v263 = vunpack.c.l.bf16 %v261
  %v264 = vunpack.c.h.bf16 %v261
  %v265 = vunpack.c.l.bf16 %v262
  %v266 = vunpack.c.h.bf16 %v262
  %v267 = vsub.f32 %v263, %v255
  %v268 = vsub.f32 %v264, %v259
  %v269 = vsub.f32 %v265, %v255
  %v270 = vsub.f32 %v266, %v259
  %v271 = vmul.f32 %v267, %v267
  %v272 = vmul.f32 %v268, %v268
  %v273 = vmul.f32 %v269, %v269
  %v274 = vmul.f32 %v270, %v270
  %v275 = vadd.f32 %v248, %v271
  %v276 = vadd.f32 %v249, %v272
  %v277 = vadd.f32 %v250, %v273
  %v278 = vadd.f32 %v251, %v274
  %s279 = scalar_lea.vmem %s1, 592
  %v280 = vld [vmem:[%s279] sm:$0xff]
  %v281 = vld [vmem:[%s279 + $0x8] sm:$0xff]
  %v282 = vunpack.c.l.bf16 %v280
  %v283 = vunpack.c.h.bf16 %v280
  %v284 = vunpack.c.l.bf16 %v281
  %v285 = vunpack.c.h.bf16 %v281
  %v286 = vsub.f32 %v282, %v255
  %v287 = vsub.f32 %v283, %v259
  %v288 = vsub.f32 %v284, %v255
  %v289 = vsub.f32 %v285, %v259
  %v290 = vmul.f32 %v286, %v286
  %v291 = vmul.f32 %v287, %v287
  %v292 = vmul.f32 %v288, %v288
  %v293 = vmul.f32 %v289, %v289
  %v294 = vadd.f32 %v275, %v290
  %v295 = vadd.f32 %v276, %v291
  %v296 = vadd.f32 %v277, %v292
  %v297 = vadd.f32 %v278, %v293
  %v298 = vlaneseq
  %v299 = vshrl.u32 %v298, 7
  %v300 = vsub.s32 6, %v299
  %v301 = vrot.slane %v15, %v300
  %v302 = vlaneseq
  %v303 = vshrl.u32 %v302, 7
  %v304 = vsub.s32 6, %v303
  %v305 = vrot.slane %v16, %v304
  %s306 = scalar_lea.vmem %s1, 96
  %v307 = vld [vmem:[%s306] sm:$0xff]
  %v308 = vld [vmem:[%s306 + $0x8] sm:$0xff]
  %v309 = vunpack.c.l.bf16 %v307
  %v310 = vunpack.c.h.bf16 %v307
  %v311 = vunpack.c.l.bf16 %v308
  %v312 = vunpack.c.h.bf16 %v308
  %v313 = vsub.f32 %v309, %v301
  %v314 = vsub.f32 %v310, %v305
  %v315 = vsub.f32 %v311, %v301
  %v316 = vsub.f32 %v312, %v305
  %v317 = vmul.f32 %v313, %v313
  %v318 = vmul.f32 %v314, %v314
  %v319 = vmul.f32 %v315, %v315
  %v320 = vmul.f32 %v316, %v316
  %v321 = vadd.f32 %v294, %v317
  %v322 = vadd.f32 %v295, %v318
  %v323 = vadd.f32 %v296, %v319
  %v324 = vadd.f32 %v297, %v320
  %s325 = scalar_lea.vmem %s1, 608
  %v326 = vld [vmem:[%s325] sm:$0xff]
  %v327 = vld [vmem:[%s325 + $0x8] sm:$0xff]
  %v328 = vunpack.c.l.bf16 %v326
  %v329 = vunpack.c.h.bf16 %v326
  %v330 = vunpack.c.l.bf16 %v327
  %v331 = vunpack.c.h.bf16 %v327
  %v332 = vsub.f32 %v328, %v301
  %v333 = vsub.f32 %v329, %v305
  %v334 = vsub.f32 %v330, %v301
  %v335 = vsub.f32 %v331, %v305
  %v336 = vmul.f32 %v332, %v332
  %v337 = vmul.f32 %v333, %v333
  %v338 = vmul.f32 %v334, %v334
  %v339 = vmul.f32 %v335, %v335
  %v340 = vadd.f32 %v321, %v336
  %v341 = vadd.f32 %v322, %v337
  %v342 = vadd.f32 %v323, %v338
  %v343 = vadd.f32 %v324, %v339
  %v344 = vlaneseq
  %v345 = vshrl.u32 %v344, 7
  %v346 = vsub.s32 7, %v345
  %v347 = vrot.slane %v15, %v346
  %v348 = vlaneseq
  %v349 = vshrl.u32 %v348, 7
  %v350 = vsub.s32 7, %v349
  %v351 = vrot.slane %v16, %v350
  %s352 = scalar_lea.vmem %s1, 112
  %v353 = vld [vmem:[%s352] sm:$0xff]
  %v354 = vld [vmem:[%s352 + $0x8] sm:$0xff]
  %v355 = vunpack.c.l.bf16 %v353
  %v356 = vunpack.c.h.bf16 %v353
  %v357 = vunpack.c.l.bf16 %v354
  %v358 = vunpack.c.h.bf16 %v354
  %v359 = vsub.f32 %v355, %v347
  %v360 = vsub.f32 %v356, %v351
  %v361 = vsub.f32 %v357, %v347
  %v362 = vsub.f32 %v358, %v351
  %v363 = vmul.f32 %v359, %v359
  %v364 = vmul.f32 %v360, %v360
  %v365 = vmul.f32 %v361, %v361
  %v366 = vmul.f32 %v362, %v362
  %v367 = vadd.f32 %v340, %v363
  %v368 = vadd.f32 %v341, %v364
  %v369 = vadd.f32 %v342, %v365
  %v370 = vadd.f32 %v343, %v366
  %s371 = scalar_lea.vmem %s1, 624
  %v372 = vld [vmem:[%s371] sm:$0xff]
  %v373 = vld [vmem:[%s371 + $0x8] sm:$0xff]
  %v374 = vunpack.c.l.bf16 %v372
  %v375 = vunpack.c.h.bf16 %v372
  %v376 = vunpack.c.l.bf16 %v373
  %v377 = vunpack.c.h.bf16 %v373
  %v378 = vsub.f32 %v374, %v347
  %v379 = vsub.f32 %v375, %v351
  %v380 = vsub.f32 %v376, %v347
  %v381 = vsub.f32 %v377, %v351
  %v382 = vmul.f32 %v378, %v378
  %v383 = vmul.f32 %v379, %v379
  %v384 = vmul.f32 %v380, %v380
  %v385 = vmul.f32 %v381, %v381
  %v386 = vadd.f32 %v367, %v382
  %v387 = vadd.f32 %v368, %v383
  %v388 = vadd.f32 %v369, %v384
  %v389 = vadd.f32 %v370, %v385
  %v390 = vlaneseq
  %v391 = vshrl.u32 %v390, 7
  %v392 = vsub.s32 0, %v391
  %v393 = vrot.slane %v17, %v392
  %v394 = vlaneseq
  %v395 = vshrl.u32 %v394, 7
  %v396 = vsub.s32 0, %v395
  %v397 = vrot.slane %v18, %v396
  %s398 = scalar_lea.vmem %s1, 128
  %v399 = vld [vmem:[%s398] sm:$0xff]
  %v400 = vld [vmem:[%s398 + $0x8] sm:$0xff]
  %v401 = vunpack.c.l.bf16 %v399
  %v402 = vunpack.c.h.bf16 %v399
  %v403 = vunpack.c.l.bf16 %v400
  %v404 = vunpack.c.h.bf16 %v400
  %v405 = vsub.f32 %v401, %v393
  %v406 = vsub.f32 %v402, %v397
  %v407 = vsub.f32 %v403, %v393
  %v408 = vsub.f32 %v404, %v397
  %v409 = vmul.f32 %v405, %v405
  %v410 = vmul.f32 %v406, %v406
  %v411 = vmul.f32 %v407, %v407
  %v412 = vmul.f32 %v408, %v408
  %v413 = vadd.f32 %v386, %v409
  %v414 = vadd.f32 %v387, %v410
  %v415 = vadd.f32 %v388, %v411
  %v416 = vadd.f32 %v389, %v412
  %s417 = scalar_lea.vmem %s1, 640
  %v418 = vld [vmem:[%s417] sm:$0xff]
  %v419 = vld [vmem:[%s417 + $0x8] sm:$0xff]
  %v420 = vunpack.c.l.bf16 %v418
  %v421 = vunpack.c.h.bf16 %v418
  %v422 = vunpack.c.l.bf16 %v419
  %v423 = vunpack.c.h.bf16 %v419
  %v424 = vsub.f32 %v420, %v393
  %v425 = vsub.f32 %v421, %v397
  %v426 = vsub.f32 %v422, %v393
  %v427 = vsub.f32 %v423, %v397
  %v428 = vmul.f32 %v424, %v424
  %v429 = vmul.f32 %v425, %v425
  %v430 = vmul.f32 %v426, %v426
  %v431 = vmul.f32 %v427, %v427
  %v432 = vadd.f32 %v413, %v428
  %v433 = vadd.f32 %v414, %v429
  %v434 = vadd.f32 %v415, %v430
  %v435 = vadd.f32 %v416, %v431
  %v436 = vlaneseq
  %v437 = vshrl.u32 %v436, 7
  %v438 = vsub.s32 1, %v437
  %v439 = vrot.slane %v17, %v438
  %v440 = vlaneseq
  %v441 = vshrl.u32 %v440, 7
  %v442 = vsub.s32 1, %v441
  %v443 = vrot.slane %v18, %v442
  %s444 = scalar_lea.vmem %s1, 144
  %v445 = vld [vmem:[%s444] sm:$0xff]
  %v446 = vld [vmem:[%s444 + $0x8] sm:$0xff]
  %v447 = vunpack.c.l.bf16 %v445
  %v448 = vunpack.c.h.bf16 %v445
  %v449 = vunpack.c.l.bf16 %v446
  %v450 = vunpack.c.h.bf16 %v446
  %v451 = vsub.f32 %v447, %v439
  %v452 = vsub.f32 %v448, %v443
  %v453 = vsub.f32 %v449, %v439
  %v454 = vsub.f32 %v450, %v443
  %v455 = vmul.f32 %v451, %v451
  %v456 = vmul.f32 %v452, %v452
  %v457 = vmul.f32 %v453, %v453
  %v458 = vmul.f32 %v454, %v454
  %v459 = vadd.f32 %v432, %v455
  %v460 = vadd.f32 %v433, %v456
  %v461 = vadd.f32 %v434, %v457
  %v462 = vadd.f32 %v435, %v458
  %s463 = scalar_lea.vmem %s1, 656
  %v464 = vld [vmem:[%s463] sm:$0xff]
  %v465 = vld [vmem:[%s463 + $0x8] sm:$0xff]
  %v466 = vunpack.c.l.bf16 %v464
  %v467 = vunpack.c.h.bf16 %v464
  %v468 = vunpack.c.l.bf16 %v465
  %v469 = vunpack.c.h.bf16 %v465
  %v470 = vsub.f32 %v466, %v439
  %v471 = vsub.f32 %v467, %v443
  %v472 = vsub.f32 %v468, %v439
  %v473 = vsub.f32 %v469, %v443
  %v474 = vmul.f32 %v470, %v470
  %v475 = vmul.f32 %v471, %v471
  %v476 = vmul.f32 %v472, %v472
  %v477 = vmul.f32 %v473, %v473
  %v478 = vadd.f32 %v459, %v474
  %v479 = vadd.f32 %v460, %v475
  %v480 = vadd.f32 %v461, %v476
  %v481 = vadd.f32 %v462, %v477
  %v482 = vlaneseq
  %v483 = vshrl.u32 %v482, 7
  %v484 = vsub.s32 2, %v483
  %v485 = vrot.slane %v17, %v484
  %v486 = vlaneseq
  %v487 = vshrl.u32 %v486, 7
  %v488 = vsub.s32 2, %v487
  %v489 = vrot.slane %v18, %v488
  %s490 = scalar_lea.vmem %s1, 160
  %v491 = vld [vmem:[%s490] sm:$0xff]
  %v492 = vld [vmem:[%s490 + $0x8] sm:$0xff]
  %v493 = vunpack.c.l.bf16 %v491
  %v494 = vunpack.c.h.bf16 %v491
  %v495 = vunpack.c.l.bf16 %v492
  %v496 = vunpack.c.h.bf16 %v492
  %v497 = vsub.f32 %v493, %v485
  %v498 = vsub.f32 %v494, %v489
  %v499 = vsub.f32 %v495, %v485
  %v500 = vsub.f32 %v496, %v489
  %v501 = vmul.f32 %v497, %v497
  %v502 = vmul.f32 %v498, %v498
  %v503 = vmul.f32 %v499, %v499
  %v504 = vmul.f32 %v500, %v500
  %v505 = vadd.f32 %v478, %v501
  %v506 = vadd.f32 %v479, %v502
  %v507 = vadd.f32 %v480, %v503
  %v508 = vadd.f32 %v481, %v504
  %s509 = scalar_lea.vmem %s1, 672
  %v510 = vld [vmem:[%s509] sm:$0xff]
  %v511 = vld [vmem:[%s509 + $0x8] sm:$0xff]
  %v512 = vunpack.c.l.bf16 %v510
  %v513 = vunpack.c.h.bf16 %v510
  %v514 = vunpack.c.l.bf16 %v511
  %v515 = vunpack.c.h.bf16 %v511
  %v516 = vsub.f32 %v512, %v485
  %v517 = vsub.f32 %v513, %v489
  %v518 = vsub.f32 %v514, %v485
  %v519 = vsub.f32 %v515, %v489
  %v520 = vmul.f32 %v516, %v516
  %v521 = vmul.f32 %v517, %v517
  %v522 = vmul.f32 %v518, %v518
  %v523 = vmul.f32 %v519, %v519
  %v524 = vadd.f32 %v505, %v520
  %v525 = vadd.f32 %v506, %v521
  %v526 = vadd.f32 %v507, %v522
  %v527 = vadd.f32 %v508, %v523
  %v528 = vlaneseq
  %v529 = vshrl.u32 %v528, 7
  %v530 = vsub.s32 3, %v529
  %v531 = vrot.slane %v17, %v530
  %v532 = vlaneseq
  %v533 = vshrl.u32 %v532, 7
  %v534 = vsub.s32 3, %v533
  %v535 = vrot.slane %v18, %v534
  %s536 = scalar_lea.vmem %s1, 176
  %v537 = vld [vmem:[%s536] sm:$0xff]
  %v538 = vld [vmem:[%s536 + $0x8] sm:$0xff]
  %v539 = vunpack.c.l.bf16 %v537
  %v540 = vunpack.c.h.bf16 %v537
  %v541 = vunpack.c.l.bf16 %v538
  %v542 = vunpack.c.h.bf16 %v538
  %v543 = vsub.f32 %v539, %v531
  %v544 = vsub.f32 %v540, %v535
  %v545 = vsub.f32 %v541, %v531
  %v546 = vsub.f32 %v542, %v535
  %v547 = vmul.f32 %v543, %v543
  %v548 = vmul.f32 %v544, %v544
  %v549 = vmul.f32 %v545, %v545
  %v550 = vmul.f32 %v546, %v546
  %v551 = vadd.f32 %v524, %v547
  %v552 = vadd.f32 %v525, %v548
  %v553 = vadd.f32 %v526, %v549
  %v554 = vadd.f32 %v527, %v550
  %s555 = scalar_lea.vmem %s1, 688
  %v556 = vld [vmem:[%s555] sm:$0xff]
  %v557 = vld [vmem:[%s555 + $0x8] sm:$0xff]
  %v558 = vunpack.c.l.bf16 %v556
  %v559 = vunpack.c.h.bf16 %v556
  %v560 = vunpack.c.l.bf16 %v557
  %v561 = vunpack.c.h.bf16 %v557
  %v562 = vsub.f32 %v558, %v531
  %v563 = vsub.f32 %v559, %v535
  %v564 = vsub.f32 %v560, %v531
  %v565 = vsub.f32 %v561, %v535
  %v566 = vmul.f32 %v562, %v562
  %v567 = vmul.f32 %v563, %v563
  %v568 = vmul.f32 %v564, %v564
  %v569 = vmul.f32 %v565, %v565
  %v570 = vadd.f32 %v551, %v566
  %v571 = vadd.f32 %v552, %v567
  %v572 = vadd.f32 %v553, %v568
  %v573 = vadd.f32 %v554, %v569
  %v574 = vlaneseq
  %v575 = vshrl.u32 %v574, 7
  %v576 = vsub.s32 4, %v575
  %v577 = vrot.slane %v17, %v576
  %v578 = vlaneseq
  %v579 = vshrl.u32 %v578, 7
  %v580 = vsub.s32 4, %v579
  %v581 = vrot.slane %v18, %v580
  %s582 = scalar_lea.vmem %s1, 192
  %v583 = vld [vmem:[%s582] sm:$0xff]
  %v584 = vld [vmem:[%s582 + $0x8] sm:$0xff]
  %v585 = vunpack.c.l.bf16 %v583
  %v586 = vunpack.c.h.bf16 %v583
  %v587 = vunpack.c.l.bf16 %v584
  %v588 = vunpack.c.h.bf16 %v584
  %v589 = vsub.f32 %v585, %v577
  %v590 = vsub.f32 %v586, %v581
  %v591 = vsub.f32 %v587, %v577
  %v592 = vsub.f32 %v588, %v581
  %v593 = vmul.f32 %v589, %v589
  %v594 = vmul.f32 %v590, %v590
  %v595 = vmul.f32 %v591, %v591
  %v596 = vmul.f32 %v592, %v592
  %v597 = vadd.f32 %v570, %v593
  %v598 = vadd.f32 %v571, %v594
  %v599 = vadd.f32 %v572, %v595
  %v600 = vadd.f32 %v573, %v596
  %s601 = scalar_lea.vmem %s1, 704
  %v602 = vld [vmem:[%s601] sm:$0xff]
  %v603 = vld [vmem:[%s601 + $0x8] sm:$0xff]
  %v604 = vunpack.c.l.bf16 %v602
  %v605 = vunpack.c.h.bf16 %v602
  %v606 = vunpack.c.l.bf16 %v603
  %v607 = vunpack.c.h.bf16 %v603
  %v608 = vsub.f32 %v604, %v577
  %v609 = vsub.f32 %v605, %v581
  %v610 = vsub.f32 %v606, %v577
  %v611 = vsub.f32 %v607, %v581
  %v612 = vmul.f32 %v608, %v608
  %v613 = vmul.f32 %v609, %v609
  %v614 = vmul.f32 %v610, %v610
  %v615 = vmul.f32 %v611, %v611
  %v616 = vadd.f32 %v597, %v612
  %v617 = vadd.f32 %v598, %v613
  %v618 = vadd.f32 %v599, %v614
  %v619 = vadd.f32 %v600, %v615
  %v620 = vlaneseq
  %v621 = vshrl.u32 %v620, 7
  %v622 = vsub.s32 5, %v621
  %v623 = vrot.slane %v17, %v622
  %v624 = vlaneseq
  %v625 = vshrl.u32 %v624, 7
  %v626 = vsub.s32 5, %v625
  %v627 = vrot.slane %v18, %v626
  %s628 = scalar_lea.vmem %s1, 208
  %v629 = vld [vmem:[%s628] sm:$0xff]
  %v630 = vld [vmem:[%s628 + $0x8] sm:$0xff]
  %v631 = vunpack.c.l.bf16 %v629
  %v632 = vunpack.c.h.bf16 %v629
  %v633 = vunpack.c.l.bf16 %v630
  %v634 = vunpack.c.h.bf16 %v630
  %v635 = vsub.f32 %v631, %v623
  %v636 = vsub.f32 %v632, %v627
  %v637 = vsub.f32 %v633, %v623
  %v638 = vsub.f32 %v634, %v627
  %v639 = vmul.f32 %v635, %v635
  %v640 = vmul.f32 %v636, %v636
  %v641 = vmul.f32 %v637, %v637
  %v642 = vmul.f32 %v638, %v638
  %v643 = vadd.f32 %v616, %v639
  %v644 = vadd.f32 %v617, %v640
  %v645 = vadd.f32 %v618, %v641
  %v646 = vadd.f32 %v619, %v642
  %s647 = scalar_lea.vmem %s1, 720
  %v648 = vld [vmem:[%s647] sm:$0xff]
  %v649 = vld [vmem:[%s647 + $0x8] sm:$0xff]
  %v650 = vunpack.c.l.bf16 %v648
  %v651 = vunpack.c.h.bf16 %v648
  %v652 = vunpack.c.l.bf16 %v649
  %v653 = vunpack.c.h.bf16 %v649
  %v654 = vsub.f32 %v650, %v623
  %v655 = vsub.f32 %v651, %v627
  %v656 = vsub.f32 %v652, %v623
  %v657 = vsub.f32 %v653, %v627
  %v658 = vmul.f32 %v654, %v654
  %v659 = vmul.f32 %v655, %v655
  %v660 = vmul.f32 %v656, %v656
  %v661 = vmul.f32 %v657, %v657
  %v662 = vadd.f32 %v643, %v658
  %v663 = vadd.f32 %v644, %v659
  %v664 = vadd.f32 %v645, %v660
  %v665 = vadd.f32 %v646, %v661
  %v666 = vlaneseq
  %v667 = vshrl.u32 %v666, 7
  %v668 = vsub.s32 6, %v667
  %v669 = vrot.slane %v17, %v668
  %v670 = vlaneseq
  %v671 = vshrl.u32 %v670, 7
  %v672 = vsub.s32 6, %v671
  %v673 = vrot.slane %v18, %v672
  %s674 = scalar_lea.vmem %s1, 224
  %v675 = vld [vmem:[%s674] sm:$0xff]
  %v676 = vld [vmem:[%s674 + $0x8] sm:$0xff]
  %v677 = vunpack.c.l.bf16 %v675
  %v678 = vunpack.c.h.bf16 %v675
  %v679 = vunpack.c.l.bf16 %v676
  %v680 = vunpack.c.h.bf16 %v676
  %v681 = vsub.f32 %v677, %v669
  %v682 = vsub.f32 %v678, %v673
  %v683 = vsub.f32 %v679, %v669
  %v684 = vsub.f32 %v680, %v673
  %v685 = vmul.f32 %v681, %v681
  %v686 = vmul.f32 %v682, %v682
  %v687 = vmul.f32 %v683, %v683
  %v688 = vmul.f32 %v684, %v684
  %v689 = vadd.f32 %v662, %v685
  %v690 = vadd.f32 %v663, %v686
  %v691 = vadd.f32 %v664, %v687
  %v692 = vadd.f32 %v665, %v688
  %s693 = scalar_lea.vmem %s1, 736
  %v694 = vld [vmem:[%s693] sm:$0xff]
  %v695 = vld [vmem:[%s693 + $0x8] sm:$0xff]
  %v696 = vunpack.c.l.bf16 %v694
  %v697 = vunpack.c.h.bf16 %v694
  %v698 = vunpack.c.l.bf16 %v695
  %v699 = vunpack.c.h.bf16 %v695
  %v700 = vsub.f32 %v696, %v669
  %v701 = vsub.f32 %v697, %v673
  %v702 = vsub.f32 %v698, %v669
  %v703 = vsub.f32 %v699, %v673
  %v704 = vmul.f32 %v700, %v700
  %v705 = vmul.f32 %v701, %v701
  %v706 = vmul.f32 %v702, %v702
  %v707 = vmul.f32 %v703, %v703
  %v708 = vadd.f32 %v689, %v704
  %v709 = vadd.f32 %v690, %v705
  %v710 = vadd.f32 %v691, %v706
  %v711 = vadd.f32 %v692, %v707
  %v712 = vlaneseq
  %v713 = vshrl.u32 %v712, 7
  %v714 = vsub.s32 7, %v713
  %v715 = vrot.slane %v17, %v714
  %v716 = vlaneseq
  %v717 = vshrl.u32 %v716, 7
  %v718 = vsub.s32 7, %v717
  %v719 = vrot.slane %v18, %v718
  %s720 = scalar_lea.vmem %s1, 240
  %v721 = vld [vmem:[%s720] sm:$0xff]
  %v722 = vld [vmem:[%s720 + $0x8] sm:$0xff]
  %v723 = vunpack.c.l.bf16 %v721
  %v724 = vunpack.c.h.bf16 %v721
  %v725 = vunpack.c.l.bf16 %v722
  %v726 = vunpack.c.h.bf16 %v722
  %v727 = vsub.f32 %v723, %v715
  %v728 = vsub.f32 %v724, %v719
  %v729 = vsub.f32 %v725, %v715
  %v730 = vsub.f32 %v726, %v719
  %v731 = vmul.f32 %v727, %v727
  %v732 = vmul.f32 %v728, %v728
  %v733 = vmul.f32 %v729, %v729
  %v734 = vmul.f32 %v730, %v730
  %v735 = vadd.f32 %v708, %v731
  %v736 = vadd.f32 %v709, %v732
  %v737 = vadd.f32 %v710, %v733
  %v738 = vadd.f32 %v711, %v734
  %s739 = scalar_lea.vmem %s1, 752
  %v740 = vld [vmem:[%s739] sm:$0xff]
  %v741 = vld [vmem:[%s739 + $0x8] sm:$0xff]
  %v742 = vunpack.c.l.bf16 %v740
  %v743 = vunpack.c.h.bf16 %v740
  %v744 = vunpack.c.l.bf16 %v741
  %v745 = vunpack.c.h.bf16 %v741
  %v746 = vsub.f32 %v742, %v715
  %v747 = vsub.f32 %v743, %v719
  %v748 = vsub.f32 %v744, %v715
  %v749 = vsub.f32 %v745, %v719
  %v750 = vmul.f32 %v746, %v746
  %v751 = vmul.f32 %v747, %v747
  %v752 = vmul.f32 %v748, %v748
  %v753 = vmul.f32 %v749, %v749
  %v754 = vadd.f32 %v735, %v750
  %v755 = vadd.f32 %v736, %v751
  %v756 = vadd.f32 %v737, %v752
  %v757 = vadd.f32 %v738, %v753
  %v758 = vlaneseq
  %v759 = vshrl.u32 %v758, 7
  %v760 = vsub.s32 0, %v759
  %v761 = vrot.slane %v19, %v760
  %v762 = vlaneseq
  %v763 = vshrl.u32 %v762, 7
  %v764 = vsub.s32 0, %v763
  %v765 = vrot.slane %v20, %v764
  %s766 = scalar_lea.vmem %s1, 256
  %v767 = vld [vmem:[%s766] sm:$0xff]
  %v768 = vld [vmem:[%s766 + $0x8] sm:$0xff]
  %v769 = vunpack.c.l.bf16 %v767
  %v770 = vunpack.c.h.bf16 %v767
  %v771 = vunpack.c.l.bf16 %v768
  %v772 = vunpack.c.h.bf16 %v768
  %v773 = vsub.f32 %v769, %v761
  %v774 = vsub.f32 %v770, %v765
  %v775 = vsub.f32 %v771, %v761
  %v776 = vsub.f32 %v772, %v765
  %v777 = vmul.f32 %v773, %v773
  %v778 = vmul.f32 %v774, %v774
  %v779 = vmul.f32 %v775, %v775
  %v780 = vmul.f32 %v776, %v776
  %v781 = vadd.f32 %v754, %v777
  %v782 = vadd.f32 %v755, %v778
  %v783 = vadd.f32 %v756, %v779
  %v784 = vadd.f32 %v757, %v780
  %s785 = scalar_lea.vmem %s1, 768
  %v786 = vld [vmem:[%s785] sm:$0xff]
  %v787 = vld [vmem:[%s785 + $0x8] sm:$0xff]
  %v788 = vunpack.c.l.bf16 %v786
  %v789 = vunpack.c.h.bf16 %v786
  %v790 = vunpack.c.l.bf16 %v787
  %v791 = vunpack.c.h.bf16 %v787
  %v792 = vsub.f32 %v788, %v761
  %v793 = vsub.f32 %v789, %v765
  %v794 = vsub.f32 %v790, %v761
  %v795 = vsub.f32 %v791, %v765
  %v796 = vmul.f32 %v792, %v792
  %v797 = vmul.f32 %v793, %v793
  %v798 = vmul.f32 %v794, %v794
  %v799 = vmul.f32 %v795, %v795
  %v800 = vadd.f32 %v781, %v796
  %v801 = vadd.f32 %v782, %v797
  %v802 = vadd.f32 %v783, %v798
  %v803 = vadd.f32 %v784, %v799
  %v804 = vlaneseq
  %v805 = vshrl.u32 %v804, 7
  %v806 = vsub.s32 1, %v805
  %v807 = vrot.slane %v19, %v806
  %v808 = vlaneseq
  %v809 = vshrl.u32 %v808, 7
  %v810 = vsub.s32 1, %v809
  %v811 = vrot.slane %v20, %v810
  %s812 = scalar_lea.vmem %s1, 272
  %v813 = vld [vmem:[%s812] sm:$0xff]
  %v814 = vld [vmem:[%s812 + $0x8] sm:$0xff]
  %v815 = vunpack.c.l.bf16 %v813
  %v816 = vunpack.c.h.bf16 %v813
  %v817 = vunpack.c.l.bf16 %v814
  %v818 = vunpack.c.h.bf16 %v814
  %v819 = vsub.f32 %v815, %v807
  %v820 = vsub.f32 %v816, %v811
  %v821 = vsub.f32 %v817, %v807
  %v822 = vsub.f32 %v818, %v811
  %v823 = vmul.f32 %v819, %v819
  %v824 = vmul.f32 %v820, %v820
  %v825 = vmul.f32 %v821, %v821
  %v826 = vmul.f32 %v822, %v822
  %v827 = vadd.f32 %v800, %v823
  %v828 = vadd.f32 %v801, %v824
  %v829 = vadd.f32 %v802, %v825
  %v830 = vadd.f32 %v803, %v826
  %s831 = scalar_lea.vmem %s1, 784
  %v832 = vld [vmem:[%s831] sm:$0xff]
  %v833 = vld [vmem:[%s831 + $0x8] sm:$0xff]
  %v834 = vunpack.c.l.bf16 %v832
  %v835 = vunpack.c.h.bf16 %v832
  %v836 = vunpack.c.l.bf16 %v833
  %v837 = vunpack.c.h.bf16 %v833
  %v838 = vsub.f32 %v834, %v807
  %v839 = vsub.f32 %v835, %v811
  %v840 = vsub.f32 %v836, %v807
  %v841 = vsub.f32 %v837, %v811
  %v842 = vmul.f32 %v838, %v838
  %v843 = vmul.f32 %v839, %v839
  %v844 = vmul.f32 %v840, %v840
  %v845 = vmul.f32 %v841, %v841
  %v846 = vadd.f32 %v827, %v842
  %v847 = vadd.f32 %v828, %v843
  %v848 = vadd.f32 %v829, %v844
  %v849 = vadd.f32 %v830, %v845
  %v850 = vlaneseq
  %v851 = vshrl.u32 %v850, 7
  %v852 = vsub.s32 2, %v851
  %v853 = vrot.slane %v19, %v852
  %v854 = vlaneseq
  %v855 = vshrl.u32 %v854, 7
  %v856 = vsub.s32 2, %v855
  %v857 = vrot.slane %v20, %v856
  %s858 = scalar_lea.vmem %s1, 288
  %v859 = vld [vmem:[%s858] sm:$0xff]
  %v860 = vld [vmem:[%s858 + $0x8] sm:$0xff]
  %v861 = vunpack.c.l.bf16 %v859
  %v862 = vunpack.c.h.bf16 %v859
  %v863 = vunpack.c.l.bf16 %v860
  %v864 = vunpack.c.h.bf16 %v860
  %v865 = vsub.f32 %v861, %v853
  %v866 = vsub.f32 %v862, %v857
  %v867 = vsub.f32 %v863, %v853
  %v868 = vsub.f32 %v864, %v857
  %v869 = vmul.f32 %v865, %v865
  %v870 = vmul.f32 %v866, %v866
  %v871 = vmul.f32 %v867, %v867
  %v872 = vmul.f32 %v868, %v868
  %v873 = vadd.f32 %v846, %v869
  %v874 = vadd.f32 %v847, %v870
  %v875 = vadd.f32 %v848, %v871
  %v876 = vadd.f32 %v849, %v872
  %s877 = scalar_lea.vmem %s1, 800
  %v878 = vld [vmem:[%s877] sm:$0xff]
  %v879 = vld [vmem:[%s877 + $0x8] sm:$0xff]
  %v880 = vunpack.c.l.bf16 %v878
  %v881 = vunpack.c.h.bf16 %v878
  %v882 = vunpack.c.l.bf16 %v879
  %v883 = vunpack.c.h.bf16 %v879
  %v884 = vsub.f32 %v880, %v853
  %v885 = vsub.f32 %v881, %v857
  %v886 = vsub.f32 %v882, %v853
  %v887 = vsub.f32 %v883, %v857
  %v888 = vmul.f32 %v884, %v884
  %v889 = vmul.f32 %v885, %v885
  %v890 = vmul.f32 %v886, %v886
  %v891 = vmul.f32 %v887, %v887
  %v892 = vadd.f32 %v873, %v888
  %v893 = vadd.f32 %v874, %v889
  %v894 = vadd.f32 %v875, %v890
  %v895 = vadd.f32 %v876, %v891
  %v896 = vlaneseq
  %v897 = vshrl.u32 %v896, 7
  %v898 = vsub.s32 3, %v897
  %v899 = vrot.slane %v19, %v898
  %v900 = vlaneseq
  %v901 = vshrl.u32 %v900, 7
  %v902 = vsub.s32 3, %v901
  %v903 = vrot.slane %v20, %v902
  %s904 = scalar_lea.vmem %s1, 304
  %v905 = vld [vmem:[%s904] sm:$0xff]
  %v906 = vld [vmem:[%s904 + $0x8] sm:$0xff]
  %v907 = vunpack.c.l.bf16 %v905
  %v908 = vunpack.c.h.bf16 %v905
  %v909 = vunpack.c.l.bf16 %v906
  %v910 = vunpack.c.h.bf16 %v906
  %v911 = vsub.f32 %v907, %v899
  %v912 = vsub.f32 %v908, %v903
  %v913 = vsub.f32 %v909, %v899
  %v914 = vsub.f32 %v910, %v903
  %v915 = vmul.f32 %v911, %v911
  %v916 = vmul.f32 %v912, %v912
  %v917 = vmul.f32 %v913, %v913
  %v918 = vmul.f32 %v914, %v914
  %v919 = vadd.f32 %v892, %v915
  %v920 = vadd.f32 %v893, %v916
  %v921 = vadd.f32 %v894, %v917
  %v922 = vadd.f32 %v895, %v918
  %s923 = scalar_lea.vmem %s1, 816
  %v924 = vld [vmem:[%s923] sm:$0xff]
  %v925 = vld [vmem:[%s923 + $0x8] sm:$0xff]
  %v926 = vunpack.c.l.bf16 %v924
  %v927 = vunpack.c.h.bf16 %v924
  %v928 = vunpack.c.l.bf16 %v925
  %v929 = vunpack.c.h.bf16 %v925
  %v930 = vsub.f32 %v926, %v899
  %v931 = vsub.f32 %v927, %v903
  %v932 = vsub.f32 %v928, %v899
  %v933 = vsub.f32 %v929, %v903
  %v934 = vmul.f32 %v930, %v930
  %v935 = vmul.f32 %v931, %v931
  %v936 = vmul.f32 %v932, %v932
  %v937 = vmul.f32 %v933, %v933
  %v938 = vadd.f32 %v919, %v934
  %v939 = vadd.f32 %v920, %v935
  %v940 = vadd.f32 %v921, %v936
  %v941 = vadd.f32 %v922, %v937
  %v942 = vlaneseq
  %v943 = vshrl.u32 %v942, 7
  %v944 = vsub.s32 4, %v943
  %v945 = vrot.slane %v19, %v944
  %v946 = vlaneseq
  %v947 = vshrl.u32 %v946, 7
  %v948 = vsub.s32 4, %v947
  %v949 = vrot.slane %v20, %v948
  %s950 = scalar_lea.vmem %s1, 320
  %v951 = vld [vmem:[%s950] sm:$0xff]
  %v952 = vld [vmem:[%s950 + $0x8] sm:$0xff]
  %v953 = vunpack.c.l.bf16 %v951
  %v954 = vunpack.c.h.bf16 %v951
  %v955 = vunpack.c.l.bf16 %v952
  %v956 = vunpack.c.h.bf16 %v952
  %v957 = vsub.f32 %v953, %v945
  %v958 = vsub.f32 %v954, %v949
  %v959 = vsub.f32 %v955, %v945
  %v960 = vsub.f32 %v956, %v949
  %v961 = vmul.f32 %v957, %v957
  %v962 = vmul.f32 %v958, %v958
  %v963 = vmul.f32 %v959, %v959
  %v964 = vmul.f32 %v960, %v960
  %v965 = vadd.f32 %v938, %v961
  %v966 = vadd.f32 %v939, %v962
  %v967 = vadd.f32 %v940, %v963
  %v968 = vadd.f32 %v941, %v964
  %s969 = scalar_lea.vmem %s1, 832
  %v970 = vld [vmem:[%s969] sm:$0xff]
  %v971 = vld [vmem:[%s969 + $0x8] sm:$0xff]
  %v972 = vunpack.c.l.bf16 %v970
  %v973 = vunpack.c.h.bf16 %v970
  %v974 = vunpack.c.l.bf16 %v971
  %v975 = vunpack.c.h.bf16 %v971
  %v976 = vsub.f32 %v972, %v945
  %v977 = vsub.f32 %v973, %v949
  %v978 = vsub.f32 %v974, %v945
  %v979 = vsub.f32 %v975, %v949
  %v980 = vmul.f32 %v976, %v976
  %v981 = vmul.f32 %v977, %v977
  %v982 = vmul.f32 %v978, %v978
  %v983 = vmul.f32 %v979, %v979
  %v984 = vadd.f32 %v965, %v980
  %v985 = vadd.f32 %v966, %v981
  %v986 = vadd.f32 %v967, %v982
  %v987 = vadd.f32 %v968, %v983
  %v988 = vlaneseq
  %v989 = vshrl.u32 %v988, 7
  %v990 = vsub.s32 5, %v989
  %v991 = vrot.slane %v19, %v990
  %v992 = vlaneseq
  %v993 = vshrl.u32 %v992, 7
  %v994 = vsub.s32 5, %v993
  %v995 = vrot.slane %v20, %v994
  %s996 = scalar_lea.vmem %s1, 336
  %v997 = vld [vmem:[%s996] sm:$0xff]
  %v998 = vld [vmem:[%s996 + $0x8] sm:$0xff]
  %v999 = vunpack.c.l.bf16 %v997
  %v1000 = vunpack.c.h.bf16 %v997
  %v1001 = vunpack.c.l.bf16 %v998
  %v1002 = vunpack.c.h.bf16 %v998
  %v1003 = vsub.f32 %v999, %v991
  %v1004 = vsub.f32 %v1000, %v995
  %v1005 = vsub.f32 %v1001, %v991
  %v1006 = vsub.f32 %v1002, %v995
  %v1007 = vmul.f32 %v1003, %v1003
  %v1008 = vmul.f32 %v1004, %v1004
  %v1009 = vmul.f32 %v1005, %v1005
  %v1010 = vmul.f32 %v1006, %v1006
  %v1011 = vadd.f32 %v984, %v1007
  %v1012 = vadd.f32 %v985, %v1008
  %v1013 = vadd.f32 %v986, %v1009
  %v1014 = vadd.f32 %v987, %v1010
  %s1015 = scalar_lea.vmem %s1, 848
  %v1016 = vld [vmem:[%s1015] sm:$0xff]
  %v1017 = vld [vmem:[%s1015 + $0x8] sm:$0xff]
  %v1018 = vunpack.c.l.bf16 %v1016
  %v1019 = vunpack.c.h.bf16 %v1016
  %v1020 = vunpack.c.l.bf16 %v1017
  %v1021 = vunpack.c.h.bf16 %v1017
  %v1022 = vsub.f32 %v1018, %v991
  %v1023 = vsub.f32 %v1019, %v995
  %v1024 = vsub.f32 %v1020, %v991
  %v1025 = vsub.f32 %v1021, %v995
  %v1026 = vmul.f32 %v1022, %v1022
  %v1027 = vmul.f32 %v1023, %v1023
  %v1028 = vmul.f32 %v1024, %v1024
  %v1029 = vmul.f32 %v1025, %v1025
  %v1030 = vadd.f32 %v1011, %v1026
  %v1031 = vadd.f32 %v1012, %v1027
  %v1032 = vadd.f32 %v1013, %v1028
  %v1033 = vadd.f32 %v1014, %v1029
  %v1034 = vlaneseq
  %v1035 = vshrl.u32 %v1034, 7
  %v1036 = vsub.s32 6, %v1035
  %v1037 = vrot.slane %v19, %v1036
  %v1038 = vlaneseq
  %v1039 = vshrl.u32 %v1038, 7
  %v1040 = vsub.s32 6, %v1039
  %v1041 = vrot.slane %v20, %v1040
  %s1042 = scalar_lea.vmem %s1, 352
  %v1043 = vld [vmem:[%s1042] sm:$0xff]
  %v1044 = vld [vmem:[%s1042 + $0x8] sm:$0xff]
  %v1045 = vunpack.c.l.bf16 %v1043
  %v1046 = vunpack.c.h.bf16 %v1043
  %v1047 = vunpack.c.l.bf16 %v1044
  %v1048 = vunpack.c.h.bf16 %v1044
  %v1049 = vsub.f32 %v1045, %v1037
  %v1050 = vsub.f32 %v1046, %v1041
  %v1051 = vsub.f32 %v1047, %v1037
  %v1052 = vsub.f32 %v1048, %v1041
  %v1053 = vmul.f32 %v1049, %v1049
  %v1054 = vmul.f32 %v1050, %v1050
  %v1055 = vmul.f32 %v1051, %v1051
  %v1056 = vmul.f32 %v1052, %v1052
  %v1057 = vadd.f32 %v1030, %v1053
  %v1058 = vadd.f32 %v1031, %v1054
  %v1059 = vadd.f32 %v1032, %v1055
  %v1060 = vadd.f32 %v1033, %v1056
  %s1061 = scalar_lea.vmem %s1, 864
  %v1062 = vld [vmem:[%s1061] sm:$0xff]
  %v1063 = vld [vmem:[%s1061 + $0x8] sm:$0xff]
  %v1064 = vunpack.c.l.bf16 %v1062
  %v1065 = vunpack.c.h.bf16 %v1062
  %v1066 = vunpack.c.l.bf16 %v1063
  %v1067 = vunpack.c.h.bf16 %v1063
  %v1068 = vsub.f32 %v1064, %v1037
  %v1069 = vsub.f32 %v1065, %v1041
  %v1070 = vsub.f32 %v1066, %v1037
  %v1071 = vsub.f32 %v1067, %v1041
  %v1072 = vmul.f32 %v1068, %v1068
  %v1073 = vmul.f32 %v1069, %v1069
  %v1074 = vmul.f32 %v1070, %v1070
  %v1075 = vmul.f32 %v1071, %v1071
  %v1076 = vadd.f32 %v1057, %v1072
  %v1077 = vadd.f32 %v1058, %v1073
  %v1078 = vadd.f32 %v1059, %v1074
  %v1079 = vadd.f32 %v1060, %v1075
  %v1080 = vlaneseq
  %v1081 = vshrl.u32 %v1080, 7
  %v1082 = vsub.s32 7, %v1081
  %v1083 = vrot.slane %v19, %v1082
  %v1084 = vlaneseq
  %v1085 = vshrl.u32 %v1084, 7
  %v1086 = vsub.s32 7, %v1085
  %v1087 = vrot.slane %v20, %v1086
  %s1088 = scalar_lea.vmem %s1, 368
  %v1089 = vld [vmem:[%s1088] sm:$0xff]
  %v1090 = vld [vmem:[%s1088 + $0x8] sm:$0xff]
  %v1091 = vunpack.c.l.bf16 %v1089
  %v1092 = vunpack.c.h.bf16 %v1089
  %v1093 = vunpack.c.l.bf16 %v1090
  %v1094 = vunpack.c.h.bf16 %v1090
  %v1095 = vsub.f32 %v1091, %v1083
  %v1096 = vsub.f32 %v1092, %v1087
  %v1097 = vsub.f32 %v1093, %v1083
  %v1098 = vsub.f32 %v1094, %v1087
  %v1099 = vmul.f32 %v1095, %v1095
  %v1100 = vmul.f32 %v1096, %v1096
  %v1101 = vmul.f32 %v1097, %v1097
  %v1102 = vmul.f32 %v1098, %v1098
  %v1103 = vadd.f32 %v1076, %v1099
  %v1104 = vadd.f32 %v1077, %v1100
  %v1105 = vadd.f32 %v1078, %v1101
  %v1106 = vadd.f32 %v1079, %v1102
  %s1107 = scalar_lea.vmem %s1, 880
  %v1108 = vld [vmem:[%s1107] sm:$0xff]
  %v1109 = vld [vmem:[%s1107 + $0x8] sm:$0xff]
  %v1110 = vunpack.c.l.bf16 %v1108
  %v1111 = vunpack.c.h.bf16 %v1108
  %v1112 = vunpack.c.l.bf16 %v1109
  %v1113 = vunpack.c.h.bf16 %v1109
  %v1114 = vsub.f32 %v1110, %v1083
  %v1115 = vsub.f32 %v1111, %v1087
  %v1116 = vsub.f32 %v1112, %v1083
  %v1117 = vsub.f32 %v1113, %v1087
  %v1118 = vmul.f32 %v1114, %v1114
  %v1119 = vmul.f32 %v1115, %v1115
  %v1120 = vmul.f32 %v1116, %v1116
  %v1121 = vmul.f32 %v1117, %v1117
  %v1122 = vadd.f32 %v1103, %v1118
  %v1123 = vadd.f32 %v1104, %v1119
  %v1124 = vadd.f32 %v1105, %v1120
  %v1125 = vadd.f32 %v1106, %v1121
  %v1126 = vlaneseq
  %v1127 = vshrl.u32 %v1126, 7
  %v1128 = vsub.s32 0, %v1127
  %v1129 = vrot.slane %v21, %v1128
  %v1130 = vlaneseq
  %v1131 = vshrl.u32 %v1130, 7
  %v1132 = vsub.s32 0, %v1131
  %v1133 = vrot.slane %v22, %v1132
  %s1134 = scalar_lea.vmem %s1, 384
  %v1135 = vld [vmem:[%s1134] sm:$0xff]
  %v1136 = vld [vmem:[%s1134 + $0x8] sm:$0xff]
  %v1137 = vunpack.c.l.bf16 %v1135
  %v1138 = vunpack.c.h.bf16 %v1135
  %v1139 = vunpack.c.l.bf16 %v1136
  %v1140 = vunpack.c.h.bf16 %v1136
  %v1141 = vsub.f32 %v1137, %v1129
  %v1142 = vsub.f32 %v1138, %v1133
  %v1143 = vsub.f32 %v1139, %v1129
  %v1144 = vsub.f32 %v1140, %v1133
  %v1145 = vmul.f32 %v1141, %v1141
  %v1146 = vmul.f32 %v1142, %v1142
  %v1147 = vmul.f32 %v1143, %v1143
  %v1148 = vmul.f32 %v1144, %v1144
  %v1149 = vadd.f32 %v1122, %v1145
  %v1150 = vadd.f32 %v1123, %v1146
  %v1151 = vadd.f32 %v1124, %v1147
  %v1152 = vadd.f32 %v1125, %v1148
  %s1153 = scalar_lea.vmem %s1, 896
  %v1154 = vld [vmem:[%s1153] sm:$0xff]
  %v1155 = vld [vmem:[%s1153 + $0x8] sm:$0xff]
  %v1156 = vunpack.c.l.bf16 %v1154
  %v1157 = vunpack.c.h.bf16 %v1154
  %v1158 = vunpack.c.l.bf16 %v1155
  %v1159 = vunpack.c.h.bf16 %v1155
  %v1160 = vsub.f32 %v1156, %v1129
  %v1161 = vsub.f32 %v1157, %v1133
  %v1162 = vsub.f32 %v1158, %v1129
  %v1163 = vsub.f32 %v1159, %v1133
  %v1164 = vmul.f32 %v1160, %v1160
  %v1165 = vmul.f32 %v1161, %v1161
  %v1166 = vmul.f32 %v1162, %v1162
  %v1167 = vmul.f32 %v1163, %v1163
  %v1168 = vadd.f32 %v1149, %v1164
  %v1169 = vadd.f32 %v1150, %v1165
  %v1170 = vadd.f32 %v1151, %v1166
  %v1171 = vadd.f32 %v1152, %v1167
  %v1172 = vlaneseq
  %v1173 = vshrl.u32 %v1172, 7
  %v1174 = vsub.s32 1, %v1173
  %v1175 = vrot.slane %v21, %v1174
  %v1176 = vlaneseq
  %v1177 = vshrl.u32 %v1176, 7
  %v1178 = vsub.s32 1, %v1177
  %v1179 = vrot.slane %v22, %v1178
  %s1180 = scalar_lea.vmem %s1, 400
  %v1181 = vld [vmem:[%s1180] sm:$0xff]
  %v1182 = vld [vmem:[%s1180 + $0x8] sm:$0xff]
  %v1183 = vunpack.c.l.bf16 %v1181
  %v1184 = vunpack.c.h.bf16 %v1181
  %v1185 = vunpack.c.l.bf16 %v1182
  %v1186 = vunpack.c.h.bf16 %v1182
  %v1187 = vsub.f32 %v1183, %v1175
  %v1188 = vsub.f32 %v1184, %v1179
  %v1189 = vsub.f32 %v1185, %v1175
  %v1190 = vsub.f32 %v1186, %v1179
  %v1191 = vmul.f32 %v1187, %v1187
  %v1192 = vmul.f32 %v1188, %v1188
  %v1193 = vmul.f32 %v1189, %v1189
  %v1194 = vmul.f32 %v1190, %v1190
  %v1195 = vadd.f32 %v1168, %v1191
  %v1196 = vadd.f32 %v1169, %v1192
  %v1197 = vadd.f32 %v1170, %v1193
  %v1198 = vadd.f32 %v1171, %v1194
  %s1199 = scalar_lea.vmem %s1, 912
  %v1200 = vld [vmem:[%s1199] sm:$0xff]
  %v1201 = vld [vmem:[%s1199 + $0x8] sm:$0xff]
  %v1202 = vunpack.c.l.bf16 %v1200
  %v1203 = vunpack.c.h.bf16 %v1200
  %v1204 = vunpack.c.l.bf16 %v1201
  %v1205 = vunpack.c.h.bf16 %v1201
  %v1206 = vsub.f32 %v1202, %v1175
  %v1207 = vsub.f32 %v1203, %v1179
  %v1208 = vsub.f32 %v1204, %v1175
  %v1209 = vsub.f32 %v1205, %v1179
  %v1210 = vmul.f32 %v1206, %v1206
  %v1211 = vmul.f32 %v1207, %v1207
  %v1212 = vmul.f32 %v1208, %v1208
  %v1213 = vmul.f32 %v1209, %v1209
  %v1214 = vadd.f32 %v1195, %v1210
  %v1215 = vadd.f32 %v1196, %v1211
  %v1216 = vadd.f32 %v1197, %v1212
  %v1217 = vadd.f32 %v1198, %v1213
  %v1218 = vlaneseq
  %v1219 = vshrl.u32 %v1218, 7
  %v1220 = vsub.s32 2, %v1219
  %v1221 = vrot.slane %v21, %v1220
  %v1222 = vlaneseq
  %v1223 = vshrl.u32 %v1222, 7
  %v1224 = vsub.s32 2, %v1223
  %v1225 = vrot.slane %v22, %v1224
  %s1226 = scalar_lea.vmem %s1, 416
  %v1227 = vld [vmem:[%s1226] sm:$0xff]
  %v1228 = vld [vmem:[%s1226 + $0x8] sm:$0xff]
  %v1229 = vunpack.c.l.bf16 %v1227
  %v1230 = vunpack.c.h.bf16 %v1227
  %v1231 = vunpack.c.l.bf16 %v1228
  %v1232 = vunpack.c.h.bf16 %v1228
  %v1233 = vsub.f32 %v1229, %v1221
  %v1234 = vsub.f32 %v1230, %v1225
  %v1235 = vsub.f32 %v1231, %v1221
  %v1236 = vsub.f32 %v1232, %v1225
  %v1237 = vmul.f32 %v1233, %v1233
  %v1238 = vmul.f32 %v1234, %v1234
  %v1239 = vmul.f32 %v1235, %v1235
  %v1240 = vmul.f32 %v1236, %v1236
  %v1241 = vadd.f32 %v1214, %v1237
  %v1242 = vadd.f32 %v1215, %v1238
  %v1243 = vadd.f32 %v1216, %v1239
  %v1244 = vadd.f32 %v1217, %v1240
  %s1245 = scalar_lea.vmem %s1, 928
  %v1246 = vld [vmem:[%s1245] sm:$0xff]
  %v1247 = vld [vmem:[%s1245 + $0x8] sm:$0xff]
  %v1248 = vunpack.c.l.bf16 %v1246
  %v1249 = vunpack.c.h.bf16 %v1246
  %v1250 = vunpack.c.l.bf16 %v1247
  %v1251 = vunpack.c.h.bf16 %v1247
  %v1252 = vsub.f32 %v1248, %v1221
  %v1253 = vsub.f32 %v1249, %v1225
  %v1254 = vsub.f32 %v1250, %v1221
  %v1255 = vsub.f32 %v1251, %v1225
  %v1256 = vmul.f32 %v1252, %v1252
  %v1257 = vmul.f32 %v1253, %v1253
  %v1258 = vmul.f32 %v1254, %v1254
  %v1259 = vmul.f32 %v1255, %v1255
  %v1260 = vadd.f32 %v1241, %v1256
  %v1261 = vadd.f32 %v1242, %v1257
  %v1262 = vadd.f32 %v1243, %v1258
  %v1263 = vadd.f32 %v1244, %v1259
  %v1264 = vlaneseq
  %v1265 = vshrl.u32 %v1264, 7
  %v1266 = vsub.s32 3, %v1265
  %v1267 = vrot.slane %v21, %v1266
  %v1268 = vlaneseq
  %v1269 = vshrl.u32 %v1268, 7
  %v1270 = vsub.s32 3, %v1269
  %v1271 = vrot.slane %v22, %v1270
  %s1272 = scalar_lea.vmem %s1, 432
  %v1273 = vld [vmem:[%s1272] sm:$0xff]
  %v1274 = vld [vmem:[%s1272 + $0x8] sm:$0xff]
  %v1275 = vunpack.c.l.bf16 %v1273
  %v1276 = vunpack.c.h.bf16 %v1273
  %v1277 = vunpack.c.l.bf16 %v1274
  %v1278 = vunpack.c.h.bf16 %v1274
  %v1279 = vsub.f32 %v1275, %v1267
  %v1280 = vsub.f32 %v1276, %v1271
  %v1281 = vsub.f32 %v1277, %v1267
  %v1282 = vsub.f32 %v1278, %v1271
  %v1283 = vmul.f32 %v1279, %v1279
  %v1284 = vmul.f32 %v1280, %v1280
  %v1285 = vmul.f32 %v1281, %v1281
  %v1286 = vmul.f32 %v1282, %v1282
  %v1287 = vadd.f32 %v1260, %v1283
  %v1288 = vadd.f32 %v1261, %v1284
  %v1289 = vadd.f32 %v1262, %v1285
  %v1290 = vadd.f32 %v1263, %v1286
  %s1291 = scalar_lea.vmem %s1, 944
  %v1292 = vld [vmem:[%s1291] sm:$0xff]
  %v1293 = vld [vmem:[%s1291 + $0x8] sm:$0xff]
  %v1294 = vunpack.c.l.bf16 %v1292
  %v1295 = vunpack.c.h.bf16 %v1292
  %v1296 = vunpack.c.l.bf16 %v1293
  %v1297 = vunpack.c.h.bf16 %v1293
  %v1298 = vsub.f32 %v1294, %v1267
  %v1299 = vsub.f32 %v1295, %v1271
  %v1300 = vsub.f32 %v1296, %v1267
  %v1301 = vsub.f32 %v1297, %v1271
  %v1302 = vmul.f32 %v1298, %v1298
  %v1303 = vmul.f32 %v1299, %v1299
  %v1304 = vmul.f32 %v1300, %v1300
  %v1305 = vmul.f32 %v1301, %v1301
  %v1306 = vadd.f32 %v1287, %v1302
  %v1307 = vadd.f32 %v1288, %v1303
  %v1308 = vadd.f32 %v1289, %v1304
  %v1309 = vadd.f32 %v1290, %v1305
  %v1310 = vlaneseq
  %v1311 = vshrl.u32 %v1310, 7
  %v1312 = vsub.s32 4, %v1311
  %v1313 = vrot.slane %v21, %v1312
  %v1314 = vlaneseq
  %v1315 = vshrl.u32 %v1314, 7
  %v1316 = vsub.s32 4, %v1315
  %v1317 = vrot.slane %v22, %v1316
  %s1318 = scalar_lea.vmem %s1, 448
  %v1319 = vld [vmem:[%s1318] sm:$0xff]
  %v1320 = vld [vmem:[%s1318 + $0x8] sm:$0xff]
  %v1321 = vunpack.c.l.bf16 %v1319
  %v1322 = vunpack.c.h.bf16 %v1319
  %v1323 = vunpack.c.l.bf16 %v1320
  %v1324 = vunpack.c.h.bf16 %v1320
  %v1325 = vsub.f32 %v1321, %v1313
  %v1326 = vsub.f32 %v1322, %v1317
  %v1327 = vsub.f32 %v1323, %v1313
  %v1328 = vsub.f32 %v1324, %v1317
  %v1329 = vmul.f32 %v1325, %v1325
  %v1330 = vmul.f32 %v1326, %v1326
  %v1331 = vmul.f32 %v1327, %v1327
  %v1332 = vmul.f32 %v1328, %v1328
  %v1333 = vadd.f32 %v1306, %v1329
  %v1334 = vadd.f32 %v1307, %v1330
  %v1335 = vadd.f32 %v1308, %v1331
  %v1336 = vadd.f32 %v1309, %v1332
  %s1337 = scalar_lea.vmem %s1, 960
  %v1338 = vld [vmem:[%s1337] sm:$0xff]
  %v1339 = vld [vmem:[%s1337 + $0x8] sm:$0xff]
  %v1340 = vunpack.c.l.bf16 %v1338
  %v1341 = vunpack.c.h.bf16 %v1338
  %v1342 = vunpack.c.l.bf16 %v1339
  %v1343 = vunpack.c.h.bf16 %v1339
  %v1344 = vsub.f32 %v1340, %v1313
  %v1345 = vsub.f32 %v1341, %v1317
  %v1346 = vsub.f32 %v1342, %v1313
  %v1347 = vsub.f32 %v1343, %v1317
  %v1348 = vmul.f32 %v1344, %v1344
  %v1349 = vmul.f32 %v1345, %v1345
  %v1350 = vmul.f32 %v1346, %v1346
  %v1351 = vmul.f32 %v1347, %v1347
  %v1352 = vadd.f32 %v1333, %v1348
  %v1353 = vadd.f32 %v1334, %v1349
  %v1354 = vadd.f32 %v1335, %v1350
  %v1355 = vadd.f32 %v1336, %v1351
  %v1356 = vlaneseq
  %v1357 = vshrl.u32 %v1356, 7
  %v1358 = vsub.s32 5, %v1357
  %v1359 = vrot.slane %v21, %v1358
  %v1360 = vlaneseq
  %v1361 = vshrl.u32 %v1360, 7
  %v1362 = vsub.s32 5, %v1361
  %v1363 = vrot.slane %v22, %v1362
  %s1364 = scalar_lea.vmem %s1, 464
  %v1365 = vld [vmem:[%s1364] sm:$0xff]
  %v1366 = vld [vmem:[%s1364 + $0x8] sm:$0xff]
  %v1367 = vunpack.c.l.bf16 %v1365
  %v1368 = vunpack.c.h.bf16 %v1365
  %v1369 = vunpack.c.l.bf16 %v1366
  %v1370 = vunpack.c.h.bf16 %v1366
  %v1371 = vsub.f32 %v1367, %v1359
  %v1372 = vsub.f32 %v1368, %v1363
  %v1373 = vsub.f32 %v1369, %v1359
  %v1374 = vsub.f32 %v1370, %v1363
  %v1375 = vmul.f32 %v1371, %v1371
  %v1376 = vmul.f32 %v1372, %v1372
  %v1377 = vmul.f32 %v1373, %v1373
  %v1378 = vmul.f32 %v1374, %v1374
  %v1379 = vadd.f32 %v1352, %v1375
  %v1380 = vadd.f32 %v1353, %v1376
  %v1381 = vadd.f32 %v1354, %v1377
  %v1382 = vadd.f32 %v1355, %v1378
  %s1383 = scalar_lea.vmem %s1, 976
  %v1384 = vld [vmem:[%s1383] sm:$0xff]
  %v1385 = vld [vmem:[%s1383 + $0x8] sm:$0xff]
  %v1386 = vunpack.c.l.bf16 %v1384
  %v1387 = vunpack.c.h.bf16 %v1384
  %v1388 = vunpack.c.l.bf16 %v1385
  %v1389 = vunpack.c.h.bf16 %v1385
  %v1390 = vsub.f32 %v1386, %v1359
  %v1391 = vsub.f32 %v1387, %v1363
  %v1392 = vsub.f32 %v1388, %v1359
  %v1393 = vsub.f32 %v1389, %v1363
  %v1394 = vmul.f32 %v1390, %v1390
  %v1395 = vmul.f32 %v1391, %v1391
  %v1396 = vmul.f32 %v1392, %v1392
  %v1397 = vmul.f32 %v1393, %v1393
  %v1398 = vadd.f32 %v1379, %v1394
  %v1399 = vadd.f32 %v1380, %v1395
  %v1400 = vadd.f32 %v1381, %v1396
  %v1401 = vadd.f32 %v1382, %v1397
  %v1402 = vlaneseq
  %v1403 = vshrl.u32 %v1402, 7
  %v1404 = vsub.s32 6, %v1403
  %v1405 = vrot.slane %v21, %v1404
  %v1406 = vlaneseq
  %v1407 = vshrl.u32 %v1406, 7
  %v1408 = vsub.s32 6, %v1407
  %v1409 = vrot.slane %v22, %v1408
  %s1410 = scalar_lea.vmem %s1, 480
  %v1411 = vld [vmem:[%s1410] sm:$0xff]
  %v1412 = vld [vmem:[%s1410 + $0x8] sm:$0xff]
  %v1413 = vunpack.c.l.bf16 %v1411
  %v1414 = vunpack.c.h.bf16 %v1411
  %v1415 = vunpack.c.l.bf16 %v1412
  %v1416 = vunpack.c.h.bf16 %v1412
  %v1417 = vsub.f32 %v1413, %v1405
  %v1418 = vsub.f32 %v1414, %v1409
  %v1419 = vsub.f32 %v1415, %v1405
  %v1420 = vsub.f32 %v1416, %v1409
  %v1421 = vmul.f32 %v1417, %v1417
  %v1422 = vmul.f32 %v1418, %v1418
  %v1423 = vmul.f32 %v1419, %v1419
  %v1424 = vmul.f32 %v1420, %v1420
  %v1425 = vadd.f32 %v1398, %v1421
  %v1426 = vadd.f32 %v1399, %v1422
  %v1427 = vadd.f32 %v1400, %v1423
  %v1428 = vadd.f32 %v1401, %v1424
  %s1429 = scalar_lea.vmem %s1, 992
  %v1430 = vld [vmem:[%s1429] sm:$0xff]
  %v1431 = vld [vmem:[%s1429 + $0x8] sm:$0xff]
  %v1432 = vunpack.c.l.bf16 %v1430
  %v1433 = vunpack.c.h.bf16 %v1430
  %v1434 = vunpack.c.l.bf16 %v1431
  %v1435 = vunpack.c.h.bf16 %v1431
  %v1436 = vsub.f32 %v1432, %v1405
  %v1437 = vsub.f32 %v1433, %v1409
  %v1438 = vsub.f32 %v1434, %v1405
  %v1439 = vsub.f32 %v1435, %v1409
  %v1440 = vmul.f32 %v1436, %v1436
  %v1441 = vmul.f32 %v1437, %v1437
  %v1442 = vmul.f32 %v1438, %v1438
  %v1443 = vmul.f32 %v1439, %v1439
  %v1444 = vadd.f32 %v1425, %v1440
  %v1445 = vadd.f32 %v1426, %v1441
  %v1446 = vadd.f32 %v1427, %v1442
  %v1447 = vadd.f32 %v1428, %v1443
  %v1448 = vlaneseq
  %v1449 = vshrl.u32 %v1448, 7
  %v1450 = vsub.s32 7, %v1449
  %v1451 = vrot.slane %v21, %v1450
  %v1452 = vlaneseq
  %v1453 = vshrl.u32 %v1452, 7
  %v1454 = vsub.s32 7, %v1453
  %v1455 = vrot.slane %v22, %v1454
  %s1456 = scalar_lea.vmem %s1, 496
  %v1457 = vld [vmem:[%s1456] sm:$0xff]
  %v1458 = vld [vmem:[%s1456 + $0x8] sm:$0xff]
  %v1459 = vunpack.c.l.bf16 %v1457
  %v1460 = vunpack.c.h.bf16 %v1457
  %v1461 = vunpack.c.l.bf16 %v1458
  %v1462 = vunpack.c.h.bf16 %v1458
  %v1463 = vsub.f32 %v1459, %v1451
  %v1464 = vsub.f32 %v1460, %v1455
  %v1465 = vsub.f32 %v1461, %v1451
  %v1466 = vsub.f32 %v1462, %v1455
  %v1467 = vmul.f32 %v1463, %v1463
  %v1468 = vmul.f32 %v1464, %v1464
  %v1469 = vmul.f32 %v1465, %v1465
  %v1470 = vmul.f32 %v1466, %v1466
  %v1471 = vadd.f32 %v1444, %v1467
  %v1472 = vadd.f32 %v1445, %v1468
  %v1473 = vadd.f32 %v1446, %v1469
  %v1474 = vadd.f32 %v1447, %v1470
  %s1475 = scalar_lea.vmem %s1, 1008
  %v1476 = vld [vmem:[%s1475] sm:$0xff]
  %v1477 = vld [vmem:[%s1475 + $0x8] sm:$0xff]
  %v1478 = vunpack.c.l.bf16 %v1476
  %v1479 = vunpack.c.h.bf16 %v1476
  %v1480 = vunpack.c.l.bf16 %v1477
  %v1481 = vunpack.c.h.bf16 %v1477
  %v1482 = vsub.f32 %v1478, %v1451
  %v1483 = vsub.f32 %v1479, %v1455
  %v1484 = vsub.f32 %v1480, %v1451
  %v1485 = vsub.f32 %v1481, %v1455
  %v1486 = vmul.f32 %v1482, %v1482
  %v1487 = vmul.f32 %v1483, %v1483
  %v1488 = vmul.f32 %v1484, %v1484
  %v1489 = vmul.f32 %v1485, %v1485
  %v1490 = vadd.f32 %v1471, %v1486
  %v1491 = vadd.f32 %v1472, %v1487
  %v1492 = vadd.f32 %v1473, %v1488
  %v1493 = vadd.f32 %v1474, %v1489
  %v1494 = vmul.f32 %v1490, -0.05
  %v1495 = vmul.f32 %v1491, -0.05
  %v1496 = vmul.f32 %v1492, -0.05
  %v1497 = vmul.f32 %v1493, -0.05
  %v1498 = vmax.f32 %v1494, %v1496
  %v1499 = vrot.slane %v1498, 4
  %v1500 = vmax.f32 %v1498, %v1499
  %v1501 = vrot.slane %v1500, 2
  %v1502 = vmax.f32 %v1500, %v1501
  %v1503 = vrot.slane %v1502, 1
  %v1504 = vmax.f32 %v1502, %v1503
  %v1505 = vmax.f32 %v1495, %v1497
  %v1506 = vrot.slane %v1505, 4
  %v1507 = vmax.f32 %v1505, %v1506
  %v1508 = vrot.slane %v1507, 2
  %v1509 = vmax.f32 %v1507, %v1508
  %v1510 = vrot.slane %v1509, 1
  %v1511 = vmax.f32 %v1509, %v1510
  %v1512 = vsub.f32 %v1494, %v1504
  %v1513 = vsub.f32 %v1495, %v1511
  %v1514 = vsub.f32 %v1496, %v1504
  %v1515 = vsub.f32 %v1497, %v1511
  %v1516 = vmul.f32 %v1512, 1.442695
  %v1517 = vpow.pop %v1516
  %v1518 = vmul.f32 %v1513, 1.442695
  %v1519 = vpow.pop %v1518
  %v1520 = vmul.f32 %v1514, 1.442695
  %v1521 = vpow.pop %v1520
  %v1522 = vmul.f32 %v1515, 1.442695
  %v1523 = vpow.pop %v1522
  %v1524 = vadd.f32 %v1517, %v1521
  %v1525 = vrot.slane %v1524, 4
  %v1526 = vadd.f32 %v1524, %v1525
  %v1527 = vrot.slane %v1526, 2
  %v1528 = vadd.f32 %v1526, %v1527
  %v1529 = vrot.slane %v1528, 1
  %v1530 = vadd.f32 %v1528, %v1529
  %v1531 = vadd.f32 %v1519, %v1523
  %v1532 = vrot.slane %v1531, 4
  %v1533 = vadd.f32 %v1531, %v1532
  %v1534 = vrot.slane %v1533, 2
  %v1535 = vadd.f32 %v1533, %v1534
  %v1536 = vrot.slane %v1535, 1
  %v1537 = vadd.f32 %v1535, %v1536
  %v1538 = vrcp.pop %v1530
  %v1539 = vrcp.pop %v1537
  %v1540 = vmul.f32 %v1517, %v1538
  %v1541 = vmul.f32 %v1519, %v1539
  %v1542 = vmul.f32 %v1521, %v1538
  %v1543 = vmul.f32 %v1523, %v1539
  %1544 = vst [vmem:[%s2] sm:$0xff] %v1540
  %1545 = vst [vmem:[%s2 + $0x8] sm:$0xff] %v1541
  %1546 = vst [vmem:[%s2 + $0x10] sm:$0xff] %v1542
  %1547 = vst [vmem:[%s2 + $0x18] sm:$0xff] %v1543
  // Predicated region
  $region10: #{baseline0_disp_forward.3} parent=0 // pred_check
    _
  $region11: #{baseline0_disp_forward.3} parent=0 // pred_check_branch
    %1549 = sbr.rel (0) target = $region13
  $region12: #{baseline0_disp_forward.3} parent=0 // pred_region
    _
  $region13: #{baseline0_disp_forward.3} parent=0 // pred_fallthru
    _
  // Predicated region
  $region14: #{baseline0_disp_forward.3} parent=0 // pred_check
    _
  $region15: #{baseline0_disp_forward.3} parent=0 // pred_check_branch
    %1551 = sbr.rel (0) target = $region17
  $region16: #{baseline0_disp_forward.3} parent=0 // pred_region
    _
  $region17: #{baseline0_disp_forward.3} parent=0 // pred_fallthru
    _

</llo_original>
